<compile_context>
chip_gen: v7x
topology: tpu7x:2x2x1
jax: 0.10.0
libtpu: 0.0.40
codegen_flags: <defaults>
</compile_context>

<pallas_src>
import math

import jax
import jax.numpy as jnp
from jax import lax
from jax.experimental import pallas as pl
from jax.experimental.pallas import tpu as pltpu


# --------------------------------------------------------------------------
# Exact GELU (erf form, Abramowitz & Stegun 7.1.26, max abs err ~1.5e-7).
# The divide is routed to the EUP via pl.reciprocal(approx=True).
# --------------------------------------------------------------------------

def _erf(x):
    a1, a2, a3, a4, a5 = (0.254829592, -0.284496736, 1.421413741,
                          -1.453152027, 1.061405429)
    p = 0.3275911
    ax = jnp.abs(x)
    t = pl.reciprocal(1.0 + p * ax, approx=True)
    poly = ((((a5 * t + a4) * t + a3) * t + a2) * t + a1) * t
    y = 1.0 - poly * jnp.exp(-ax * ax)
    return jnp.where(x >= 0, y, -y)


def _gelu_exact(x):
    # Matches torch.nn.GELU() default (erf form), not the tanh approximation.
    return 0.5 * x * (1.0 + _erf(x * 0.7071067811865476))


# --------------------------------------------------------------------------
# Fused Block kernel
# --------------------------------------------------------------------------

def _block_kernel(x_ref, dww_ref, dwb_ref, lng_ref, lnb_ref,
                  w1_ref, b1_ref, w2_ref, b2_ref, gamma_ref,
                  o_ref, xp_ref):
    # x_ref    : (1, H, W, C)  f32   full image of the current batch element
    # dww_ref  : (49, C)       f32   depthwise 7x7 taps, row k = ky*7 + kx
    # dwb/lng/lnb/b2/gamma : (1, C) f32 ; b1 : (1, 4C) f32
    # w1_ref   : (C, 4C) bf16 ; w2_ref : (4C, C) bf16
    # o_ref    : (1, TH, W, C) f32   output row tile
    # xp_ref   : (H+6, W+6, C) f32   VMEM scratch: zero-padded image; built at
    #            row-tile 0 of each batch element, reused for the other tiles.
    TH, W, C = o_ref.shape[1], o_ref.shape[2], o_ref.shape[3]
    H = x_ref.shape[1]
    rh = pl.program_id(1)

    # ---- per-batch padded-image build (row-tile 0 only) --------------------
    # Only the 3-wide halo ring is zero-filled; the interior is overwritten
    # with the input every batch, so no full-scratch memset is needed.
    @pl.when(rh == 0)
    def _():
        xp_ref[0:3, :, :] = jnp.zeros((3, W + 6, C), jnp.float32)
        xp_ref[H + 3:H + 6, :, :] = jnp.zeros((3, W + 6, C), jnp.float32)
        xp_ref[3:H + 3, 0:3, :] = jnp.zeros((H, 3, C), jnp.float32)
        xp_ref[3:H + 3, W + 3:W + 6, :] = jnp.zeros((H, 3, C), jnp.float32)
        xp_ref[3:H + 3, 3:W + 3, :] = x_ref[0]

    # ---- depthwise 7x7 conv (cross-correlation) + bias ----------------------
    r0 = pl.multiple_of(rh * TH, TH)
    wv = dww_ref[...]                                # (49, C) in registers
    acc = jnp.zeros((TH, W, C), jnp.float32)
    for k in range(49):                              # static unroll: 49 FMAs
        ky, kx = k // 7, k % 7
        acc = acc + xp_ref[pl.ds(r0 + ky, TH), kx:kx + W, :] * wv[k]
    acc = acc + dwb_ref[...]

    # ---- LayerNorm over channels (single pass: sum + sum of squares) -------
    inv_c = 1.0 / C
    mu = jnp.sum(acc, axis=-1, keepdims=True) * inv_c
    msq = jnp.sum(acc * acc, axis=-1, keepdims=True) * inv_c
    var = jnp.maximum(msq - mu * mu, 0.0)
    xln = (acc - mu) * lax.rsqrt(var + 1e-6)
    xln = xln * lng_ref[...] + lnb_ref[...]

    # ---- pwconv1 -> GELU -> pwconv2 -> layer scale -> residual --------------
    # bf16 MXU matmuls with f32 accumulation; epilogue stays in f32.
    xm = jnp.reshape(xln, (TH * W, C)).astype(jnp.bfloat16)
    h = jnp.dot(xm, w1_ref[...], preferred_element_type=jnp.float32)
    h = _gelu_exact(h + b1_ref[...])
    y = jnp.dot(h.astype(jnp.bfloat16), w2_ref[...],
                preferred_element_type=jnp.float32) + b2_ref[...]
    y = gamma_ref[...] * y

    res = x_ref[:, pl.ds(r0, TH), :, :]              # residual (already in VMEM)
    o_ref[...] = res + jnp.reshape(y, (1, TH, W, C))


def _pick_row_tile(H, W, C,
                   acc_budget=512 * 1024, hid_budget=4 * 1024 * 1024):
    """Largest divisor of H whose conv accumulator (TH,W,C) and f32 MLP
    intermediate (TH*W, 4C) fit a byte budget; prefer >= 2 row tiles per image
    so the grid has steps to pipeline (and gives v7x megacore work at small
    batch)."""
    def fits(th):
        return (th * W * C * 4 <= acc_budget
                and th * W * 4 * C * 4 <= hid_budget)
    feasible = [d for d in range(1, H + 1) if H % d == 0 and fits(d)] or [1]
    th = max(feasible)
    if H // th < 2:
        smaller = [d for d in feasible if H // d >= 2]
        if smaller:
            th = max(smaller)
    return th


def block_forward_nhwc(x_nhwc, p):
    """Fused ConvNeXt Block forward on NHWC input.  Preferred entry point:
    keep the network channels-last across stacked Blocks so the NCHW<->NHWC
    transposes are paid once per network, not once per Block."""
    B, H, W, C = x_nhwc.shape
    Ch = 4 * C
    TH = _pick_row_tile(H, W, C)
    nrt = H // TH

    x_nhwc = x_nhwc.astype(jnp.float32)
    dww = p["dw_w"].reshape(49, C).astype(jnp.float32)
    w1 = p["w1"].astype(jnp.bfloat16)
    w2 = p["w2"].astype(jnp.bfloat16)
    const = lambda b, r: (0, 0)

    return pl.pallas_call(
        _block_kernel,
        out_shape=jax.ShapeDtypeStruct((B, H, W, C), jnp.float32),
        grid=(B, nrt),
        in_specs=[
            pl.BlockSpec((1, H, W, C), lambda b, r: (b, 0, 0, 0)),
            pl.BlockSpec((49, C), const),
            pl.BlockSpec((1, C), const),
            pl.BlockSpec((1, C), const),
            pl.BlockSpec((1, C), const),
            pl.BlockSpec((C, Ch), const),
            pl.BlockSpec((1, Ch), const),
            pl.BlockSpec((Ch, C), const),
            pl.BlockSpec((1, C), const),
            pl.BlockSpec((1, C), const),
        ],
        out_specs=pl.BlockSpec((1, TH, W, C), lambda b, r: (b, r, 0, 0)),
        scratch_shapes=[pltpu.VMEM((H + 6, W + 6, C), jnp.float32)],
        compiler_params=pltpu.CompilerParams(
            dimension_semantics=("parallel", "arbitrary"),
            vmem_limit_bytes=64 * 1024 * 1024),
    )(x_nhwc, dww,
      p["dw_b"].reshape(1, C).astype(jnp.float32),
      p["ln_g"].reshape(1, C).astype(jnp.float32),
      p["ln_b"].reshape(1, C).astype(jnp.float32),
      w1,
      p["b1"].reshape(1, Ch).astype(jnp.float32),
      w2,
      p["b2"].reshape(1, C).astype(jnp.float32),
      p["gamma"].reshape(1, C).astype(jnp.float32))


def block_forward(x_nchw, p):
    """NCHW in / NCHW out, matching the PyTorch module interface."""
    x_nhwc = jnp.transpose(x_nchw, (0, 2, 3, 1))
    y = block_forward_nhwc(x_nhwc, p)
    return jnp.transpose(y, (0, 3, 1, 2))


# --------------------------------------------------------------------------
# Deterministic synthetic parameters (shapes follow Block.__init__).
#  dw_w:  (7, 7, dim)  == conv.weight (dim,1,7,7) transposed to HWC
#  w1:    (dim, 4*dim) == pwconv1.weight.T ;  b1: (4*dim,)
#  w2:    (4*dim, dim) == pwconv2.weight.T ;  b2: (dim,)
#  gamma: layer_scale_init_value * ones(dim)
# --------------------------------------------------------------------------

def init_params(key, dim, layer_scale_init_value=1e-6):
    ks = jax.random.split(key, 6)
    lim_dw = 1.0 / math.sqrt(7 * 7)            # fan_in = k*k (groups=dim)
    dw_w = jax.random.uniform(ks[0], (7, 7, dim), jnp.float32, -lim_dw, lim_dw)
    dw_b = jax.random.uniform(ks[1], (dim,), jnp.float32, -lim_dw, lim_dw)
    ln_g = jnp.ones((dim,), jnp.float32)
    ln_b = jnp.zeros((dim,), jnp.float32)
    lim1 = 1.0 / math.sqrt(dim)
    w1 = jax.random.uniform(ks[2], (dim, 4 * dim), jnp.float32, -lim1, lim1)
    b1 = jax.random.uniform(ks[3], (4 * dim,), jnp.float32, -lim1, lim1)
    lim2 = 1.0 / math.sqrt(4 * dim)
    w2 = jax.random.uniform(ks[4], (4 * dim, dim), jnp.float32, -lim2, lim2)
    b2 = jax.random.uniform(ks[5], (dim,), jnp.float32, -lim2, lim2)
    gamma = layer_scale_init_value * jnp.ones((dim,), jnp.float32)
    return dict(dw_w=dw_w, dw_b=dw_b, ln_g=ln_g, ln_b=ln_b,
                w1=w1, b1=b1, w2=w2, b2=b2, gamma=gamma)


def reference_forward(x_nchw, p):
    """Pure-JAX/XLA reference matching the PyTorch Block forward."""
    B, C, H, W = x_nchw.shape
    x = jnp.transpose(x_nchw, (0, 2, 3, 1))
    w = p["dw_w"].reshape(7, 7, 1, C)
    y = lax.conv_general_dilated(
        x, w, window_strides=(1, 1), padding=[(3, 3), (3, 3)],
        dimension_numbers=("NHWC", "HWIO", "NHWC"),
        feature_group_count=C) + p["dw_b"]
    mu = y.mean(-1, keepdims=True)
    var = ((y - mu) ** 2).mean(-1, keepdims=True)
    y = (y - mu) / jnp.sqrt(var + 1e-6) * p["ln_g"] + p["ln_b"]
    h = jax.nn.gelu(y @ p["w1"] + p["b1"], approximate=False)
    y = h @ p["w2"] + p["b2"]
    y = p["gamma"] * y
    return x_nchw + jnp.transpose(y, (0, 3, 1, 2))


if __name__ == "__main__":
    key = jax.random.PRNGKey(0)
    kp, kx = jax.random.split(key)

    dim, B, H, W = 32, 2, 16, 16               # small ConvNeXt-block shapes
    # layer_scale_init_value=0.1 (vs the 1e-6 default) so the MLP branch is
    # actually visible in the correctness check below.
    params = init_params(kp, dim, layer_scale_init_value=0.1)
    x = jax.random.normal(kx, (B, dim, H, W), jnp.float32)    # NCHW, like PyTorch

    fwd = jax.jit(lambda xx: block_forward(xx, params))
    out = fwd(x)
    jax.block_until_ready(out)

    assert out.shape == (B, dim, H, W) and out.dtype == jnp.float32
    assert bool(jnp.all(jnp.isfinite(out)))

    ref = reference_forward(x, params)
    err = float(jnp.max(jnp.abs(out - ref)))
    # bf16 MXU matmuls + approx-reciprocal erf => not bit-exact vs the f32 ref.
    assert err < 5e-2, f"max abs err {err}"
    print("KERNEL_OK")
</pallas_src>

<mosaic_0001>
module attributes {stable_mosaic.version = 11 : i64} {
  func.func @_block_kernel(%arg0: i32, %arg1: i32, %arg2: memref<1x16x16x32xf32, #tpu.memory_space<vmem>>, %arg3: memref<49x32xf32, #tpu.memory_space<vmem>>, %arg4: memref<1x32xf32, #tpu.memory_space<vmem>>, %arg5: memref<1x32xf32, #tpu.memory_space<vmem>>, %arg6: memref<1x32xf32, #tpu.memory_space<vmem>>, %arg7: memref<32x128xbf16, #tpu.memory_space<vmem>>, %arg8: memref<1x128xf32, #tpu.memory_space<vmem>>, %arg9: memref<128x32xbf16, #tpu.memory_space<vmem>>, %arg10: memref<1x32xf32, #tpu.memory_space<vmem>>, %arg11: memref<1x32xf32, #tpu.memory_space<vmem>>, %arg12: memref<1x8x16x32xf32, #tpu.memory_space<vmem>>, %arg13: memref<22x22x32xf32, #tpu.memory_space<vmem>>) attributes {dimension_semantics = [#tpu.dimension_semantics<parallel>, #tpu.dimension_semantics<arbitrary>], iteration_bounds = array<i64: 2, 2>, scalar_prefetch = 0 : i64, scratch_operands = 1 : i64, tpu.core_type = #tpu.core_type<tc>, window_params = [{transform_indices = @transform_0, window_bounds = array<i64: 1, 16, 16, 32>}, {pipeline_mode = #tpu.pipeline_mode<synchronous>, transform_indices = @transform_1, window_bounds = array<i64: 49, 32>}, {pipeline_mode = #tpu.pipeline_mode<synchronous>, transform_indices = @transform_2, window_bounds = array<i64: 1, 32>}, {pipeline_mode = #tpu.pipeline_mode<synchronous>, transform_indices = @transform_3, window_bounds = array<i64: 1, 32>}, {pipeline_mode = #tpu.pipeline_mode<synchronous>, transform_indices = @transform_4, window_bounds = array<i64: 1, 32>}, {pipeline_mode = #tpu.pipeline_mode<synchronous>, transform_indices = @transform_5, window_bounds = array<i64: 32, 128>}, {pipeline_mode = #tpu.pipeline_mode<synchronous>, transform_indices = @transform_6, window_bounds = array<i64: 1, 128>}, {pipeline_mode = #tpu.pipeline_mode<synchronous>, transform_indices = @transform_7, window_bounds = array<i64: 128, 32>}, {pipeline_mode = #tpu.pipeline_mode<synchronous>, transform_indices = @transform_8, window_bounds = array<i64: 1, 32>}, {pipeline_mode = #tpu.pipeline_mode<synchronous>, transform_indices = @transform_9, window_bounds = array<i64: 1, 32>}, {transform_indices = @transform_10, window_bounds = array<i64: 1, 8, 16, 32>}]} {
    %c0_i32 = arith.constant 0 : i32
    %0 = arith.cmpi eq, %arg1, %c0_i32 : i32
    %1 = arith.extui %0 : i1 to i32
    %c0_i32_0 = arith.constant 0 : i32
    %2 = arith.cmpi ne, %1, %c0_i32_0 : i32
    scf.if %2 {
      %cst_182 = arith.constant 0.000000e+00 : f32
      %540 = vector.broadcast %cst_182 : f32 to vector<3x22x32xf32>
      %c0_183 = arith.constant 0 : index
      %c0_184 = arith.constant 0 : index
      %c0_185 = arith.constant 0 : index
      %541 = vector.load %arg13[%c0_183, %c0_184, %c0_185] : memref<22x22x32xf32, #tpu.memory_space<vmem>>, vector<3x22x32xf32>
      tpu.vector_store %arg13[%c0_183, %c0_184, %c0_185], %540 {strides = array<i32>} : memref<22x22x32xf32, #tpu.memory_space<vmem>>, vector<3x22x32xf32>,
      %cst_186 = arith.constant 0.000000e+00 : f32
      %542 = vector.broadcast %cst_186 : f32 to vector<3x22x32xf32>
      %c19 = arith.constant 19 : index
      %c0_187 = arith.constant 0 : index
      %c0_188 = arith.constant 0 : index
      %543 = vector.load %arg13[%c19, %c0_187, %c0_188] : memref<22x22x32xf32, #tpu.memory_space<vmem>>, vector<3x22x32xf32>
      tpu.vector_store %arg13[%c19, %c0_187, %c0_188], %542 {strides = array<i32>} : memref<22x22x32xf32, #tpu.memory_space<vmem>>, vector<3x22x32xf32>,
      %cst_189 = arith.constant 0.000000e+00 : f32
      %544 = vector.broadcast %cst_189 : f32 to vector<16x3x32xf32>
      %c3_190 = arith.constant 3 : index
      %c0_191 = arith.constant 0 : index
      %c0_192 = arith.constant 0 : index
      %545 = vector.load %arg13[%c3_190, %c0_191, %c0_192] : memref<22x22x32xf32, #tpu.memory_space<vmem>>, vector<16x3x32xf32>
      tpu.vector_store %arg13[%c3_190, %c0_191, %c0_192], %544 {strides = array<i32>} : memref<22x22x32xf32, #tpu.memory_space<vmem>>, vector<16x3x32xf32>,
      %cst_193 = arith.constant 0.000000e+00 : f32
      %546 = vector.broadcast %cst_193 : f32 to vector<16x3x32xf32>
      %c3_194 = arith.constant 3 : index
      %c19_195 = arith.constant 19 : index
      %c0_196 = arith.constant 0 : index
      %547 = vector.load %arg13[%c3_194, %c19_195, %c0_196] : memref<22x22x32xf32, #tpu.memory_space<vmem>>, vector<16x3x32xf32>
      tpu.vector_store %arg13[%c3_194, %c19_195, %c0_196], %546 {strides = array<i32>} : memref<22x22x32xf32, #tpu.memory_space<vmem>>, vector<16x3x32xf32>,
      %c0_197 = arith.constant 0 : index
      %c0_198 = arith.constant 0 : index
      %c0_199 = arith.constant 0 : index
      %c0_200 = arith.constant 0 : index
      %548 = vector.load %arg2[%c0_197, %c0_198, %c0_199, %c0_200] : memref<1x16x16x32xf32, #tpu.memory_space<vmem>>, vector<1x16x16x32xf32>
      %549 = vector.shape_cast %548 : vector<1x16x16x32xf32> to vector<16x16x32xf32>
      %c3_201 = arith.constant 3 : index
      %c3_202 = arith.constant 3 : index
      %c0_203 = arith.constant 0 : index
      %550 = vector.load %arg13[%c3_201, %c3_202, %c0_203] : memref<22x22x32xf32, #tpu.memory_space<vmem>>, vector<16x16x32xf32>
      tpu.vector_store %arg13[%c3_201, %c3_202, %c0_203], %549 {strides = array<i32>} : memref<22x22x32xf32, #tpu.memory_space<vmem>>, vector<16x16x32xf32>,
    } else {
    }
    %c8_i32 = arith.constant 8 : i32
    %3 = arith.muli %arg1, %c8_i32 : i32
    %4 = tpu.assume_multiple %3, 8 : i32
    %c0 = arith.constant 0 : index
    %c0_1 = arith.constant 0 : index
    %5 = vector.load %arg3[%c0, %c0_1] : memref<49x32xf32, #tpu.memory_space<vmem>>, vector<49x32xf32>
    %cst = arith.constant 0.000000e+00 : f32
    %6 = vector.broadcast %cst : f32 to vector<8x16x32xf32>
    %c0_i32_2 = arith.constant 0 : i32
    %7 = arith.addi %4, %c0_i32_2 : i32
    %8 = arith.index_cast %7 : i32 to index
    %c0_3 = arith.constant 0 : index
    %c0_4 = arith.constant 0 : index
    %9 = vector.load %arg13[%8, %c0_3, %c0_4] : memref<22x22x32xf32, #tpu.memory_space<vmem>>, vector<8x16x32xf32>
    %10 = vector.extract_strided_slice %5 {offsets = [0, 0], sizes = [1, 32], strides = [1, 1]} : vector<49x32xf32> to vector<1x32xf32>
    %11 = vector.shape_cast %10 : vector<1x32xf32> to vector<32xf32>
    %12 = vector.shape_cast %11 : vector<32xf32> to vector<1x1x32xf32>
    %13 = vector.broadcast %12 : vector<1x1x32xf32> to vector<8x16x32xf32>
    %14 = arith.mulf %9, %13 : vector<8x16x32xf32>
    %15 = arith.addf %6, %14 : vector<8x16x32xf32>
    %c0_i32_5 = arith.constant 0 : i32
    %16 = arith.addi %4, %c0_i32_5 : i32
    %17 = arith.index_cast %16 : i32 to index
    %c1 = arith.constant 1 : index
    %c0_6 = arith.constant 0 : index
    %18 = vector.load %arg13[%17, %c1, %c0_6] : memref<22x22x32xf32, #tpu.memory_space<vmem>>, vector<8x16x32xf32>
    %19 = vector.extract_strided_slice %5 {offsets = [1, 0], sizes = [1, 32], strides = [1, 1]} : vector<49x32xf32> to vector<1x32xf32>
    %20 = vector.shape_cast %19 : vector<1x32xf32> to vector<32xf32>
    %21 = vector.shape_cast %20 : vector<32xf32> to vector<1x1x32xf32>
    %22 = vector.broadcast %21 : vector<1x1x32xf32> to vector<8x16x32xf32>
    %23 = arith.mulf %18, %22 : vector<8x16x32xf32>
    %24 = arith.addf %15, %23 : vector<8x16x32xf32>
    %c0_i32_7 = arith.constant 0 : i32
    %25 = arith.addi %4, %c0_i32_7 : i32
    %26 = arith.index_cast %25 : i32 to index
    %c2 = arith.constant 2 : index
    %c0_8 = arith.constant 0 : index
    %27 = vector.load %arg13[%26, %c2, %c0_8] : memref<22x22x32xf32, #tpu.memory_space<vmem>>, vector<8x16x32xf32>
    %28 = vector.extract_strided_slice %5 {offsets = [2, 0], sizes = [1, 32], strides = [1, 1]} : vector<49x32xf32> to vector<1x32xf32>
    %29 = vector.shape_cast %28 : vector<1x32xf32> to vector<32xf32>
    %30 = vector.shape_cast %29 : vector<32xf32> to vector<1x1x32xf32>
    %31 = vector.broadcast %30 : vector<1x1x32xf32> to vector<8x16x32xf32>
    %32 = arith.mulf %27, %31 : vector<8x16x32xf32>
    %33 = arith.addf %24, %32 : vector<8x16x32xf32>
    %c0_i32_9 = arith.constant 0 : i32
    %34 = arith.addi %4, %c0_i32_9 : i32
    %35 = arith.index_cast %34 : i32 to index
    %c3 = arith.constant 3 : index
    %c0_10 = arith.constant 0 : index
    %36 = vector.load %arg13[%35, %c3, %c0_10] : memref<22x22x32xf32, #tpu.memory_space<vmem>>, vector<8x16x32xf32>
    %37 = vector.extract_strided_slice %5 {offsets = [3, 0], sizes = [1, 32], strides = [1, 1]} : vector<49x32xf32> to vector<1x32xf32>
    %38 = vector.shape_cast %37 : vector<1x32xf32> to vector<32xf32>
    %39 = vector.shape_cast %38 : vector<32xf32> to vector<1x1x32xf32>
    %40 = vector.broadcast %39 : vector<1x1x32xf32> to vector<8x16x32xf32>
    %41 = arith.mulf %36, %40 : vector<8x16x32xf32>
    %42 = arith.addf %33, %41 : vector<8x16x32xf32>
    %c0_i32_11 = arith.constant 0 : i32
    %43 = arith.addi %4, %c0_i32_11 : i32
    %44 = arith.index_cast %43 : i32 to index
    %c4 = arith.constant 4 : index
    %c0_12 = arith.constant 0 : index
    %45 = vector.load %arg13[%44, %c4, %c0_12] : memref<22x22x32xf32, #tpu.memory_space<vmem>>, vector<8x16x32xf32>
    %46 = vector.extract_strided_slice %5 {offsets = [4, 0], sizes = [1, 32], strides = [1, 1]} : vector<49x32xf32> to vector<1x32xf32>
    %47 = vector.shape_cast %46 : vector<1x32xf32> to vector<32xf32>
    %48 = vector.shape_cast %47 : vector<32xf32> to vector<1x1x32xf32>
    %49 = vector.broadcast %48 : vector<1x1x32xf32> to vector<8x16x32xf32>
    %50 = arith.mulf %45, %49 : vector<8x16x32xf32>
    %51 = arith.addf %42, %50 : vector<8x16x32xf32>
    %c0_i32_13 = arith.constant 0 : i32
    %52 = arith.addi %4, %c0_i32_13 : i32
    %53 = arith.index_cast %52 : i32 to index
    %c5 = arith.constant 5 : index
    %c0_14 = arith.constant 0 : index
    %54 = vector.load %arg13[%53, %c5, %c0_14] : memref<22x22x32xf32, #tpu.memory_space<vmem>>, vector<8x16x32xf32>
    %55 = vector.extract_strided_slice %5 {offsets = [5, 0], sizes = [1, 32], strides = [1, 1]} : vector<49x32xf32> to vector<1x32xf32>
    %56 = vector.shape_cast %55 : vector<1x32xf32> to vector<32xf32>
    %57 = vector.shape_cast %56 : vector<32xf32> to vector<1x1x32xf32>
    %58 = vector.broadcast %57 : vector<1x1x32xf32> to vector<8x16x32xf32>
    %59 = arith.mulf %54, %58 : vector<8x16x32xf32>
    %60 = arith.addf %51, %59 : vector<8x16x32xf32>
    %c0_i32_15 = arith.constant 0 : i32
    %61 = arith.addi %4, %c0_i32_15 : i32
    %62 = arith.index_cast %61 : i32 to index
    %c6 = arith.constant 6 : index
    %c0_16 = arith.constant 0 : index
    %63 = vector.load %arg13[%62, %c6, %c0_16] : memref<22x22x32xf32, #tpu.memory_space<vmem>>, vector<8x16x32xf32>
    %64 = vector.extract_strided_slice %5 {offsets = [6, 0], sizes = [1, 32], strides = [1, 1]} : vector<49x32xf32> to vector<1x32xf32>
    %65 = vector.shape_cast %64 : vector<1x32xf32> to vector<32xf32>
    %66 = vector.shape_cast %65 : vector<32xf32> to vector<1x1x32xf32>
    %67 = vector.broadcast %66 : vector<1x1x32xf32> to vector<8x16x32xf32>
    %68 = arith.mulf %63, %67 : vector<8x16x32xf32>
    %69 = arith.addf %60, %68 : vector<8x16x32xf32>
    %c1_i32 = arith.constant 1 : i32
    %70 = arith.addi %4, %c1_i32 : i32
    %71 = arith.index_cast %70 : i32 to index
    %c0_17 = arith.constant 0 : index
    %c0_18 = arith.constant 0 : index
    %72 = vector.load %arg13[%71, %c0_17, %c0_18] : memref<22x22x32xf32, #tpu.memory_space<vmem>>, vector<8x16x32xf32>
    %73 = vector.extract_strided_slice %5 {offsets = [7, 0], sizes = [1, 32], strides = [1, 1]} : vector<49x32xf32> to vector<1x32xf32>
    %74 = vector.shape_cast %73 : vector<1x32xf32> to vector<32xf32>
    %75 = vector.shape_cast %74 : vector<32xf32> to vector<1x1x32xf32>
    %76 = vector.broadcast %75 : vector<1x1x32xf32> to vector<8x16x32xf32>
    %77 = arith.mulf %72, %76 : vector<8x16x32xf32>
    %78 = arith.addf %69, %77 : vector<8x16x32xf32>
    %c1_i32_19 = arith.constant 1 : i32
    %79 = arith.addi %4, %c1_i32_19 : i32
    %80 = arith.index_cast %79 : i32 to index
    %c1_20 = arith.constant 1 : index
    %c0_21 = arith.constant 0 : index
    %81 = vector.load %arg13[%80, %c1_20, %c0_21] : memref<22x22x32xf32, #tpu.memory_space<vmem>>, vector<8x16x32xf32>
    %82 = vector.extract_strided_slice %5 {offsets = [8, 0], sizes = [1, 32], strides = [1, 1]} : vector<49x32xf32> to vector<1x32xf32>
    %83 = vector.shape_cast %82 : vector<1x32xf32> to vector<32xf32>
    %84 = vector.shape_cast %83 : vector<32xf32> to vector<1x1x32xf32>
    %85 = vector.broadcast %84 : vector<1x1x32xf32> to vector<8x16x32xf32>
    %86 = arith.mulf %81, %85 : vector<8x16x32xf32>
    %87 = arith.addf %78, %86 : vector<8x16x32xf32>
    %c1_i32_22 = arith.constant 1 : i32
    %88 = arith.addi %4, %c1_i32_22 : i32
    %89 = arith.index_cast %88 : i32 to index
    %c2_23 = arith.constant 2 : index
    %c0_24 = arith.constant 0 : index
    %90 = vector.load %arg13[%89, %c2_23, %c0_24] : memref<22x22x32xf32, #tpu.memory_space<vmem>>, vector<8x16x32xf32>
    %91 = vector.extract_strided_slice %5 {offsets = [9, 0], sizes = [1, 32], strides = [1, 1]} : vector<49x32xf32> to vector<1x32xf32>
    %92 = vector.shape_cast %91 : vector<1x32xf32> to vector<32xf32>
    %93 = vector.shape_cast %92 : vector<32xf32> to vector<1x1x32xf32>
    %94 = vector.broadcast %93 : vector<1x1x32xf32> to vector<8x16x32xf32>
    %95 = arith.mulf %90, %94 : vector<8x16x32xf32>
    %96 = arith.addf %87, %95 : vector<8x16x32xf32>
    %c1_i32_25 = arith.constant 1 : i32
    %97 = arith.addi %4, %c1_i32_25 : i32
    %98 = arith.index_cast %97 : i32 to index
    %c3_26 = arith.constant 3 : index
    %c0_27 = arith.constant 0 : index
    %99 = vector.load %arg13[%98, %c3_26, %c0_27] : memref<22x22x32xf32, #tpu.memory_space<vmem>>, vector<8x16x32xf32>
    %100 = vector.extract_strided_slice %5 {offsets = [10, 0], sizes = [1, 32], strides = [1, 1]} : vector<49x32xf32> to vector<1x32xf32>
    %101 = vector.shape_cast %100 : vector<1x32xf32> to vector<32xf32>
    %102 = vector.shape_cast %101 : vector<32xf32> to vector<1x1x32xf32>
    %103 = vector.broadcast %102 : vector<1x1x32xf32> to vector<8x16x32xf32>
    %104 = arith.mulf %99, %103 : vector<8x16x32xf32>
    %105 = arith.addf %96, %104 : vector<8x16x32xf32>
    %c1_i32_28 = arith.constant 1 : i32
    %106 = arith.addi %4, %c1_i32_28 : i32
    %107 = arith.index_cast %106 : i32 to index
    %c4_29 = arith.constant 4 : index
    %c0_30 = arith.constant 0 : index
    %108 = vector.load %arg13[%107, %c4_29, %c0_30] : memref<22x22x32xf32, #tpu.memory_space<vmem>>, vector<8x16x32xf32>
    %109 = vector.extract_strided_slice %5 {offsets = [11, 0], sizes = [1, 32], strides = [1, 1]} : vector<49x32xf32> to vector<1x32xf32>
    %110 = vector.shape_cast %109 : vector<1x32xf32> to vector<32xf32>
    %111 = vector.shape_cast %110 : vector<32xf32> to vector<1x1x32xf32>
    %112 = vector.broadcast %111 : vector<1x1x32xf32> to vector<8x16x32xf32>
    %113 = arith.mulf %108, %112 : vector<8x16x32xf32>
    %114 = arith.addf %105, %113 : vector<8x16x32xf32>
    %c1_i32_31 = arith.constant 1 : i32
    %115 = arith.addi %4, %c1_i32_31 : i32
    %116 = arith.index_cast %115 : i32 to index
    %c5_32 = arith.constant 5 : index
    %c0_33 = arith.constant 0 : index
    %117 = vector.load %arg13[%116, %c5_32, %c0_33] : memref<22x22x32xf32, #tpu.memory_space<vmem>>, vector<8x16x32xf32>
    %118 = vector.extract_strided_slice %5 {offsets = [12, 0], sizes = [1, 32], strides = [1, 1]} : vector<49x32xf32> to vector<1x32xf32>
    %119 = vector.shape_cast %118 : vector<1x32xf32> to vector<32xf32>
    %120 = vector.shape_cast %119 : vector<32xf32> to vector<1x1x32xf32>
    %121 = vector.broadcast %120 : vector<1x1x32xf32> to vector<8x16x32xf32>
    %122 = arith.mulf %117, %121 : vector<8x16x32xf32>
    %123 = arith.addf %114, %122 : vector<8x16x32xf32>
    %c1_i32_34 = arith.constant 1 : i32
    %124 = arith.addi %4, %c1_i32_34 : i32
    %125 = arith.index_cast %124 : i32 to index
    %c6_35 = arith.constant 6 : index
    %c0_36 = arith.constant 0 : index
    %126 = vector.load %arg13[%125, %c6_35, %c0_36] : memref<22x22x32xf32, #tpu.memory_space<vmem>>, vector<8x16x32xf32>
    %127 = vector.extract_strided_slice %5 {offsets = [13, 0], sizes = [1, 32], strides = [1, 1]} : vector<49x32xf32> to vector<1x32xf32>
    %128 = vector.shape_cast %127 : vector<1x32xf32> to vector<32xf32>
    %129 = vector.shape_cast %128 : vector<32xf32> to vector<1x1x32xf32>
    %130 = vector.broadcast %129 : vector<1x1x32xf32> to vector<8x16x32xf32>
    %131 = arith.mulf %126, %130 : vector<8x16x32xf32>
    %132 = arith.addf %123, %131 : vector<8x16x32xf32>
    %c2_i32 = arith.constant 2 : i32
    %133 = arith.addi %4, %c2_i32 : i32
    %134 = arith.index_cast %133 : i32 to index
    %c0_37 = arith.constant 0 : index
    %c0_38 = arith.constant 0 : index
    %135 = vector.load %arg13[%134, %c0_37, %c0_38] : memref<22x22x32xf32, #tpu.memory_space<vmem>>, vector<8x16x32xf32>
    %136 = vector.extract_strided_slice %5 {offsets = [14, 0], sizes = [1, 32], strides = [1, 1]} : vector<49x32xf32> to vector<1x32xf32>
    %137 = vector.shape_cast %136 : vector<1x32xf32> to vector<32xf32>
    %138 = vector.shape_cast %137 : vector<32xf32> to vector<1x1x32xf32>
    %139 = vector.broadcast %138 : vector<1x1x32xf32> to vector<8x16x32xf32>
    %140 = arith.mulf %135, %139 : vector<8x16x32xf32>
    %141 = arith.addf %132, %140 : vector<8x16x32xf32>
    %c2_i32_39 = arith.constant 2 : i32
    %142 = arith.addi %4, %c2_i32_39 : i32
    %143 = arith.index_cast %142 : i32 to index
    %c1_40 = arith.constant 1 : index
    %c0_41 = arith.constant 0 : index
    %144 = vector.load %arg13[%143, %c1_40, %c0_41] : memref<22x22x32xf32, #tpu.memory_space<vmem>>, vector<8x16x32xf32>
    %145 = vector.extract_strided_slice %5 {offsets = [15, 0], sizes = [1, 32], strides = [1, 1]} : vector<49x32xf32> to vector<1x32xf32>
    %146 = vector.shape_cast %145 : vector<1x32xf32> to vector<32xf32>
    %147 = vector.shape_cast %146 : vector<32xf32> to vector<1x1x32xf32>
    %148 = vector.broadcast %147 : vector<1x1x32xf32> to vector<8x16x32xf32>
    %149 = arith.mulf %144, %148 : vector<8x16x32xf32>
    %150 = arith.addf %141, %149 : vector<8x16x32xf32>
    %c2_i32_42 = arith.constant 2 : i32
    %151 = arith.addi %4, %c2_i32_42 : i32
    %152 = arith.index_cast %151 : i32 to index
    %c2_43 = arith.constant 2 : index
    %c0_44 = arith.constant 0 : index
    %153 = vector.load %arg13[%152, %c2_43, %c0_44] : memref<22x22x32xf32, #tpu.memory_space<vmem>>, vector<8x16x32xf32>
    %154 = vector.extract_strided_slice %5 {offsets = [16, 0], sizes = [1, 32], strides = [1, 1]} : vector<49x32xf32> to vector<1x32xf32>
    %155 = vector.shape_cast %154 : vector<1x32xf32> to vector<32xf32>
    %156 = vector.shape_cast %155 : vector<32xf32> to vector<1x1x32xf32>
    %157 = vector.broadcast %156 : vector<1x1x32xf32> to vector<8x16x32xf32>
    %158 = arith.mulf %153, %157 : vector<8x16x32xf32>
    %159 = arith.addf %150, %158 : vector<8x16x32xf32>
    %c2_i32_45 = arith.constant 2 : i32
    %160 = arith.addi %4, %c2_i32_45 : i32
    %161 = arith.index_cast %160 : i32 to index
    %c3_46 = arith.constant 3 : index
    %c0_47 = arith.constant 0 : index
    %162 = vector.load %arg13[%161, %c3_46, %c0_47] : memref<22x22x32xf32, #tpu.memory_space<vmem>>, vector<8x16x32xf32>
    %163 = vector.extract_strided_slice %5 {offsets = [17, 0], sizes = [1, 32], strides = [1, 1]} : vector<49x32xf32> to vector<1x32xf32>
    %164 = vector.shape_cast %163 : vector<1x32xf32> to vector<32xf32>
    %165 = vector.shape_cast %164 : vector<32xf32> to vector<1x1x32xf32>
    %166 = vector.broadcast %165 : vector<1x1x32xf32> to vector<8x16x32xf32>
    %167 = arith.mulf %162, %166 : vector<8x16x32xf32>
    %168 = arith.addf %159, %167 : vector<8x16x32xf32>
    %c2_i32_48 = arith.constant 2 : i32
    %169 = arith.addi %4, %c2_i32_48 : i32
    %170 = arith.index_cast %169 : i32 to index
    %c4_49 = arith.constant 4 : index
    %c0_50 = arith.constant 0 : index
    %171 = vector.load %arg13[%170, %c4_49, %c0_50] : memref<22x22x32xf32, #tpu.memory_space<vmem>>, vector<8x16x32xf32>
    %172 = vector.extract_strided_slice %5 {offsets = [18, 0], sizes = [1, 32], strides = [1, 1]} : vector<49x32xf32> to vector<1x32xf32>
    %173 = vector.shape_cast %172 : vector<1x32xf32> to vector<32xf32>
    %174 = vector.shape_cast %173 : vector<32xf32> to vector<1x1x32xf32>
    %175 = vector.broadcast %174 : vector<1x1x32xf32> to vector<8x16x32xf32>
    %176 = arith.mulf %171, %175 : vector<8x16x32xf32>
    %177 = arith.addf %168, %176 : vector<8x16x32xf32>
    %c2_i32_51 = arith.constant 2 : i32
    %178 = arith.addi %4, %c2_i32_51 : i32
    %179 = arith.index_cast %178 : i32 to index
    %c5_52 = arith.constant 5 : index
    %c0_53 = arith.constant 0 : index
    %180 = vector.load %arg13[%179, %c5_52, %c0_53] : memref<22x22x32xf32, #tpu.memory_space<vmem>>, vector<8x16x32xf32>
    %181 = vector.extract_strided_slice %5 {offsets = [19, 0], sizes = [1, 32], strides = [1, 1]} : vector<49x32xf32> to vector<1x32xf32>
    %182 = vector.shape_cast %181 : vector<1x32xf32> to vector<32xf32>
    %183 = vector.shape_cast %182 : vector<32xf32> to vector<1x1x32xf32>
    %184 = vector.broadcast %183 : vector<1x1x32xf32> to vector<8x16x32xf32>
    %185 = arith.mulf %180, %184 : vector<8x16x32xf32>
    %186 = arith.addf %177, %185 : vector<8x16x32xf32>
    %c2_i32_54 = arith.constant 2 : i32
    %187 = arith.addi %4, %c2_i32_54 : i32
    %188 = arith.index_cast %187 : i32 to index
    %c6_55 = arith.constant 6 : index
    %c0_56 = arith.constant 0 : index
    %189 = vector.load %arg13[%188, %c6_55, %c0_56] : memref<22x22x32xf32, #tpu.memory_space<vmem>>, vector<8x16x32xf32>
    %190 = vector.extract_strided_slice %5 {offsets = [20, 0], sizes = [1, 32], strides = [1, 1]} : vector<49x32xf32> to vector<1x32xf32>
    %191 = vector.shape_cast %190 : vector<1x32xf32> to vector<32xf32>
    %192 = vector.shape_cast %191 : vector<32xf32> to vector<1x1x32xf32>
    %193 = vector.broadcast %192 : vector<1x1x32xf32> to vector<8x16x32xf32>
    %194 = arith.mulf %189, %193 : vector<8x16x32xf32>
    %195 = arith.addf %186, %194 : vector<8x16x32xf32>
    %c3_i32 = arith.constant 3 : i32
    %196 = arith.addi %4, %c3_i32 : i32
    %197 = arith.index_cast %196 : i32 to index
    %c0_57 = arith.constant 0 : index
    %c0_58 = arith.constant 0 : index
    %198 = vector.load %arg13[%197, %c0_57, %c0_58] : memref<22x22x32xf32, #tpu.memory_space<vmem>>, vector<8x16x32xf32>
    %199 = vector.extract_strided_slice %5 {offsets = [21, 0], sizes = [1, 32], strides = [1, 1]} : vector<49x32xf32> to vector<1x32xf32>
    %200 = vector.shape_cast %199 : vector<1x32xf32> to vector<32xf32>
    %201 = vector.shape_cast %200 : vector<32xf32> to vector<1x1x32xf32>
    %202 = vector.broadcast %201 : vector<1x1x32xf32> to vector<8x16x32xf32>
    %203 = arith.mulf %198, %202 : vector<8x16x32xf32>
    %204 = arith.addf %195, %203 : vector<8x16x32xf32>
    %c3_i32_59 = arith.constant 3 : i32
    %205 = arith.addi %4, %c3_i32_59 : i32
    %206 = arith.index_cast %205 : i32 to index
    %c1_60 = arith.constant 1 : index
    %c0_61 = arith.constant 0 : index
    %207 = vector.load %arg13[%206, %c1_60, %c0_61] : memref<22x22x32xf32, #tpu.memory_space<vmem>>, vector<8x16x32xf32>
    %208 = vector.extract_strided_slice %5 {offsets = [22, 0], sizes = [1, 32], strides = [1, 1]} : vector<49x32xf32> to vector<1x32xf32>
    %209 = vector.shape_cast %208 : vector<1x32xf32> to vector<32xf32>
    %210 = vector.shape_cast %209 : vector<32xf32> to vector<1x1x32xf32>
    %211 = vector.broadcast %210 : vector<1x1x32xf32> to vector<8x16x32xf32>
    %212 = arith.mulf %207, %211 : vector<8x16x32xf32>
    %213 = arith.addf %204, %212 : vector<8x16x32xf32>
    %c3_i32_62 = arith.constant 3 : i32
    %214 = arith.addi %4, %c3_i32_62 : i32
    %215 = arith.index_cast %214 : i32 to index
    %c2_63 = arith.constant 2 : index
    %c0_64 = arith.constant 0 : index
    %216 = vector.load %arg13[%215, %c2_63, %c0_64] : memref<22x22x32xf32, #tpu.memory_space<vmem>>, vector<8x16x32xf32>
    %217 = vector.extract_strided_slice %5 {offsets = [23, 0], sizes = [1, 32], strides = [1, 1]} : vector<49x32xf32> to vector<1x32xf32>
    %218 = vector.shape_cast %217 : vector<1x32xf32> to vector<32xf32>
    %219 = vector.shape_cast %218 : vector<32xf32> to vector<1x1x32xf32>
    %220 = vector.broadcast %219 : vector<1x1x32xf32> to vector<8x16x32xf32>
    %221 = arith.mulf %216, %220 : vector<8x16x32xf32>
    %222 = arith.addf %213, %221 : vector<8x16x32xf32>
    %c3_i32_65 = arith.constant 3 : i32
    %223 = arith.addi %4, %c3_i32_65 : i32
    %224 = arith.index_cast %223 : i32 to index
    %c3_66 = arith.constant 3 : index
    %c0_67 = arith.constant 0 : index
    %225 = vector.load %arg13[%224, %c3_66, %c0_67] : memref<22x22x32xf32, #tpu.memory_space<vmem>>, vector<8x16x32xf32>
    %226 = vector.extract_strided_slice %5 {offsets = [24, 0], sizes = [1, 32], strides = [1, 1]} : vector<49x32xf32> to vector<1x32xf32>
    %227 = vector.shape_cast %226 : vector<1x32xf32> to vector<32xf32>
    %228 = vector.shape_cast %227 : vector<32xf32> to vector<1x1x32xf32>
    %229 = vector.broadcast %228 : vector<1x1x32xf32> to vector<8x16x32xf32>
    %230 = arith.mulf %225, %229 : vector<8x16x32xf32>
    %231 = arith.addf %222, %230 : vector<8x16x32xf32>
    %c3_i32_68 = arith.constant 3 : i32
    %232 = arith.addi %4, %c3_i32_68 : i32
    %233 = arith.index_cast %232 : i32 to index
    %c4_69 = arith.constant 4 : index
    %c0_70 = arith.constant 0 : index
    %234 = vector.load %arg13[%233, %c4_69, %c0_70] : memref<22x22x32xf32, #tpu.memory_space<vmem>>, vector<8x16x32xf32>
    %235 = vector.extract_strided_slice %5 {offsets = [25, 0], sizes = [1, 32], strides = [1, 1]} : vector<49x32xf32> to vector<1x32xf32>
    %236 = vector.shape_cast %235 : vector<1x32xf32> to vector<32xf32>
    %237 = vector.shape_cast %236 : vector<32xf32> to vector<1x1x32xf32>
    %238 = vector.broadcast %237 : vector<1x1x32xf32> to vector<8x16x32xf32>
    %239 = arith.mulf %234, %238 : vector<8x16x32xf32>
    %240 = arith.addf %231, %239 : vector<8x16x32xf32>
    %c3_i32_71 = arith.constant 3 : i32
    %241 = arith.addi %4, %c3_i32_71 : i32
    %242 = arith.index_cast %241 : i32 to index
    %c5_72 = arith.constant 5 : index
    %c0_73 = arith.constant 0 : index
    %243 = vector.load %arg13[%242, %c5_72, %c0_73] : memref<22x22x32xf32, #tpu.memory_space<vmem>>, vector<8x16x32xf32>
    %244 = vector.extract_strided_slice %5 {offsets = [26, 0], sizes = [1, 32], strides = [1, 1]} : vector<49x32xf32> to vector<1x32xf32>
    %245 = vector.shape_cast %244 : vector<1x32xf32> to vector<32xf32>
    %246 = vector.shape_cast %245 : vector<32xf32> to vector<1x1x32xf32>
    %247 = vector.broadcast %246 : vector<1x1x32xf32> to vector<8x16x32xf32>
    %248 = arith.mulf %243, %247 : vector<8x16x32xf32>
    %249 = arith.addf %240, %248 : vector<8x16x32xf32>
    %c3_i32_74 = arith.constant 3 : i32
    %250 = arith.addi %4, %c3_i32_74 : i32
    %251 = arith.index_cast %250 : i32 to index
    %c6_75 = arith.constant 6 : index
    %c0_76 = arith.constant 0 : index
    %252 = vector.load %arg13[%251, %c6_75, %c0_76] : memref<22x22x32xf32, #tpu.memory_space<vmem>>, vector<8x16x32xf32>
    %253 = vector.extract_strided_slice %5 {offsets = [27, 0], sizes = [1, 32], strides = [1, 1]} : vector<49x32xf32> to vector<1x32xf32>
    %254 = vector.shape_cast %253 : vector<1x32xf32> to vector<32xf32>
    %255 = vector.shape_cast %254 : vector<32xf32> to vector<1x1x32xf32>
    %256 = vector.broadcast %255 : vector<1x1x32xf32> to vector<8x16x32xf32>
    %257 = arith.mulf %252, %256 : vector<8x16x32xf32>
    %258 = arith.addf %249, %257 : vector<8x16x32xf32>
    %c4_i32 = arith.constant 4 : i32
    %259 = arith.addi %4, %c4_i32 : i32
    %260 = arith.index_cast %259 : i32 to index
    %c0_77 = arith.constant 0 : index
    %c0_78 = arith.constant 0 : index
    %261 = vector.load %arg13[%260, %c0_77, %c0_78] : memref<22x22x32xf32, #tpu.memory_space<vmem>>, vector<8x16x32xf32>
    %262 = vector.extract_strided_slice %5 {offsets = [28, 0], sizes = [1, 32], strides = [1, 1]} : vector<49x32xf32> to vector<1x32xf32>
    %263 = vector.shape_cast %262 : vector<1x32xf32> to vector<32xf32>
    %264 = vector.shape_cast %263 : vector<32xf32> to vector<1x1x32xf32>
    %265 = vector.broadcast %264 : vector<1x1x32xf32> to vector<8x16x32xf32>
    %266 = arith.mulf %261, %265 : vector<8x16x32xf32>
    %267 = arith.addf %258, %266 : vector<8x16x32xf32>
    %c4_i32_79 = arith.constant 4 : i32
    %268 = arith.addi %4, %c4_i32_79 : i32
    %269 = arith.index_cast %268 : i32 to index
    %c1_80 = arith.constant 1 : index
    %c0_81 = arith.constant 0 : index
    %270 = vector.load %arg13[%269, %c1_80, %c0_81] : memref<22x22x32xf32, #tpu.memory_space<vmem>>, vector<8x16x32xf32>
    %271 = vector.extract_strided_slice %5 {offsets = [29, 0], sizes = [1, 32], strides = [1, 1]} : vector<49x32xf32> to vector<1x32xf32>
    %272 = vector.shape_cast %271 : vector<1x32xf32> to vector<32xf32>
    %273 = vector.shape_cast %272 : vector<32xf32> to vector<1x1x32xf32>
    %274 = vector.broadcast %273 : vector<1x1x32xf32> to vector<8x16x32xf32>
    %275 = arith.mulf %270, %274 : vector<8x16x32xf32>
    %276 = arith.addf %267, %275 : vector<8x16x32xf32>
    %c4_i32_82 = arith.constant 4 : i32
    %277 = arith.addi %4, %c4_i32_82 : i32
    %278 = arith.index_cast %277 : i32 to index
    %c2_83 = arith.constant 2 : index
    %c0_84 = arith.constant 0 : index
    %279 = vector.load %arg13[%278, %c2_83, %c0_84] : memref<22x22x32xf32, #tpu.memory_space<vmem>>, vector<8x16x32xf32>
    %280 = vector.extract_strided_slice %5 {offsets = [30, 0], sizes = [1, 32], strides = [1, 1]} : vector<49x32xf32> to vector<1x32xf32>
    %281 = vector.shape_cast %280 : vector<1x32xf32> to vector<32xf32>
    %282 = vector.shape_cast %281 : vector<32xf32> to vector<1x1x32xf32>
    %283 = vector.broadcast %282 : vector<1x1x32xf32> to vector<8x16x32xf32>
    %284 = arith.mulf %279, %283 : vector<8x16x32xf32>
    %285 = arith.addf %276, %284 : vector<8x16x32xf32>
    %c4_i32_85 = arith.constant 4 : i32
    %286 = arith.addi %4, %c4_i32_85 : i32
    %287 = arith.index_cast %286 : i32 to index
    %c3_86 = arith.constant 3 : index
    %c0_87 = arith.constant 0 : index
    %288 = vector.load %arg13[%287, %c3_86, %c0_87] : memref<22x22x32xf32, #tpu.memory_space<vmem>>, vector<8x16x32xf32>
    %289 = vector.extract_strided_slice %5 {offsets = [31, 0], sizes = [1, 32], strides = [1, 1]} : vector<49x32xf32> to vector<1x32xf32>
    %290 = vector.shape_cast %289 : vector<1x32xf32> to vector<32xf32>
    %291 = vector.shape_cast %290 : vector<32xf32> to vector<1x1x32xf32>
    %292 = vector.broadcast %291 : vector<1x1x32xf32> to vector<8x16x32xf32>
    %293 = arith.mulf %288, %292 : vector<8x16x32xf32>
    %294 = arith.addf %285, %293 : vector<8x16x32xf32>
    %c4_i32_88 = arith.constant 4 : i32
    %295 = arith.addi %4, %c4_i32_88 : i32
    %296 = arith.index_cast %295 : i32 to index
    %c4_89 = arith.constant 4 : index
    %c0_90 = arith.constant 0 : index
    %297 = vector.load %arg13[%296, %c4_89, %c0_90] : memref<22x22x32xf32, #tpu.memory_space<vmem>>, vector<8x16x32xf32>
    %298 = vector.extract_strided_slice %5 {offsets = [32, 0], sizes = [1, 32], strides = [1, 1]} : vector<49x32xf32> to vector<1x32xf32>
    %299 = vector.shape_cast %298 : vector<1x32xf32> to vector<32xf32>
    %300 = vector.shape_cast %299 : vector<32xf32> to vector<1x1x32xf32>
    %301 = vector.broadcast %300 : vector<1x1x32xf32> to vector<8x16x32xf32>
    %302 = arith.mulf %297, %301 : vector<8x16x32xf32>
    %303 = arith.addf %294, %302 : vector<8x16x32xf32>
    %c4_i32_91 = arith.constant 4 : i32
    %304 = arith.addi %4, %c4_i32_91 : i32
    %305 = arith.index_cast %304 : i32 to index
    %c5_92 = arith.constant 5 : index
    %c0_93 = arith.constant 0 : index
    %306 = vector.load %arg13[%305, %c5_92, %c0_93] : memref<22x22x32xf32, #tpu.memory_space<vmem>>, vector<8x16x32xf32>
    %307 = vector.extract_strided_slice %5 {offsets = [33, 0], sizes = [1, 32], strides = [1, 1]} : vector<49x32xf32> to vector<1x32xf32>
    %308 = vector.shape_cast %307 : vector<1x32xf32> to vector<32xf32>
    %309 = vector.shape_cast %308 : vector<32xf32> to vector<1x1x32xf32>
    %310 = vector.broadcast %309 : vector<1x1x32xf32> to vector<8x16x32xf32>
    %311 = arith.mulf %306, %310 : vector<8x16x32xf32>
    %312 = arith.addf %303, %311 : vector<8x16x32xf32>
    %c4_i32_94 = arith.constant 4 : i32
    %313 = arith.addi %4, %c4_i32_94 : i32
    %314 = arith.index_cast %313 : i32 to index
    %c6_95 = arith.constant 6 : index
    %c0_96 = arith.constant 0 : index
    %315 = vector.load %arg13[%314, %c6_95, %c0_96] : memref<22x22x32xf32, #tpu.memory_space<vmem>>, vector<8x16x32xf32>
    %316 = vector.extract_strided_slice %5 {offsets = [34, 0], sizes = [1, 32], strides = [1, 1]} : vector<49x32xf32> to vector<1x32xf32>
    %317 = vector.shape_cast %316 : vector<1x32xf32> to vector<32xf32>
    %318 = vector.shape_cast %317 : vector<32xf32> to vector<1x1x32xf32>
    %319 = vector.broadcast %318 : vector<1x1x32xf32> to vector<8x16x32xf32>
    %320 = arith.mulf %315, %319 : vector<8x16x32xf32>
    %321 = arith.addf %312, %320 : vector<8x16x32xf32>
    %c5_i32 = arith.constant 5 : i32
    %322 = arith.addi %4, %c5_i32 : i32
    %323 = arith.index_cast %322 : i32 to index
    %c0_97 = arith.constant 0 : index
    %c0_98 = arith.constant 0 : index
    %324 = vector.load %arg13[%323, %c0_97, %c0_98] : memref<22x22x32xf32, #tpu.memory_space<vmem>>, vector<8x16x32xf32>
    %325 = vector.extract_strided_slice %5 {offsets = [35, 0], sizes = [1, 32], strides = [1, 1]} : vector<49x32xf32> to vector<1x32xf32>
    %326 = vector.shape_cast %325 : vector<1x32xf32> to vector<32xf32>
    %327 = vector.shape_cast %326 : vector<32xf32> to vector<1x1x32xf32>
    %328 = vector.broadcast %327 : vector<1x1x32xf32> to vector<8x16x32xf32>
    %329 = arith.mulf %324, %328 : vector<8x16x32xf32>
    %330 = arith.addf %321, %329 : vector<8x16x32xf32>
    %c5_i32_99 = arith.constant 5 : i32
    %331 = arith.addi %4, %c5_i32_99 : i32
    %332 = arith.index_cast %331 : i32 to index
    %c1_100 = arith.constant 1 : index
    %c0_101 = arith.constant 0 : index
    %333 = vector.load %arg13[%332, %c1_100, %c0_101] : memref<22x22x32xf32, #tpu.memory_space<vmem>>, vector<8x16x32xf32>
    %334 = vector.extract_strided_slice %5 {offsets = [36, 0], sizes = [1, 32], strides = [1, 1]} : vector<49x32xf32> to vector<1x32xf32>
    %335 = vector.shape_cast %334 : vector<1x32xf32> to vector<32xf32>
    %336 = vector.shape_cast %335 : vector<32xf32> to vector<1x1x32xf32>
    %337 = vector.broadcast %336 : vector<1x1x32xf32> to vector<8x16x32xf32>
    %338 = arith.mulf %333, %337 : vector<8x16x32xf32>
    %339 = arith.addf %330, %338 : vector<8x16x32xf32>
    %c5_i32_102 = arith.constant 5 : i32
    %340 = arith.addi %4, %c5_i32_102 : i32
    %341 = arith.index_cast %340 : i32 to index
    %c2_103 = arith.constant 2 : index
    %c0_104 = arith.constant 0 : index
    %342 = vector.load %arg13[%341, %c2_103, %c0_104] : memref<22x22x32xf32, #tpu.memory_space<vmem>>, vector<8x16x32xf32>
    %343 = vector.extract_strided_slice %5 {offsets = [37, 0], sizes = [1, 32], strides = [1, 1]} : vector<49x32xf32> to vector<1x32xf32>
    %344 = vector.shape_cast %343 : vector<1x32xf32> to vector<32xf32>
    %345 = vector.shape_cast %344 : vector<32xf32> to vector<1x1x32xf32>
    %346 = vector.broadcast %345 : vector<1x1x32xf32> to vector<8x16x32xf32>
    %347 = arith.mulf %342, %346 : vector<8x16x32xf32>
    %348 = arith.addf %339, %347 : vector<8x16x32xf32>
    %c5_i32_105 = arith.constant 5 : i32
    %349 = arith.addi %4, %c5_i32_105 : i32
    %350 = arith.index_cast %349 : i32 to index
    %c3_106 = arith.constant 3 : index
    %c0_107 = arith.constant 0 : index
    %351 = vector.load %arg13[%350, %c3_106, %c0_107] : memref<22x22x32xf32, #tpu.memory_space<vmem>>, vector<8x16x32xf32>
    %352 = vector.extract_strided_slice %5 {offsets = [38, 0], sizes = [1, 32], strides = [1, 1]} : vector<49x32xf32> to vector<1x32xf32>
    %353 = vector.shape_cast %352 : vector<1x32xf32> to vector<32xf32>
    %354 = vector.shape_cast %353 : vector<32xf32> to vector<1x1x32xf32>
    %355 = vector.broadcast %354 : vector<1x1x32xf32> to vector<8x16x32xf32>
    %356 = arith.mulf %351, %355 : vector<8x16x32xf32>
    %357 = arith.addf %348, %356 : vector<8x16x32xf32>
    %c5_i32_108 = arith.constant 5 : i32
    %358 = arith.addi %4, %c5_i32_108 : i32
    %359 = arith.index_cast %358 : i32 to index
    %c4_109 = arith.constant 4 : index
    %c0_110 = arith.constant 0 : index
    %360 = vector.load %arg13[%359, %c4_109, %c0_110] : memref<22x22x32xf32, #tpu.memory_space<vmem>>, vector<8x16x32xf32>
    %361 = vector.extract_strided_slice %5 {offsets = [39, 0], sizes = [1, 32], strides = [1, 1]} : vector<49x32xf32> to vector<1x32xf32>
    %362 = vector.shape_cast %361 : vector<1x32xf32> to vector<32xf32>
    %363 = vector.shape_cast %362 : vector<32xf32> to vector<1x1x32xf32>
    %364 = vector.broadcast %363 : vector<1x1x32xf32> to vector<8x16x32xf32>
    %365 = arith.mulf %360, %364 : vector<8x16x32xf32>
    %366 = arith.addf %357, %365 : vector<8x16x32xf32>
    %c5_i32_111 = arith.constant 5 : i32
    %367 = arith.addi %4, %c5_i32_111 : i32
    %368 = arith.index_cast %367 : i32 to index
    %c5_112 = arith.constant 5 : index
    %c0_113 = arith.constant 0 : index
    %369 = vector.load %arg13[%368, %c5_112, %c0_113] : memref<22x22x32xf32, #tpu.memory_space<vmem>>, vector<8x16x32xf32>
    %370 = vector.extract_strided_slice %5 {offsets = [40, 0], sizes = [1, 32], strides = [1, 1]} : vector<49x32xf32> to vector<1x32xf32>
    %371 = vector.shape_cast %370 : vector<1x32xf32> to vector<32xf32>
    %372 = vector.shape_cast %371 : vector<32xf32> to vector<1x1x32xf32>
    %373 = vector.broadcast %372 : vector<1x1x32xf32> to vector<8x16x32xf32>
    %374 = arith.mulf %369, %373 : vector<8x16x32xf32>
    %375 = arith.addf %366, %374 : vector<8x16x32xf32>
    %c5_i32_114 = arith.constant 5 : i32
    %376 = arith.addi %4, %c5_i32_114 : i32
    %377 = arith.index_cast %376 : i32 to index
    %c6_115 = arith.constant 6 : index
    %c0_116 = arith.constant 0 : index
    %378 = vector.load %arg13[%377, %c6_115, %c0_116] : memref<22x22x32xf32, #tpu.memory_space<vmem>>, vector<8x16x32xf32>
    %379 = vector.extract_strided_slice %5 {offsets = [41, 0], sizes = [1, 32], strides = [1, 1]} : vector<49x32xf32> to vector<1x32xf32>
    %380 = vector.shape_cast %379 : vector<1x32xf32> to vector<32xf32>
    %381 = vector.shape_cast %380 : vector<32xf32> to vector<1x1x32xf32>
    %382 = vector.broadcast %381 : vector<1x1x32xf32> to vector<8x16x32xf32>
    %383 = arith.mulf %378, %382 : vector<8x16x32xf32>
    %384 = arith.addf %375, %383 : vector<8x16x32xf32>
    %c6_i32 = arith.constant 6 : i32
    %385 = arith.addi %4, %c6_i32 : i32
    %386 = arith.index_cast %385 : i32 to index
    %c0_117 = arith.constant 0 : index
    %c0_118 = arith.constant 0 : index
    %387 = vector.load %arg13[%386, %c0_117, %c0_118] : memref<22x22x32xf32, #tpu.memory_space<vmem>>, vector<8x16x32xf32>
    %388 = vector.extract_strided_slice %5 {offsets = [42, 0], sizes = [1, 32], strides = [1, 1]} : vector<49x32xf32> to vector<1x32xf32>
    %389 = vector.shape_cast %388 : vector<1x32xf32> to vector<32xf32>
    %390 = vector.shape_cast %389 : vector<32xf32> to vector<1x1x32xf32>
    %391 = vector.broadcast %390 : vector<1x1x32xf32> to vector<8x16x32xf32>
    %392 = arith.mulf %387, %391 : vector<8x16x32xf32>
    %393 = arith.addf %384, %392 : vector<8x16x32xf32>
    %c6_i32_119 = arith.constant 6 : i32
    %394 = arith.addi %4, %c6_i32_119 : i32
    %395 = arith.index_cast %394 : i32 to index
    %c1_120 = arith.constant 1 : index
    %c0_121 = arith.constant 0 : index
    %396 = vector.load %arg13[%395, %c1_120, %c0_121] : memref<22x22x32xf32, #tpu.memory_space<vmem>>, vector<8x16x32xf32>
    %397 = vector.extract_strided_slice %5 {offsets = [43, 0], sizes = [1, 32], strides = [1, 1]} : vector<49x32xf32> to vector<1x32xf32>
    %398 = vector.shape_cast %397 : vector<1x32xf32> to vector<32xf32>
    %399 = vector.shape_cast %398 : vector<32xf32> to vector<1x1x32xf32>
    %400 = vector.broadcast %399 : vector<1x1x32xf32> to vector<8x16x32xf32>
    %401 = arith.mulf %396, %400 : vector<8x16x32xf32>
    %402 = arith.addf %393, %401 : vector<8x16x32xf32>
    %c6_i32_122 = arith.constant 6 : i32
    %403 = arith.addi %4, %c6_i32_122 : i32
    %404 = arith.index_cast %403 : i32 to index
    %c2_123 = arith.constant 2 : index
    %c0_124 = arith.constant 0 : index
    %405 = vector.load %arg13[%404, %c2_123, %c0_124] : memref<22x22x32xf32, #tpu.memory_space<vmem>>, vector<8x16x32xf32>
    %406 = vector.extract_strided_slice %5 {offsets = [44, 0], sizes = [1, 32], strides = [1, 1]} : vector<49x32xf32> to vector<1x32xf32>
    %407 = vector.shape_cast %406 : vector<1x32xf32> to vector<32xf32>
    %408 = vector.shape_cast %407 : vector<32xf32> to vector<1x1x32xf32>
    %409 = vector.broadcast %408 : vector<1x1x32xf32> to vector<8x16x32xf32>
    %410 = arith.mulf %405, %409 : vector<8x16x32xf32>
    %411 = arith.addf %402, %410 : vector<8x16x32xf32>
    %c6_i32_125 = arith.constant 6 : i32
    %412 = arith.addi %4, %c6_i32_125 : i32
    %413 = arith.index_cast %412 : i32 to index
    %c3_126 = arith.constant 3 : index
    %c0_127 = arith.constant 0 : index
    %414 = vector.load %arg13[%413, %c3_126, %c0_127] : memref<22x22x32xf32, #tpu.memory_space<vmem>>, vector<8x16x32xf32>
    %415 = vector.extract_strided_slice %5 {offsets = [45, 0], sizes = [1, 32], strides = [1, 1]} : vector<49x32xf32> to vector<1x32xf32>
    %416 = vector.shape_cast %415 : vector<1x32xf32> to vector<32xf32>
    %417 = vector.shape_cast %416 : vector<32xf32> to vector<1x1x32xf32>
    %418 = vector.broadcast %417 : vector<1x1x32xf32> to vector<8x16x32xf32>
    %419 = arith.mulf %414, %418 : vector<8x16x32xf32>
    %420 = arith.addf %411, %419 : vector<8x16x32xf32>
    %c6_i32_128 = arith.constant 6 : i32
    %421 = arith.addi %4, %c6_i32_128 : i32
    %422 = arith.index_cast %421 : i32 to index
    %c4_129 = arith.constant 4 : index
    %c0_130 = arith.constant 0 : index
    %423 = vector.load %arg13[%422, %c4_129, %c0_130] : memref<22x22x32xf32, #tpu.memory_space<vmem>>, vector<8x16x32xf32>
    %424 = vector.extract_strided_slice %5 {offsets = [46, 0], sizes = [1, 32], strides = [1, 1]} : vector<49x32xf32> to vector<1x32xf32>
    %425 = vector.shape_cast %424 : vector<1x32xf32> to vector<32xf32>
    %426 = vector.shape_cast %425 : vector<32xf32> to vector<1x1x32xf32>
    %427 = vector.broadcast %426 : vector<1x1x32xf32> to vector<8x16x32xf32>
    %428 = arith.mulf %423, %427 : vector<8x16x32xf32>
    %429 = arith.addf %420, %428 : vector<8x16x32xf32>
    %c6_i32_131 = arith.constant 6 : i32
    %430 = arith.addi %4, %c6_i32_131 : i32
    %431 = arith.index_cast %430 : i32 to index
    %c5_132 = arith.constant 5 : index
    %c0_133 = arith.constant 0 : index
    %432 = vector.load %arg13[%431, %c5_132, %c0_133] : memref<22x22x32xf32, #tpu.memory_space<vmem>>, vector<8x16x32xf32>
    %433 = vector.extract_strided_slice %5 {offsets = [47, 0], sizes = [1, 32], strides = [1, 1]} : vector<49x32xf32> to vector<1x32xf32>
    %434 = vector.shape_cast %433 : vector<1x32xf32> to vector<32xf32>
    %435 = vector.shape_cast %434 : vector<32xf32> to vector<1x1x32xf32>
    %436 = vector.broadcast %435 : vector<1x1x32xf32> to vector<8x16x32xf32>
    %437 = arith.mulf %432, %436 : vector<8x16x32xf32>
    %438 = arith.addf %429, %437 : vector<8x16x32xf32>
    %c6_i32_134 = arith.constant 6 : i32
    %439 = arith.addi %4, %c6_i32_134 : i32
    %440 = arith.index_cast %439 : i32 to index
    %c6_135 = arith.constant 6 : index
    %c0_136 = arith.constant 0 : index
    %441 = vector.load %arg13[%440, %c6_135, %c0_136] : memref<22x22x32xf32, #tpu.memory_space<vmem>>, vector<8x16x32xf32>
    %442 = vector.extract_strided_slice %5 {offsets = [48, 0], sizes = [1, 32], strides = [1, 1]} : vector<49x32xf32> to vector<1x32xf32>
    %443 = vector.shape_cast %442 : vector<1x32xf32> to vector<32xf32>
    %444 = vector.shape_cast %443 : vector<32xf32> to vector<1x1x32xf32>
    %445 = vector.broadcast %444 : vector<1x1x32xf32> to vector<8x16x32xf32>
    %446 = arith.mulf %441, %445 : vector<8x16x32xf32>
    %447 = arith.addf %438, %446 : vector<8x16x32xf32>
    %c0_137 = arith.constant 0 : index
    %c0_138 = arith.constant 0 : index
    %448 = vector.load %arg4[%c0_137, %c0_138] : memref<1x32xf32, #tpu.memory_space<vmem>>, vector<1x32xf32>
    %449 = vector.shape_cast %448 : vector<1x32xf32> to vector<1x1x32xf32>
    %450 = vector.broadcast %449 : vector<1x1x32xf32> to vector<8x16x32xf32>
    %451 = arith.addf %447, %450 : vector<8x16x32xf32>
    %cst_139 = arith.constant dense<0.000000e+00> : vector<8x16xf32>
    %452 = vector.multi_reduction <add>, %451, %cst_139 [2] : vector<8x16x32xf32> to vector<8x16xf32>
    %453 = vector.shape_cast %452 : vector<8x16xf32> to vector<8x16x1xf32>
    %cst_140 = arith.constant 3.125000e-02 : f32
    %454 = vector.broadcast %cst_140 : f32 to vector<8x16x1xf32>
    %455 = arith.mulf %453, %454 : vector<8x16x1xf32>
    %456 = arith.mulf %451, %451 : vector<8x16x32xf32>
    %cst_141 = arith.constant dense<0.000000e+00> : vector<8x16xf32>
    %457 = vector.multi_reduction <add>, %456, %cst_141 [2] : vector<8x16x32xf32> to vector<8x16xf32>
    %458 = vector.shape_cast %457 : vector<8x16xf32> to vector<8x16x1xf32>
    %cst_142 = arith.constant 3.125000e-02 : f32
    %459 = vector.broadcast %cst_142 : f32 to vector<8x16x1xf32>
    %460 = arith.mulf %458, %459 : vector<8x16x1xf32>
    %461 = arith.mulf %455, %455 : vector<8x16x1xf32>
    %462 = arith.subf %460, %461 : vector<8x16x1xf32>
    %cst_143 = arith.constant 0.000000e+00 : f32
    %463 = vector.broadcast %cst_143 : f32 to vector<8x16x1xf32>
    %464 = arith.maximumf %462, %463 : vector<8x16x1xf32>
    %465 = vector.broadcast %455 : vector<8x16x1xf32> to vector<8x16x32xf32>
    %466 = arith.subf %451, %465 : vector<8x16x32xf32>
    %cst_144 = arith.constant 9.99999997E-7 : f32
    %467 = vector.broadcast %cst_144 : f32 to vector<8x16x1xf32>
    %468 = arith.addf %464, %467 : vector<8x16x1xf32>
    %469 = math.rsqrt %468 : vector<8x16x1xf32>
    %470 = vector.broadcast %469 : vector<8x16x1xf32> to vector<8x16x32xf32>
    %471 = arith.mulf %466, %470 : vector<8x16x32xf32>
    %c0_145 = arith.constant 0 : index
    %c0_146 = arith.constant 0 : index
    %472 = vector.load %arg5[%c0_145, %c0_146] : memref<1x32xf32, #tpu.memory_space<vmem>>, vector<1x32xf32>
    %473 = vector.shape_cast %472 : vector<1x32xf32> to vector<1x1x32xf32>
    %474 = vector.broadcast %473 : vector<1x1x32xf32> to vector<8x16x32xf32>
    %475 = arith.mulf %471, %474 : vector<8x16x32xf32>
    %c0_147 = arith.constant 0 : index
    %c0_148 = arith.constant 0 : index
    %476 = vector.load %arg6[%c0_147, %c0_148] : memref<1x32xf32, #tpu.memory_space<vmem>>, vector<1x32xf32>
    %477 = vector.shape_cast %476 : vector<1x32xf32> to vector<1x1x32xf32>
    %478 = vector.broadcast %477 : vector<1x1x32xf32> to vector<8x16x32xf32>
    %479 = arith.addf %475, %478 : vector<8x16x32xf32>
    %480 = vector.shape_cast %479 : vector<8x16x32xf32> to vector<128x32xf32>
    %481 = arith.truncf %480 : vector<128x32xf32> to vector<128x32xbf16>
    %c0_149 = arith.constant 0 : index
    %c0_150 = arith.constant 0 : index
    %482 = vector.load %arg7[%c0_149, %c0_150] : memref<32x128xbf16, #tpu.memory_space<vmem>>, vector<32x128xbf16>
    %cst_151 = arith.constant dense<0.000000e+00> : vector<128x128xf32>
    %483 = tpu.matmul %481, %482, %cst_151 {dimension_numbers = #tpu.dot_dimension_numbers<[1], [0], [0], [1], [0, 0, 1, 1], [], []>} : vector<128x32xbf16>, vector<32x128xbf16>, vector<128x128xf32> -> vector<128x128xf32>
    %c0_152 = arith.constant 0 : index
    %c0_153 = arith.constant 0 : index
    %484 = vector.load %arg8[%c0_152, %c0_153] : memref<1x128xf32, #tpu.memory_space<vmem>>, vector<1x128xf32>
    %485 = vector.broadcast %484 : vector<1x128xf32> to vector<128x128xf32>
    %486 = arith.addf %483, %485 : vector<128x128xf32>
    %cst_154 = arith.constant 5.000000e-01 : f32
    %487 = vector.broadcast %cst_154 : f32 to vector<128x128xf32>
    %488 = arith.mulf %487, %486 : vector<128x128xf32>
    %cst_155 = arith.constant 0.707106769 : f32
    %489 = vector.broadcast %cst_155 : f32 to vector<128x128xf32>
    %490 = arith.mulf %486, %489 : vector<128x128xf32>
    %491 = math.absf %490 : vector<128x128xf32>
    %cst_156 = arith.constant 0.327591091 : f32
    %492 = vector.broadcast %cst_156 : f32 to vector<128x128xf32>
    %493 = arith.mulf %492, %491 : vector<128x128xf32>
    %cst_157 = arith.constant 1.000000e+00 : f32
    %494 = vector.broadcast %cst_157 : f32 to vector<128x128xf32>
    %495 = arith.addf %494, %493 : vector<128x128xf32>
    %496 = tpu.reciprocal %495 {approx = true} : vector<128x128xf32> -> vector<128x128xf32>
    %cst_158 = arith.constant 1.06140542 : f32
    %497 = vector.broadcast %cst_158 : f32 to vector<128x128xf32>
    %498 = arith.mulf %497, %496 : vector<128x128xf32>
    %cst_159 = arith.constant -1.45315206 : f32
    %499 = vector.broadcast %cst_159 : f32 to vector<128x128xf32>
    %500 = arith.addf %498, %499 : vector<128x128xf32>
    %501 = arith.mulf %500, %496 : vector<128x128xf32>
    %cst_160 = arith.constant 1.42141378 : f32
    %502 = vector.broadcast %cst_160 : f32 to vector<128x128xf32>
    %503 = arith.addf %501, %502 : vector<128x128xf32>
    %504 = arith.mulf %503, %496 : vector<128x128xf32>
    %cst_161 = arith.constant -0.284496725 : f32
    %505 = vector.broadcast %cst_161 : f32 to vector<128x128xf32>
    %506 = arith.addf %504, %505 : vector<128x128xf32>
    %507 = arith.mulf %506, %496 : vector<128x128xf32>
    %cst_162 = arith.constant 0.254829586 : f32
    %508 = vector.broadcast %cst_162 : f32 to vector<128x128xf32>
    %509 = arith.addf %507, %508 : vector<128x128xf32>
    %510 = arith.mulf %509, %496 : vector<128x128xf32>
    %cst_163 = arith.constant 0.000000e+00 : f32
    %511 = vector.broadcast %cst_163 : f32 to vector<128x128xf32>
    %512 = arith.subf %511, %491 : vector<128x128xf32>
    %513 = arith.mulf %512, %491 : vector<128x128xf32>
    %514 = math.exp %513 : vector<128x128xf32>
    %515 = arith.mulf %510, %514 : vector<128x128xf32>
    %cst_164 = arith.constant 1.000000e+00 : f32
    %516 = vector.broadcast %cst_164 : f32 to vector<128x128xf32>
    %517 = arith.subf %516, %515 : vector<128x128xf32>
    %cst_165 = arith.constant 0.000000e+00 : f32
    %518 = vector.broadcast %cst_165 : f32 to vector<128x128xf32>
    %519 = arith.cmpf oge, %490, %518 : vector<128x128xf32>
    %cst_166 = arith.constant 0.000000e+00 : f32
    %520 = vector.broadcast %cst_166 : f32 to vector<128x128xf32>
    %521 = arith.subf %520, %517 : vector<128x128xf32>
    %522 = arith.select %519, %517, %521 : vector<128x128xi1>, vector<128x128xf32>
    %cst_167 = arith.constant 1.000000e+00 : f32
    %523 = vector.broadcast %cst_167 : f32 to vector<128x128xf32>
    %524 = arith.addf %523, %522 : vector<128x128xf32>
    %525 = arith.mulf %488, %524 : vector<128x128xf32>
    %526 = arith.truncf %525 : vector<128x128xf32> to vector<128x128xbf16>
    %c0_168 = arith.constant 0 : index
    %c0_169 = arith.constant 0 : index
    %527 = vector.load %arg9[%c0_168, %c0_169] : memref<128x32xbf16, #tpu.memory_space<vmem>>, vector<128x32xbf16>
    %cst_170 = arith.constant dense<0.000000e+00> : vector<128x32xf32>
    %528 = tpu.matmul %526, %527, %cst_170 {dimension_numbers = #tpu.dot_dimension_numbers<[1], [0], [0], [1], [0, 0, 1, 1], [], []>} : vector<128x128xbf16>, vector<128x32xbf16>, vector<128x32xf32> -> vector<128x32xf32>
    %c0_171 = arith.constant 0 : index
    %c0_172 = arith.constant 0 : index
    %529 = vector.load %arg10[%c0_171, %c0_172] : memref<1x32xf32, #tpu.memory_space<vmem>>, vector<1x32xf32>
    %530 = vector.broadcast %529 : vector<1x32xf32> to vector<128x32xf32>
    %531 = arith.addf %528, %530 : vector<128x32xf32>
    %c0_173 = arith.constant 0 : index
    %c0_174 = arith.constant 0 : index
    %532 = vector.load %arg11[%c0_173, %c0_174] : memref<1x32xf32, #tpu.memory_space<vmem>>, vector<1x32xf32>
    %533 = vector.broadcast %532 : vector<1x32xf32> to vector<128x32xf32>
    %534 = arith.mulf %533, %531 : vector<128x32xf32>
    %c0_175 = arith.constant 0 : index
    %535 = arith.index_cast %4 : i32 to index
    %c0_176 = arith.constant 0 : index
    %c0_177 = arith.constant 0 : index
    %536 = vector.load %arg2[%c0_175, %535, %c0_176, %c0_177] : memref<1x16x16x32xf32, #tpu.memory_space<vmem>>, vector<1x8x16x32xf32>
    %537 = vector.shape_cast %534 : vector<128x32xf32> to vector<1x8x16x32xf32>
    %538 = arith.addf %536, %537 : vector<1x8x16x32xf32>
    %c0_178 = arith.constant 0 : index
    %c0_179 = arith.constant 0 : index
    %c0_180 = arith.constant 0 : index
    %c0_181 = arith.constant 0 : index
    %539 = vector.load %arg12[%c0_178, %c0_179, %c0_180, %c0_181] : memref<1x8x16x32xf32, #tpu.memory_space<vmem>>, vector<1x8x16x32xf32>
    tpu.vector_store %arg12[%c0_178, %c0_179, %c0_180, %c0_181], %538 {strides = array<i32>} : memref<1x8x16x32xf32, #tpu.memory_space<vmem>>, vector<1x8x16x32xf32>,
    return
  }
  func.func @transform_0(%arg0: i32, %arg1: i32) -> (i32, i32, i32, i32) {
    %c0_i32 = arith.constant 0 : i32
    %c0_i32_0 = arith.constant 0 : i32
    %c0_i32_1 = arith.constant 0 : i32
    %c0_i32_2 = arith.constant 0 : i32
    return %arg0, %c0_i32, %c0_i32_0, %c0_i32_1 : i32, i32, i32, i32
  }
  func.func @transform_1(%arg0: i32, %arg1: i32) -> (i32, i32) {
    %c0_i32 = arith.constant 0 : i32
    %c0_i32_0 = arith.constant 0 : i32
    %c0_i32_1 = arith.constant 0 : i32
    return %c0_i32, %c0_i32_0 : i32, i32
  }
  func.func @transform_2(%arg0: i32, %arg1: i32) -> (i32, i32) {
    %c0_i32 = arith.constant 0 : i32
    %c0_i32_0 = arith.constant 0 : i32
    %c0_i32_1 = arith.constant 0 : i32
    return %c0_i32, %c0_i32_0 : i32, i32
  }
  func.func @transform_3(%arg0: i32, %arg1: i32) -> (i32, i32) {
    %c0_i32 = arith.constant 0 : i32
    %c0_i32_0 = arith.constant 0 : i32
    %c0_i32_1 = arith.constant 0 : i32
    return %c0_i32, %c0_i32_0 : i32, i32
  }
  func.func @transform_4(%arg0: i32, %arg1: i32) -> (i32, i32) {
    %c0_i32 = arith.constant 0 : i32
    %c0_i32_0 = arith.constant 0 : i32
    %c0_i32_1 = arith.constant 0 : i32
    return %c0_i32, %c0_i32_0 : i32, i32
  }
  func.func @transform_5(%arg0: i32, %arg1: i32) -> (i32, i32) {
    %c0_i32 = arith.constant 0 : i32
    %c0_i32_0 = arith.constant 0 : i32
    %c0_i32_1 = arith.constant 0 : i32
    return %c0_i32, %c0_i32_0 : i32, i32
  }
  func.func @transform_6(%arg0: i32, %arg1: i32) -> (i32, i32) {
    %c0_i32 = arith.constant 0 : i32
    %c0_i32_0 = arith.constant 0 : i32
    %c0_i32_1 = arith.constant 0 : i32
    return %c0_i32, %c0_i32_0 : i32, i32
  }
  func.func @transform_7(%arg0: i32, %arg1: i32) -> (i32, i32) {
    %c0_i32 = arith.constant 0 : i32
    %c0_i32_0 = arith.constant 0 : i32
    %c0_i32_1 = arith.constant 0 : i32
    return %c0_i32, %c0_i32_0 : i32, i32
  }
  func.func @transform_8(%arg0: i32, %arg1: i32) -> (i32, i32) {
    %c0_i32 = arith.constant 0 : i32
    %c0_i32_0 = arith.constant 0 : i32
    %c0_i32_1 = arith.constant 0 : i32
    return %c0_i32, %c0_i32_0 : i32, i32
  }
  func.func @transform_9(%arg0: i32, %arg1: i32) -> (i32, i32) {
    %c0_i32 = arith.constant 0 : i32
    %c0_i32_0 = arith.constant 0 : i32
    %c0_i32_1 = arith.constant 0 : i32
    return %c0_i32, %c0_i32_0 : i32, i32
  }
  func.func @transform_10(%arg0: i32, %arg1: i32) -> (i32, i32, i32, i32) {
    %c0_i32 = arith.constant 0 : i32
    %c0_i32_0 = arith.constant 0 : i32
    %c0_i32_1 = arith.constant 0 : i32
    return %arg0, %arg1, %c0_i32, %c0_i32_0 : i32, i32, i32, i32
  }
}

</mosaic_0001>

<llo_original>
// kernel: _lambda_.1
$region0: #{_lambda_.1}
  #allocation0 [shape = 'u32[]', space=smem, size = 0x4, offset = 0x4, fixed_abs, tag = 'smem constant byte address 0x4 - core index']
  #allocation1 [shape = 'u32[144,128]{1,0:T(1,128)}', space=vmem, size = 0x12000, scoped, tag = 'internal scratch']
  #allocation2 [shape = 'f32[22,22,32]{2,1,0:T(8,128)}', space=vmem, size = 0x42000, scoped, tag = 'scratch operand']
  %s0 = inlined_call_operand.hbm [shape: f32[2,16,16,32], index: 0, kind: input, shape index: {}]
  %s1 = inlined_call_operand.hbm [shape: f32[49,32], index: 1, kind: input, shape index: {}]
  %s2 = inlined_call_operand.hbm [shape: f32[1,32], index: 2, kind: input, shape index: {}]
  %s3 = inlined_call_operand.hbm [shape: f32[1,32], index: 3, kind: input, shape index: {}]
  %s4 = inlined_call_operand.hbm [shape: f32[1,32], index: 4, kind: input, shape index: {}]
  %s5 = inlined_call_operand.hbm [shape: bf16[32,128], index: 5, kind: input, shape index: {}]
  %s6 = inlined_call_operand.hbm [shape: f32[1,128], index: 6, kind: input, shape index: {}]
  %s7 = inlined_call_operand.hbm [shape: bf16[128,32], index: 7, kind: input, shape index: {}]
  %s8 = inlined_call_operand.hbm [shape: f32[1,32], index: 8, kind: input, shape index: {}]
  %s9 = inlined_call_operand.hbm [shape: f32[1,32], index: 9, kind: input, shape index: {}]
  %s10 = inlined_call_operand.hbm [shape: f32[2,16,16,32], index: 10, kind: output, shape index: {}]
  %s11 = sld [smem:[#allocation0]]
  $region117: #{_lambda_.1} parent=0
    _
  %s13 = ssub.s32 1, %s11
  %s14 = scalar_select 0, %s13, %s11
  $region1: #{_lambda_.1} parent=0
    #allocation3 [shape = 'u8[262144]{0}', space=vmem, size = 0x40000, scoped, tag = 'input window, operand 0']
    #allocation4 [shape = 's32[2]{0}', space=sflag, size = 0x8, scoped, tag = 'scoped memory for _lambda_.1']
    #allocation5 [shape = 's32[2]{0}', space=sflag, size = 0x8, scoped, tag = 'scoped memory for _lambda_.1']
    #allocation6 [shape = 'u8[28672]{0}', space=vmem, size = 0x7000, scoped, tag = 'input window, operand 1, single buffered']
    #allocation7 [shape = 's32[1]{0}', space=sflag, size = 0x4, scoped, tag = 'scoped memory for _lambda_.1']
    #allocation8 [shape = 'u8[512]{0}', space=vmem, size = 0x400, scoped, tag = 'input window, operand 2, single buffered']
    #allocation9 [shape = 'u8[512]{0}', space=vmem, size = 0x400, scoped, tag = 'input window, operand 3, single buffered']
    #allocation10 [shape = 's32[1]{0}', space=sflag, size = 0x4, scoped, tag = 'scoped memory for _lambda_.1']
    #allocation11 [shape = 'u8[512]{0}', space=vmem, size = 0x400, scoped, tag = 'input window, operand 4, single buffered']
    #allocation12 [shape = 'u8[8192]{0}', space=vmem, size = 0x2000, scoped, tag = 'input window, operand 5, single buffered']
    #allocation13 [shape = 's32[1]{0}', space=sflag, size = 0x4, scoped, tag = 'scoped memory for _lambda_.1']
    #allocation14 [shape = 'u8[512]{0}', space=vmem, size = 0x400, scoped, tag = 'input window, operand 6, single buffered']
    #allocation15 [shape = 'u8[32768]{0}', space=vmem, size = 0x8000, scoped, tag = 'input window, operand 7, single buffered']
    #allocation16 [shape = 's32[1]{0}', space=sflag, size = 0x4, scoped, tag = 'scoped memory for _lambda_.1']
    #allocation17 [shape = 'u8[512]{0}', space=vmem, size = 0x400, scoped, tag = 'input window, operand 8, single buffered']
    #allocation18 [shape = 'u8[512]{0}', space=vmem, size = 0x400, scoped, tag = 'input window, operand 9, single buffered']
    #allocation19 [shape = 's32[1]{0}', space=sflag, size = 0x4, scoped, tag = 'scoped memory for _lambda_.1']
    #allocation20 [shape = 'u8[131072]{0}', space=vmem, size = 0x20000, scoped, tag = 'output window, operand 0']
    %15 = vsyncpa [#allocation4], 0
    %s16 = scalar_lea.sflag [#allocation4], 1
    %17 = vsyncpa %s16, 0
    %18 = vsyncpa [#allocation7], 0
    %19 = vsyncpa [#allocation10], 0
    %20 = vsyncpa [#allocation13], 0
    %21 = vsyncpa [#allocation16], 0
    %22 = vsyncpa [#allocation19], 0
    %23 = vsyncpa [#allocation5], 0
    %s24 = scalar_lea.sflag [#allocation5], 1
    %25 = vsyncpa %s24, 0
    loop: start=0, step=1, limit=6
    $region2: #{_lambda_.1} parent=1 // loop_pre_header
      _
    $region3: #{_lambda_.1} parent=1 // loop_header
      %s27 = sphi 0, %s31
      %p28 = scmp.ge.s32.totalorder %s27, 6
      %s34 = sphi 0, %s46
      %s35 = sphi 0, %s42
      %s36 = sphi 0, %s34
      %s37 = sphi 0, %s35
      %s38 = sphi 0, %s36
      %s39 = sphi 0, %s37
      %s49 = sphi 0, %s51
      %s52 = sphi 0, %s49
      %s53 = sphi 0, %s52
      %s69 = sphi 0, %s53
      %s73 = sphi 0, %s73
      %s75 = sphi 0, %s73
      %s76 = sphi 0, %s75
      %s90 = sphi 0, %s76
      %s94 = sphi 0, %s94
      %s96 = sphi 0, %s94
      %s97 = sphi 0, %s96
      %s111 = sphi 0, %s97
      %s115 = sphi 0, %s115
      %s117 = sphi 0, %s115
      %s118 = sphi 0, %s117
      %s132 = sphi 0, %s118
      %s136 = sphi 0, %s136
      %s138 = sphi 0, %s136
      %s139 = sphi 0, %s138
      %s153 = sphi 0, %s139
      %s157 = sphi 0, %s157
      %s159 = sphi 0, %s157
      %s160 = sphi 0, %s159
      %s174 = sphi 0, %s160
      %s178 = sphi 0, %s178
      %s180 = sphi 0, %s178
      %s181 = sphi 0, %s180
      %s195 = sphi 0, %s181
      %s199 = sphi 0, %s199
      %s201 = sphi 0, %s199
      %s202 = sphi 0, %s201
      %s216 = sphi 0, %s202
      %s220 = sphi 0, %s220
      %s222 = sphi 0, %s220
      %s223 = sphi 0, %s222
      %s237 = sphi 0, %s223
      %s241 = sphi 0, %s241
      %s243 = sphi 0, %s241
      %s244 = sphi 0, %s243
      %s258 = sphi 0, %s244
      %s266 = sphi 0, %s268
      %s269 = sphi 0, %s266
      %s270 = sphi 0, %s269
      %s286 = sphi 0, %s270
    $region4: #{_lambda_.1} parent=1 // loop_header_branch
      %30 = sbr.rel (%p28) target = $region8
    $region5: #{_lambda_.1} parent=1 // loop_body
      %s32 = ssub.s32 %s27, 1
      %s33 = ssub.s32 %s27, 2
      %s40 = sadd.s32 1, %s35
      %p41 = scmp.ge.s32.totalorder %s40, 2
      %s42 = scalar_select %p41, 0, %s40
      %s43 = sadd.s32 1, %s34
      %s44 = scalar_select %p41, %s43, %s34
      %p45 = scmp.ge.s32.totalorder %s44, 2
      %s46 = scalar_select %p45, 0, %s44
      %s47 = ssub.s32 %s34, %s46
      %p48 = scmp.eq.s32.totalorder %s47, 0
      %s50 = sadd.s32 %s49, 1
      %s51 = scalar_select %p48, %s49, %s50
      %p54 = pneg %p48
      %p55 = scmp.eq.s32.totalorder %s27, 3
      %p56 = por %p54, %p55
      %p57 = scmp.ne.s32.totalorder %s49, %s52
      %p58 = scmp.eq.s32.totalorder %s27, 0
      %p59 = por %p57, %p58
      %p60 = scmp.ne.s32.totalorder %s49, %s52
      %p61 = scmp.eq.s32.totalorder %s32, 3
      %p62 = por %p60, %p61
      %p63 = scmp.ne.s32.totalorder %s52, %s53
      %p64 = scmp.eq.s32.totalorder %s32, 0
      %p65 = por %p63, %p64
      %p66 = scmp.ne.s32.totalorder %s52, %s53
      %p67 = scmp.eq.s32.totalorder %s33, 3
      %p68 = por %p66, %p67
      %p70 = scmp.ne.s32.totalorder %s53, %s69
      %p71 = scmp.eq.s32.totalorder %s33, 0
      %p72 = por %p70, %p71
      %s74 = sadd.s32 %s73, 1
      %p77 = scmp.eq.s32.totalorder %s27, 3
      %p78 = scmp.ne.s32.totalorder %s73, %s75
      %p79 = scmp.eq.s32.totalorder %s27, 0
      %p80 = por %p78, %p79
      %p81 = scmp.ne.s32.totalorder %s73, %s75
      %p82 = scmp.eq.s32.totalorder %s32, 3
      %p83 = por %p81, %p82
      %p84 = scmp.ne.s32.totalorder %s75, %s76
      %p85 = scmp.eq.s32.totalorder %s32, 0
      %p86 = por %p84, %p85
      %p87 = scmp.ne.s32.totalorder %s75, %s76
      %p88 = scmp.eq.s32.totalorder %s33, 3
      %p89 = por %p87, %p88
      %p91 = scmp.ne.s32.totalorder %s76, %s90
      %p92 = scmp.eq.s32.totalorder %s33, 0
      %p93 = por %p91, %p92
      %s95 = sadd.s32 %s94, 1
      %p98 = scmp.eq.s32.totalorder %s27, 3
      %p99 = scmp.ne.s32.totalorder %s94, %s96
      %p100 = scmp.eq.s32.totalorder %s27, 0
      %p101 = por %p99, %p100
      %p102 = scmp.ne.s32.totalorder %s94, %s96
      %p103 = scmp.eq.s32.totalorder %s32, 3
      %p104 = por %p102, %p103
      %p105 = scmp.ne.s32.totalorder %s96, %s97
      %p106 = scmp.eq.s32.totalorder %s32, 0
      %p107 = por %p105, %p106
      %p108 = scmp.ne.s32.totalorder %s96, %s97
      %p109 = scmp.eq.s32.totalorder %s33, 3
      %p110 = por %p108, %p109
      %p112 = scmp.ne.s32.totalorder %s97, %s111
      %p113 = scmp.eq.s32.totalorder %s33, 0
      %p114 = por %p112, %p113
      %s116 = sadd.s32 %s115, 1
      %p119 = scmp.eq.s32.totalorder %s27, 3
      %p120 = scmp.ne.s32.totalorder %s115, %s117
      %p121 = scmp.eq.s32.totalorder %s27, 0
      %p122 = por %p120, %p121
      %p123 = scmp.ne.s32.totalorder %s115, %s117
      %p124 = scmp.eq.s32.totalorder %s32, 3
      %p125 = por %p123, %p124
      %p126 = scmp.ne.s32.totalorder %s117, %s118
      %p127 = scmp.eq.s32.totalorder %s32, 0
      %p128 = por %p126, %p127
      %p129 = scmp.ne.s32.totalorder %s117, %s118
      %p130 = scmp.eq.s32.totalorder %s33, 3
      %p131 = por %p129, %p130
      %p133 = scmp.ne.s32.totalorder %s118, %s132
      %p134 = scmp.eq.s32.totalorder %s33, 0
      %p135 = por %p133, %p134
      %s137 = sadd.s32 %s136, 1
      %p140 = scmp.eq.s32.totalorder %s27, 3
      %p141 = scmp.ne.s32.totalorder %s136, %s138
      %p142 = scmp.eq.s32.totalorder %s27, 0
      %p143 = por %p141, %p142
      %p144 = scmp.ne.s32.totalorder %s136, %s138
      %p145 = scmp.eq.s32.totalorder %s32, 3
      %p146 = por %p144, %p145
      %p147 = scmp.ne.s32.totalorder %s138, %s139
      %p148 = scmp.eq.s32.totalorder %s32, 0
      %p149 = por %p147, %p148
      %p150 = scmp.ne.s32.totalorder %s138, %s139
      %p151 = scmp.eq.s32.totalorder %s33, 3
      %p152 = por %p150, %p151
      %p154 = scmp.ne.s32.totalorder %s139, %s153
      %p155 = scmp.eq.s32.totalorder %s33, 0
      %p156 = por %p154, %p155
      %s158 = sadd.s32 %s157, 1
      %p161 = scmp.eq.s32.totalorder %s27, 3
      %p162 = scmp.ne.s32.totalorder %s157, %s159
      %p163 = scmp.eq.s32.totalorder %s27, 0
      %p164 = por %p162, %p163
      %p165 = scmp.ne.s32.totalorder %s157, %s159
      %p166 = scmp.eq.s32.totalorder %s32, 3
      %p167 = por %p165, %p166
      %p168 = scmp.ne.s32.totalorder %s159, %s160
      %p169 = scmp.eq.s32.totalorder %s32, 0
      %p170 = por %p168, %p169
      %p171 = scmp.ne.s32.totalorder %s159, %s160
      %p172 = scmp.eq.s32.totalorder %s33, 3
      %p173 = por %p171, %p172
      %p175 = scmp.ne.s32.totalorder %s160, %s174
      %p176 = scmp.eq.s32.totalorder %s33, 0
      %p177 = por %p175, %p176
      %s179 = sadd.s32 %s178, 1
      %p182 = scmp.eq.s32.totalorder %s27, 3
      %p183 = scmp.ne.s32.totalorder %s178, %s180
      %p184 = scmp.eq.s32.totalorder %s27, 0
      %p185 = por %p183, %p184
      %p186 = scmp.ne.s32.totalorder %s178, %s180
      %p187 = scmp.eq.s32.totalorder %s32, 3
      %p188 = por %p186, %p187
      %p189 = scmp.ne.s32.totalorder %s180, %s181
      %p190 = scmp.eq.s32.totalorder %s32, 0
      %p191 = por %p189, %p190
      %p192 = scmp.ne.s32.totalorder %s180, %s181
      %p193 = scmp.eq.s32.totalorder %s33, 3
      %p194 = por %p192, %p193
      %p196 = scmp.ne.s32.totalorder %s181, %s195
      %p197 = scmp.eq.s32.totalorder %s33, 0
      %p198 = por %p196, %p197
      %s200 = sadd.s32 %s199, 1
      %p203 = scmp.eq.s32.totalorder %s27, 3
      %p204 = scmp.ne.s32.totalorder %s199, %s201
      %p205 = scmp.eq.s32.totalorder %s27, 0
      %p206 = por %p204, %p205
      %p207 = scmp.ne.s32.totalorder %s199, %s201
      %p208 = scmp.eq.s32.totalorder %s32, 3
      %p209 = por %p207, %p208
      %p210 = scmp.ne.s32.totalorder %s201, %s202
      %p211 = scmp.eq.s32.totalorder %s32, 0
      %p212 = por %p210, %p211
      %p213 = scmp.ne.s32.totalorder %s201, %s202
      %p214 = scmp.eq.s32.totalorder %s33, 3
      %p215 = por %p213, %p214
      %p217 = scmp.ne.s32.totalorder %s202, %s216
      %p218 = scmp.eq.s32.totalorder %s33, 0
      %p219 = por %p217, %p218
      %s221 = sadd.s32 %s220, 1
      %p224 = scmp.eq.s32.totalorder %s27, 3
      %p225 = scmp.ne.s32.totalorder %s220, %s222
      %p226 = scmp.eq.s32.totalorder %s27, 0
      %p227 = por %p225, %p226
      %p228 = scmp.ne.s32.totalorder %s220, %s222
      %p229 = scmp.eq.s32.totalorder %s32, 3
      %p230 = por %p228, %p229
      %p231 = scmp.ne.s32.totalorder %s222, %s223
      %p232 = scmp.eq.s32.totalorder %s32, 0
      %p233 = por %p231, %p232
      %p234 = scmp.ne.s32.totalorder %s222, %s223
      %p235 = scmp.eq.s32.totalorder %s33, 3
      %p236 = por %p234, %p235
      %p238 = scmp.ne.s32.totalorder %s223, %s237
      %p239 = scmp.eq.s32.totalorder %s33, 0
      %p240 = por %p238, %p239
      %s242 = sadd.s32 %s241, 1
      %p245 = scmp.eq.s32.totalorder %s27, 3
      %p246 = scmp.ne.s32.totalorder %s241, %s243
      %p247 = scmp.eq.s32.totalorder %s27, 0
      %p248 = por %p246, %p247
      %p249 = scmp.ne.s32.totalorder %s241, %s243
      %p250 = scmp.eq.s32.totalorder %s32, 3
      %p251 = por %p249, %p250
      %p252 = scmp.ne.s32.totalorder %s243, %s244
      %p253 = scmp.eq.s32.totalorder %s32, 0
      %p254 = por %p252, %p253
      %p255 = scmp.ne.s32.totalorder %s243, %s244
      %p256 = scmp.eq.s32.totalorder %s33, 3
      %p257 = por %p255, %p256
      %p259 = scmp.ne.s32.totalorder %s244, %s258
      %p260 = scmp.eq.s32.totalorder %s33, 0
      %p261 = por %p259, %p260
      %s262 = ssub.s32 %s34, %s46
      %s263 = ssub.s32 %s35, %s42
      %s264 = sor.u32 %s262, %s263
      %p265 = scmp.eq.s32.totalorder %s264, 0
      %s267 = sadd.s32 %s266, 1
      %s268 = scalar_select %p265, %s266, %s267
      %p271 = pneg %p265
      %p272 = scmp.eq.s32.totalorder %s27, 3
      %p273 = por %p271, %p272
      %p274 = scmp.ne.s32.totalorder %s266, %s269
      %p275 = scmp.eq.s32.totalorder %s27, 0
      %p276 = por %p274, %p275
      %p277 = scmp.ne.s32.totalorder %s266, %s269
      %p278 = scmp.eq.s32.totalorder %s32, 3
      %p279 = por %p277, %p278
      %p280 = scmp.ne.s32.totalorder %s269, %s270
      %p281 = scmp.eq.s32.totalorder %s32, 0
      %p282 = por %p280, %p281
      %p283 = scmp.ne.s32.totalorder %s269, %s270
      %p284 = scmp.eq.s32.totalorder %s33, 3
      %p285 = por %p283, %p284
      %p287 = scmp.ne.s32.totalorder %s270, %s286
      %p288 = scmp.eq.s32.totalorder %s33, 0
      %p289 = por %p287, %p288
      %p290 = scmp.le.s32.totalorder 1, %s27
      %p291 = scmp.lt.s32.totalorder %s27, 5
      %p292 = pnand %p290, %p291
      %p293 = pneg %p292
      // Predicated region
      $region9: #{_lambda_.1} parent=5 // pred_check
        _
      $region10: #{_lambda_.1} parent=5 // pred_check_branch
        %295 = sbr.rel (%p292) target = $region12
      $region11: #{_lambda_.1} parent=5 // pred_region
        %s296 = ssub.s32 %s27, 1
        // Predicated region
        $region13: #{_lambda_.1} parent=11 // pred_check
          %p297 = pneg %p86
        $region14: #{_lambda_.1} parent=11 // pred_check_branch
          %299 = sbr.rel (%p297) target = $region16
        $region15: #{_lambda_.1} parent=11 // pred_region
          %s301 = ssub.s32 896, 896
          %302 = vsyncadd [#allocation7], %s301
          %s303 = sshll.u32 [#allocation6], 4
          %s304 = int_to_ptr.vmem [resolvable:$true] %s303
          %309 = dma.hbm_to_vmem [thread:$0]  %s1, 896, %s304, [#allocation7], 128, 128, 8
        $region16: #{_lambda_.1} parent=11 // pred_fallthru
          _
        // Predicated region
        $region17: #{_lambda_.1} parent=11 // pred_check
          %p310 = pneg %p107
        $region18: #{_lambda_.1} parent=11 // pred_check_branch
          %312 = sbr.rel (%p310) target = $region20
        $region19: #{_lambda_.1} parent=11 // pred_region
          %s314 = ssub.s32 16, 16
          %315 = vsyncadd [#allocation7], %s314
          %s317 = sshll.u32 [#allocation8], 4
          %s318 = int_to_ptr.vmem [resolvable:$true] %s317
          %320 = dma.hbm_to_vmem [thread:$0]  %s2, 16, %s318, [#allocation7]
        $region20: #{_lambda_.1} parent=11 // pred_fallthru
          _
        // Predicated region
        $region21: #{_lambda_.1} parent=11 // pred_check
          %p321 = pneg %p128
        $region22: #{_lambda_.1} parent=11 // pred_check_branch
          %323 = sbr.rel (%p321) target = $region24
        $region23: #{_lambda_.1} parent=11 // pred_region
          %s325 = ssub.s32 16, 16
          %326 = vsyncadd [#allocation10], %s325
          %s328 = sshll.u32 [#allocation9], 4
          %s329 = int_to_ptr.vmem [resolvable:$true] %s328
          %331 = dma.hbm_to_vmem [thread:$0]  %s3, 16, %s329, [#allocation10]
        $region24: #{_lambda_.1} parent=11 // pred_fallthru
          _
        // Predicated region
        $region25: #{_lambda_.1} parent=11 // pred_check
          %p332 = pneg %p149
        $region26: #{_lambda_.1} parent=11 // pred_check_branch
          %334 = sbr.rel (%p332) target = $region28
        $region27: #{_lambda_.1} parent=11 // pred_region
          %s336 = ssub.s32 16, 16
          %337 = vsyncadd [#allocation10], %s336
          %s339 = sshll.u32 [#allocation11], 4
          %s340 = int_to_ptr.vmem [resolvable:$true] %s339
          %342 = dma.hbm_to_vmem [thread:$0]  %s4, 16, %s340, [#allocation10]
        $region28: #{_lambda_.1} parent=11 // pred_fallthru
          _
        // Predicated region
        $region29: #{_lambda_.1} parent=11 // pred_check
          %p343 = pneg %p170
        $region30: #{_lambda_.1} parent=11 // pred_check_branch
          %345 = sbr.rel (%p343) target = $region32
        $region31: #{_lambda_.1} parent=11 // pred_region
          %s347 = ssub.s32 256, 256
          %348 = vsyncadd [#allocation13], %s347
          %s349 = sshll.u32 [#allocation12], 4
          %s350 = int_to_ptr.vmem [resolvable:$true] %s349
          %355 = dma.hbm_to_vmem [thread:$0]  %s5, 256, %s350, [#allocation13], 64, 64, 4
        $region32: #{_lambda_.1} parent=11 // pred_fallthru
          _
        // Predicated region
        $region33: #{_lambda_.1} parent=11 // pred_check
          %p356 = pneg %p191
        $region34: #{_lambda_.1} parent=11 // pred_check_branch
          %358 = sbr.rel (%p356) target = $region36
        $region35: #{_lambda_.1} parent=11 // pred_region
          %s360 = ssub.s32 16, 16
          %361 = vsyncadd [#allocation13], %s360
          %s363 = sshll.u32 [#allocation14], 4
          %s364 = int_to_ptr.vmem [resolvable:$true] %s363
          %366 = dma.hbm_to_vmem [thread:$0]  %s6, 16, %s364, [#allocation13]
        $region36: #{_lambda_.1} parent=11 // pred_fallthru
          _
        // Predicated region
        $region37: #{_lambda_.1} parent=11 // pred_check
          %p367 = pneg %p212
        $region38: #{_lambda_.1} parent=11 // pred_check_branch
          %369 = sbr.rel (%p367) target = $region40
        $region39: #{_lambda_.1} parent=11 // pred_region
          %s371 = ssub.s32 1024, 1024
          %372 = vsyncadd [#allocation16], %s371
          %s373 = sshll.u32 [#allocation15], 4
          %s374 = int_to_ptr.vmem [resolvable:$true] %s373
          %379 = dma.hbm_to_vmem [thread:$0]  %s7, 1024, %s374, [#allocation16], 64, 64, 4
        $region40: #{_lambda_.1} parent=11 // pred_fallthru
          _
        // Predicated region
        $region41: #{_lambda_.1} parent=11 // pred_check
          %p380 = pneg %p233
        $region42: #{_lambda_.1} parent=11 // pred_check_branch
          %382 = sbr.rel (%p380) target = $region44
        $region43: #{_lambda_.1} parent=11 // pred_region
          %s384 = ssub.s32 16, 16
          %385 = vsyncadd [#allocation16], %s384
          %s387 = sshll.u32 [#allocation17], 4
          %s388 = int_to_ptr.vmem [resolvable:$true] %s387
          %390 = dma.hbm_to_vmem [thread:$0]  %s8, 16, %s388, [#allocation16]
        $region44: #{_lambda_.1} parent=11 // pred_fallthru
          _
        // Predicated region
        $region45: #{_lambda_.1} parent=11 // pred_check
          %p391 = pneg %p254
        $region46: #{_lambda_.1} parent=11 // pred_check_branch
          %393 = sbr.rel (%p391) target = $region48
        $region47: #{_lambda_.1} parent=11 // pred_region
          %s395 = ssub.s32 16, 16
          %396 = vsyncadd [#allocation19], %s395
          %s398 = sshll.u32 [#allocation18], 4
          %s399 = int_to_ptr.vmem [resolvable:$true] %s398
          %401 = dma.hbm_to_vmem [thread:$0]  %s9, 16, %s399, [#allocation19]
        $region48: #{_lambda_.1} parent=11 // pred_fallthru
          _
      $region12: #{_lambda_.1} parent=5 // pred_fallthru
        _
      %p402 = scmp.lt.s32.totalorder %s27, 4
      // Predicated region
      $region49: #{_lambda_.1} parent=5 // pred_check
        %p403 = pneg %p402
      $region50: #{_lambda_.1} parent=5 // pred_check_branch
        %405 = sbr.rel (%p403) target = $region52
      $region51: #{_lambda_.1} parent=5 // pred_region
        // Predicated region
        $region53: #{_lambda_.1} parent=51 // pred_check
          %p406 = pneg %p59
        $region54: #{_lambda_.1} parent=51 // pred_check_branch
          %408 = sbr.rel (%p406) target = $region56
        $region55: #{_lambda_.1} parent=51 // pred_region
          %s409 = sand.u32 %s49, 1
          %s410 = scalar_lea.sflag [#allocation4], %s409
          %s411 = sand.u32 %s49, 1
          %s412 = smul.addr %s411, 256
          %s413 = scalar_lea.vmem [#allocation3], %s412
          %s415 = ssub.s32 4096, 4096
          %416 = vsyncadd %s410, %s415
          %s417 = smul.addr %s34, 32
          %s418 = smul.addr %s417, 128
          %s419 = scalar_lea.hbm %s0, %s418
          %s420 = sshll.u32 %s413, 4
          %s421 = int_to_ptr.vmem [resolvable:$true] %s420
          %426 = dma.hbm_to_vmem [thread:$0]  %s419, 4096, %s421, %s410, 128, 128, 8
        $region56: #{_lambda_.1} parent=51 // pred_fallthru
          _
      $region52: #{_lambda_.1} parent=5 // pred_fallthru
        _
      %p427 = scmp.le.s32.totalorder 1, %s27
      %p428 = scmp.lt.s32.totalorder %s27, 5
      %p429 = pnand %p427, %p428
      %p430 = pneg %p429
      // Predicated region
      $region57: #{_lambda_.1} parent=5 // pred_check
        _
      $region58: #{_lambda_.1} parent=5 // pred_check_branch
        %432 = sbr.rel (%p429) target = $region60
      $region59: #{_lambda_.1} parent=5 // pred_region
        %s433 = ssub.s32 %s27, 1
        %s434 = sand.u32 %s52, 1
        %s435 = scalar_lea.sflag [#allocation4], %s434
        %s436 = sand.u32 %s52, 1
        %s437 = smul.addr %s436, 256
        %s438 = scalar_lea.vmem [#allocation3], %s437
        // Predicated region
        $region61: #{_lambda_.1} parent=59 // pred_check
          %p439 = pneg %p65
        $region62: #{_lambda_.1} parent=59 // pred_check_branch
          %441 = sbr.rel (%p439) target = $region64
        $region63: #{_lambda_.1} parent=59 // pred_region
          %442 = dma.done %s435, 4096
        $region64: #{_lambda_.1} parent=59 // pred_fallthru
          _
        // Predicated region
        $region65: #{_lambda_.1} parent=59 // pred_check
          %p443 = pneg %p86
        $region66: #{_lambda_.1} parent=59 // pred_check_branch
          %445 = sbr.rel (%p443) target = $region68
        $region67: #{_lambda_.1} parent=59 // pred_region
          %446 = dma.done [#allocation7], 896
        $region68: #{_lambda_.1} parent=59 // pred_fallthru
          _
        // Predicated region
        $region69: #{_lambda_.1} parent=59 // pred_check
          %p447 = pneg %p107
        $region70: #{_lambda_.1} parent=59 // pred_check_branch
          %449 = sbr.rel (%p447) target = $region72
        $region71: #{_lambda_.1} parent=59 // pred_region
          %450 = dma.done [#allocation7], 16
        $region72: #{_lambda_.1} parent=59 // pred_fallthru
          _
        // Predicated region
        $region73: #{_lambda_.1} parent=59 // pred_check
          %p451 = pneg %p128
        $region74: #{_lambda_.1} parent=59 // pred_check_branch
          %453 = sbr.rel (%p451) target = $region76
        $region75: #{_lambda_.1} parent=59 // pred_region
          %454 = dma.done [#allocation10], 16
        $region76: #{_lambda_.1} parent=59 // pred_fallthru
          _
        // Predicated region
        $region77: #{_lambda_.1} parent=59 // pred_check
          %p455 = pneg %p149
        $region78: #{_lambda_.1} parent=59 // pred_check_branch
          %457 = sbr.rel (%p455) target = $region80
        $region79: #{_lambda_.1} parent=59 // pred_region
          %458 = dma.done [#allocation10], 16
        $region80: #{_lambda_.1} parent=59 // pred_fallthru
          _
        // Predicated region
        $region81: #{_lambda_.1} parent=59 // pred_check
          %p459 = pneg %p170
        $region82: #{_lambda_.1} parent=59 // pred_check_branch
          %461 = sbr.rel (%p459) target = $region84
        $region83: #{_lambda_.1} parent=59 // pred_region
          %462 = dma.done [#allocation13], 256
        $region84: #{_lambda_.1} parent=59 // pred_fallthru
          _
        // Predicated region
        $region85: #{_lambda_.1} parent=59 // pred_check
          %p463 = pneg %p191
        $region86: #{_lambda_.1} parent=59 // pred_check_branch
          %465 = sbr.rel (%p463) target = $region88
        $region87: #{_lambda_.1} parent=59 // pred_region
          %466 = dma.done [#allocation13], 16
        $region88: #{_lambda_.1} parent=59 // pred_fallthru
          _
        // Predicated region
        $region89: #{_lambda_.1} parent=59 // pred_check
          %p467 = pneg %p212
        $region90: #{_lambda_.1} parent=59 // pred_check_branch
          %469 = sbr.rel (%p467) target = $region92
        $region91: #{_lambda_.1} parent=59 // pred_region
          %470 = dma.done [#allocation16], 1024
        $region92: #{_lambda_.1} parent=59 // pred_fallthru
          _
        // Predicated region
        $region93: #{_lambda_.1} parent=59 // pred_check
          %p471 = pneg %p233
        $region94: #{_lambda_.1} parent=59 // pred_check_branch
          %473 = sbr.rel (%p471) target = $region96
        $region95: #{_lambda_.1} parent=59 // pred_region
          %474 = dma.done [#allocation16], 16
        $region96: #{_lambda_.1} parent=59 // pred_fallthru
          _
        // Predicated region
        $region97: #{_lambda_.1} parent=59 // pred_check
          %p475 = pneg %p254
        $region98: #{_lambda_.1} parent=59 // pred_check_branch
          %477 = sbr.rel (%p475) target = $region100
        $region99: #{_lambda_.1} parent=59 // pred_region
          %478 = dma.done [#allocation19], 16
        $region100: #{_lambda_.1} parent=59 // pred_fallthru
          _
        %s479 = sand.u32 %s52, 1
        %s480 = scalar_lea.sflag [#allocation4], %s479
        %s481 = sand.u32 %s52, 1
        %s482 = smul.addr %s481, 256
        %s483 = scalar_lea.vmem [#allocation3], %s482
        %p484 = pneg %p65
        %p485 = pneg %p62
        %p486 = pneg %p86
        %p487 = pneg %p83
        %p488 = pneg %p107
        %p489 = pneg %p104
        %p490 = pneg %p128
        %p491 = pneg %p125
        %p492 = pneg %p149
        %p493 = pneg %p146
        %p494 = pneg %p170
        %p495 = pneg %p167
        %p496 = pneg %p191
        %p497 = pneg %p188
        %p498 = pneg %p212
        %p499 = pneg %p209
        %p500 = pneg %p233
        %p501 = pneg %p230
        %p502 = pneg %p254
        %p503 = pneg %p251
        %p504 = pneg %p282
        %p505 = pneg %p279
        %s506 = sand.u32 %s269, 1
        %s507 = scalar_lea.sflag [#allocation5], %s506
        %s508 = sand.u32 %s269, 1
        %s509 = smul.addr %s508, 128
        %s510 = scalar_lea.vmem [#allocation20], %s509
        %s511 = smul.u32 8, %s37
        %p513 = scmp.eq.s32.totalorder %s37, 0
        // Predicated region
        $region101: #{_lambda_.1} parent=59 // pred_check
          %p514 = pneg %p513
        $region102: #{_lambda_.1} parent=59 // pred_check_branch
          %516 = sbr.rel (%p514) target = $region104
        $region103: #{_lambda_.1} parent=59 // pred_region
          %vm517 = vcmask 261120
          %518 = vst.msk [vmem:[#allocation2] sm:$0xff] %vm517, 0.0
          %519 = vst.msk [vmem:[#allocation2 + $0x8] sm:$0xff] %vm517, 0.0
          %vm520 = vcmask 259072
          %521 = vst.msk [vmem:[#allocation2 + $0x10] sm:$0x3f] %vm520, 0.0
          %522 = vst.msk [vmem:[#allocation2 + $0x18] sm:$0xff] %vm517, 0.0
          %523 = vst.msk [vmem:[#allocation2 + $0x20] sm:$0xff] %vm517, 0.0
          %524 = vst.msk [vmem:[#allocation2 + $0x28] sm:$0x3f] %vm520, 0.0
          %525 = vst.msk [vmem:[#allocation2 + $0x30] sm:$0xff] %vm517, 0.0
          %526 = vst.msk [vmem:[#allocation2 + $0x38] sm:$0xff] %vm517, 0.0
          %527 = vst.msk [vmem:[#allocation2 + $0x40] sm:$0x3f] %vm520, 0.0
          %s528 = scalar_lea.vmem [#allocation2], 456
          %529 = vst.msk [vmem:[%s528] sm:$0xff] %vm517, 0.0
          %530 = vst.msk [vmem:[%s528 + $0x8] sm:$0xff] %vm517, 0.0
          %531 = vst.msk [vmem:[%s528 + $0x10] sm:$0x3f] %vm520, 0.0
          %532 = vst.msk [vmem:[%s528 + $0x18] sm:$0xff] %vm517, 0.0
          %533 = vst.msk [vmem:[%s528 + $0x20] sm:$0xff] %vm517, 0.0
          %534 = vst.msk [vmem:[%s528 + $0x28] sm:$0x3f] %vm520, 0.0
          %535 = vst.msk [vmem:[%s528 + $0x30] sm:$0xff] %vm517, 0.0
          %536 = vst.msk [vmem:[%s528 + $0x38] sm:$0xff] %vm517, 0.0
          %537 = vst.msk [vmem:[%s528 + $0x40] sm:$0x3f] %vm520, 0.0
          %s538 = scalar_lea.vmem [#allocation2], 72
          %vm539 = vcmask 256000
          %540 = vst.msk [vmem:[%s538] sm:$0x7] %vm539, 0.0
          %541 = vst.msk [vmem:[%s538 + $0x18] sm:$0x7] %vm539, 0.0
          %542 = vst.msk [vmem:[%s538 + $0x30] sm:$0x7] %vm539, 0.0
          %543 = vst.msk [vmem:[%s538 + $0x48] sm:$0x7] %vm539, 0.0
          %544 = vst.msk [vmem:[%s538 + $0x60] sm:$0x7] %vm539, 0.0
          %545 = vst.msk [vmem:[%s538 + $0x78] sm:$0x7] %vm539, 0.0
          %546 = vst.msk [vmem:[%s538 + $0x90] sm:$0x7] %vm539, 0.0
          %547 = vst.msk [vmem:[%s538 + $0xa8] sm:$0x7] %vm539, 0.0
          %548 = vst.msk [vmem:[%s538 + $0xc0] sm:$0x7] %vm539, 0.0
          %549 = vst.msk [vmem:[%s538 + $0xd8] sm:$0x7] %vm539, 0.0
          %550 = vst.msk [vmem:[%s538 + $0xf0] sm:$0x7] %vm539, 0.0
          %551 = vst.msk [vmem:[%s538 + $0x108] sm:$0x7] %vm539, 0.0
          %552 = vst.msk [vmem:[%s538 + $0x120] sm:$0x7] %vm539, 0.0
          %553 = vst.msk [vmem:[%s538 + $0x138] sm:$0x7] %vm539, 0.0
          %554 = vst.msk [vmem:[%s538 + $0x150] sm:$0x7] %vm539, 0.0
          %555 = vst.msk [vmem:[%s538 + $0x168] sm:$0x7] %vm539, 0.0
          %556 = vst.msk [vmem:[%s538 + $0x13] sm:$0x7] %vm539, 0.0
          %557 = vst.msk [vmem:[%s538 + $0x2b] sm:$0x7] %vm539, 0.0
          %558 = vst.msk [vmem:[%s538 + $0x43] sm:$0x7] %vm539, 0.0
          %559 = vst.msk [vmem:[%s538 + $0x5b] sm:$0x7] %vm539, 0.0
          %560 = vst.msk [vmem:[%s538 + $0x73] sm:$0x7] %vm539, 0.0
          %561 = vst.msk [vmem:[%s538 + $0x8b] sm:$0x7] %vm539, 0.0
          %562 = vst.msk [vmem:[%s538 + $0xa3] sm:$0x7] %vm539, 0.0
          %563 = vst.msk [vmem:[%s538 + $0xbb] sm:$0x7] %vm539, 0.0
          %564 = vst.msk [vmem:[%s538 + $0xd3] sm:$0x7] %vm539, 0.0
          %565 = vst.msk [vmem:[%s538 + $0xeb] sm:$0x7] %vm539, 0.0
          %566 = vst.msk [vmem:[%s538 + $0x103] sm:$0x7] %vm539, 0.0
          %567 = vst.msk [vmem:[%s538 + $0x11b] sm:$0x7] %vm539, 0.0
          %568 = vst.msk [vmem:[%s538 + $0x133] sm:$0x7] %vm539, 0.0
          %569 = vst.msk [vmem:[%s538 + $0x14b] sm:$0x7] %vm539, 0.0
          %570 = vst.msk [vmem:[%s538 + $0x163] sm:$0x7] %vm539, 0.0
          %571 = vst.msk [vmem:[%s538 + $0x17b] sm:$0x7] %vm539, 0.0
          %v572 = vld [vmem:[%s438] sm:$0xff]
          %v573 = vld [vmem:[%s438 + $0x8] sm:$0xff]
          %v574 = vld [vmem:[%s438 + $0x10] sm:$0xff]
          %v575 = vld [vmem:[%s438 + $0x18] sm:$0xff]
          %v576 = vld [vmem:[%s438 + $0x20] sm:$0xff]
          %v577 = vld [vmem:[%s438 + $0x28] sm:$0xff]
          %v578 = vld [vmem:[%s438 + $0x30] sm:$0xff]
          %v579 = vld [vmem:[%s438 + $0x38] sm:$0xff]
          %v580 = vld [vmem:[%s438 + $0x40] sm:$0xff]
          %v581 = vld [vmem:[%s438 + $0x48] sm:$0xff]
          %v582 = vld [vmem:[%s438 + $0x50] sm:$0xff]
          %v583 = vld [vmem:[%s438 + $0x58] sm:$0xff]
          %v584 = vld [vmem:[%s438 + $0x60] sm:$0xff]
          %v585 = vld [vmem:[%s438 + $0x68] sm:$0xff]
          %v586 = vld [vmem:[%s438 + $0x70] sm:$0xff]
          %v587 = vld [vmem:[%s438 + $0x78] sm:$0xff]
          %v588 = vld [vmem:[%s438 + $0x80] sm:$0xff]
          %v589 = vld [vmem:[%s438 + $0x88] sm:$0xff]
          %v590 = vld [vmem:[%s438 + $0x90] sm:$0xff]
          %v591 = vld [vmem:[%s438 + $0x98] sm:$0xff]
          %v592 = vld [vmem:[%s438 + $0xa0] sm:$0xff]
          %v593 = vld [vmem:[%s438 + $0xa8] sm:$0xff]
          %v594 = vld [vmem:[%s438 + $0xb0] sm:$0xff]
          %v595 = vld [vmem:[%s438 + $0xb8] sm:$0xff]
          %v596 = vld [vmem:[%s438 + $0xc0] sm:$0xff]
          %v597 = vld [vmem:[%s438 + $0xc8] sm:$0xff]
          %v598 = vld [vmem:[%s438 + $0xd0] sm:$0xff]
          %v599 = vld [vmem:[%s438 + $0xd8] sm:$0xff]
          %v600 = vld [vmem:[%s438 + $0xe0] sm:$0xff]
          %v601 = vld [vmem:[%s438 + $0xe8] sm:$0xff]
          %v602 = vld [vmem:[%s438 + $0xf0] sm:$0xff]
          %v603 = vld [vmem:[%s438 + $0xf8] sm:$0xff]
          %604 = vst.msk [vmem:[%s538 + $0x3] sm:$0xff] %vm517, %v572
          %605 = vst.msk [vmem:[%s538 + $0xb] sm:$0xff] %vm517, %v573
          %606 = vst.msk [vmem:[%s538 + $0x1b] sm:$0xff] %vm517, %v574
          %607 = vst.msk [vmem:[%s538 + $0x23] sm:$0xff] %vm517, %v575
          %608 = vst.msk [vmem:[%s538 + $0x33] sm:$0xff] %vm517, %v576
          %609 = vst.msk [vmem:[%s538 + $0x3b] sm:$0xff] %vm517, %v577
          %610 = vst.msk [vmem:[%s538 + $0x4b] sm:$0xff] %vm517, %v578
          %611 = vst.msk [vmem:[%s538 + $0x53] sm:$0xff] %vm517, %v579
          %612 = vst.msk [vmem:[%s538 + $0x63] sm:$0xff] %vm517, %v580
          %613 = vst.msk [vmem:[%s538 + $0x6b] sm:$0xff] %vm517, %v581
          %614 = vst.msk [vmem:[%s538 + $0x7b] sm:$0xff] %vm517, %v582
          %615 = vst.msk [vmem:[%s538 + $0x83] sm:$0xff] %vm517, %v583
          %616 = vst.msk [vmem:[%s538 + $0x93] sm:$0xff] %vm517, %v584
          %617 = vst.msk [vmem:[%s538 + $0x9b] sm:$0xff] %vm517, %v585
          %618 = vst.msk [vmem:[%s538 + $0xab] sm:$0xff] %vm517, %v586
          %619 = vst.msk [vmem:[%s538 + $0xb3] sm:$0xff] %vm517, %v587
          %620 = vst.msk [vmem:[%s538 + $0xc3] sm:$0xff] %vm517, %v588
          %621 = vst.msk [vmem:[%s538 + $0xcb] sm:$0xff] %vm517, %v589
          %622 = vst.msk [vmem:[%s538 + $0xdb] sm:$0xff] %vm517, %v590
          %623 = vst.msk [vmem:[%s538 + $0xe3] sm:$0xff] %vm517, %v591
          %624 = vst.msk [vmem:[%s538 + $0xf3] sm:$0xff] %vm517, %v592
          %625 = vst.msk [vmem:[%s538 + $0xfb] sm:$0xff] %vm517, %v593
          %626 = vst.msk [vmem:[%s538 + $0x10b] sm:$0xff] %vm517, %v594
          %627 = vst.msk [vmem:[%s538 + $0x113] sm:$0xff] %vm517, %v595
          %628 = vst.msk [vmem:[%s538 + $0x123] sm:$0xff] %vm517, %v596
          %629 = vst.msk [vmem:[%s538 + $0x12b] sm:$0xff] %vm517, %v597
          %630 = vst.msk [vmem:[%s538 + $0x13b] sm:$0xff] %vm517, %v598
          %631 = vst.msk [vmem:[%s538 + $0x143] sm:$0xff] %vm517, %v599
          %632 = vst.msk [vmem:[%s538 + $0x153] sm:$0xff] %vm517, %v600
          %633 = vst.msk [vmem:[%s538 + $0x15b] sm:$0xff] %vm517, %v601
          %634 = vst.msk [vmem:[%s538 + $0x16b] sm:$0xff] %vm517, %v602
          %635 = vst.msk [vmem:[%s538 + $0x173] sm:$0xff] %vm517, %v603
        $region104: #{_lambda_.1} parent=59 // pred_fallthru
          _
        %s636 = smul.u32 %s37, 8
        %v637 = vld [vmem:[#allocation6] sm:$0xff]
        %v638 = vld [vmem:[#allocation6 + $0x8] sm:$0xff]
        %v639 = vld [vmem:[#allocation6 + $0x10] sm:$0xff]
        %v640 = vld [vmem:[#allocation6 + $0x18] sm:$0xff]
        %v641 = vld [vmem:[#allocation6 + $0x20] sm:$0xff]
        %v642 = vld [vmem:[#allocation6 + $0x28] sm:$0xff]
        %v643 = vld [vmem:[#allocation6 + $0x30] sm:$0x1]
        %s644 = smul.u32 %s636, 24
        %s645 = scalar_lea.vmem [#allocation2], %s644
        %v646 = vld [vmem:[%s645] sm:$0xff]
        %v647 = vld [vmem:[%s645 + $0x8] sm:$0xff]
        %v648 = vld [vmem:[%s645 + $0x18] sm:$0xff]
        %v649 = vld [vmem:[%s645 + $0x20] sm:$0xff]
        %v650 = vld [vmem:[%s645 + $0x30] sm:$0xff]
        %v651 = vld [vmem:[%s645 + $0x38] sm:$0xff]
        %v652 = vld [vmem:[%s645 + $0x48] sm:$0xff]
        %v653 = vld [vmem:[%s645 + $0x50] sm:$0xff]
        %v654 = vld [vmem:[%s645 + $0x60] sm:$0xff]
        %v655 = vld [vmem:[%s645 + $0x68] sm:$0xff]
        %v656 = vld [vmem:[%s645 + $0x78] sm:$0xff]
        %v657 = vld [vmem:[%s645 + $0x80] sm:$0xff]
        %v658 = vld [vmem:[%s645 + $0x90] sm:$0xff]
        %v659 = vld [vmem:[%s645 + $0x98] sm:$0xff]
        %v660 = vld [vmem:[%s645 + $0xa8] sm:$0xff]
        %v661 = vld [vmem:[%s645 + $0xb0] sm:$0xff]
        %v662 = vlaneseq
        %v663 = vshrl.u32 %v662, 7
        %v664 = vsub.s32 0, %v663
        %v665 = vrot.slane %v637, %v664
        %v666 = vmul.f32 %v646, %v665
        %v667 = vmul.f32 %v647, %v665
        %v668 = vmul.f32 %v648, %v665
        %v669 = vmul.f32 %v649, %v665
        %v670 = vmul.f32 %v650, %v665
        %v671 = vmul.f32 %v651, %v665
        %v672 = vmul.f32 %v652, %v665
        %v673 = vmul.f32 %v653, %v665
        %v674 = vmul.f32 %v654, %v665
        %v675 = vmul.f32 %v655, %v665
        %v676 = vmul.f32 %v656, %v665
        %v677 = vmul.f32 %v657, %v665
        %v678 = vmul.f32 %v658, %v665
        %v679 = vmul.f32 %v659, %v665
        %v680 = vmul.f32 %v660, %v665
        %v681 = vmul.f32 %v661, %v665
        %v682 = vadd.f32 %v666, 0.0
        %v683 = vadd.f32 %v667, 0.0
        %v684 = vadd.f32 %v668, 0.0
        %v685 = vadd.f32 %v669, 0.0
        %v686 = vadd.f32 %v670, 0.0
        %v687 = vadd.f32 %v671, 0.0
        %v688 = vadd.f32 %v672, 0.0
        %v689 = vadd.f32 %v673, 0.0
        %v690 = vadd.f32 %v674, 0.0
        %v691 = vadd.f32 %v675, 0.0
        %v692 = vadd.f32 %v676, 0.0
        %v693 = vadd.f32 %v677, 0.0
        %v694 = vadd.f32 %v678, 0.0
        %v695 = vadd.f32 %v679, 0.0
        %v696 = vadd.f32 %v680, 0.0
        %v697 = vadd.f32 %v681, 0.0
        %v698 = vld [vmem:[%s645 + $0x1] sm:$0xff]
        %v699 = vld [vmem:[%s645 + $0x9] sm:$0xff]
        %v700 = vld [vmem:[%s645 + $0x19] sm:$0xff]
        %v701 = vld [vmem:[%s645 + $0x21] sm:$0xff]
        %v702 = vld [vmem:[%s645 + $0x31] sm:$0xff]
        %v703 = vld [vmem:[%s645 + $0x39] sm:$0xff]
        %v704 = vld [vmem:[%s645 + $0x49] sm:$0xff]
        %v705 = vld [vmem:[%s645 + $0x51] sm:$0xff]
        %v706 = vld [vmem:[%s645 + $0x61] sm:$0xff]
        %v707 = vld [vmem:[%s645 + $0x69] sm:$0xff]
        %v708 = vld [vmem:[%s645 + $0x79] sm:$0xff]
        %v709 = vld [vmem:[%s645 + $0x81] sm:$0xff]
        %v710 = vld [vmem:[%s645 + $0x91] sm:$0xff]
        %v711 = vld [vmem:[%s645 + $0x99] sm:$0xff]
        %v712 = vld [vmem:[%s645 + $0xa9] sm:$0xff]
        %v713 = vld [vmem:[%s645 + $0xb1] sm:$0xff]
        %v714 = vlaneseq
        %v715 = vshrl.u32 %v714, 7
        %v716 = vsub.s32 1, %v715
        %v717 = vrot.slane %v637, %v716
        %v718 = vmul.f32 %v698, %v717
        %v719 = vmul.f32 %v699, %v717
        %v720 = vmul.f32 %v700, %v717
        %v721 = vmul.f32 %v701, %v717
        %v722 = vmul.f32 %v702, %v717
        %v723 = vmul.f32 %v703, %v717
        %v724 = vmul.f32 %v704, %v717
        %v725 = vmul.f32 %v705, %v717
        %v726 = vmul.f32 %v706, %v717
        %v727 = vmul.f32 %v707, %v717
        %v728 = vmul.f32 %v708, %v717
        %v729 = vmul.f32 %v709, %v717
        %v730 = vmul.f32 %v710, %v717
        %v731 = vmul.f32 %v711, %v717
        %v732 = vmul.f32 %v712, %v717
        %v733 = vmul.f32 %v713, %v717
        %v734 = vadd.f32 %v682, %v718
        %v735 = vadd.f32 %v683, %v719
        %v736 = vadd.f32 %v684, %v720
        %v737 = vadd.f32 %v685, %v721
        %v738 = vadd.f32 %v686, %v722
        %v739 = vadd.f32 %v687, %v723
        %v740 = vadd.f32 %v688, %v724
        %v741 = vadd.f32 %v689, %v725
        %v742 = vadd.f32 %v690, %v726
        %v743 = vadd.f32 %v691, %v727
        %v744 = vadd.f32 %v692, %v728
        %v745 = vadd.f32 %v693, %v729
        %v746 = vadd.f32 %v694, %v730
        %v747 = vadd.f32 %v695, %v731
        %v748 = vadd.f32 %v696, %v732
        %v749 = vadd.f32 %v697, %v733
        %v750 = vld [vmem:[%s645 + $0x2] sm:$0xff]
        %v751 = vld [vmem:[%s645 + $0xa] sm:$0xff]
        %v752 = vld [vmem:[%s645 + $0x1a] sm:$0xff]
        %v753 = vld [vmem:[%s645 + $0x22] sm:$0xff]
        %v754 = vld [vmem:[%s645 + $0x32] sm:$0xff]
        %v755 = vld [vmem:[%s645 + $0x3a] sm:$0xff]
        %v756 = vld [vmem:[%s645 + $0x4a] sm:$0xff]
        %v757 = vld [vmem:[%s645 + $0x52] sm:$0xff]
        %v758 = vld [vmem:[%s645 + $0x62] sm:$0xff]
        %v759 = vld [vmem:[%s645 + $0x6a] sm:$0xff]
        %v760 = vld [vmem:[%s645 + $0x7a] sm:$0xff]
        %v761 = vld [vmem:[%s645 + $0x82] sm:$0xff]
        %v762 = vld [vmem:[%s645 + $0x92] sm:$0xff]
        %v763 = vld [vmem:[%s645 + $0x9a] sm:$0xff]
        %v764 = vld [vmem:[%s645 + $0xaa] sm:$0xff]
        %v765 = vld [vmem:[%s645 + $0xb2] sm:$0xff]
        %v766 = vlaneseq
        %v767 = vshrl.u32 %v766, 7
        %v768 = vsub.s32 2, %v767
        %v769 = vrot.slane %v637, %v768
        %v770 = vmul.f32 %v750, %v769
        %v771 = vmul.f32 %v751, %v769
        %v772 = vmul.f32 %v752, %v769
        %v773 = vmul.f32 %v753, %v769
        %v774 = vmul.f32 %v754, %v769
        %v775 = vmul.f32 %v755, %v769
        %v776 = vmul.f32 %v756, %v769
        %v777 = vmul.f32 %v757, %v769
        %v778 = vmul.f32 %v758, %v769
        %v779 = vmul.f32 %v759, %v769
        %v780 = vmul.f32 %v760, %v769
        %v781 = vmul.f32 %v761, %v769
        %v782 = vmul.f32 %v762, %v769
        %v783 = vmul.f32 %v763, %v769
        %v784 = vmul.f32 %v764, %v769
        %v785 = vmul.f32 %v765, %v769
        %v786 = vadd.f32 %v734, %v770
        %v787 = vadd.f32 %v735, %v771
        %v788 = vadd.f32 %v736, %v772
        %v789 = vadd.f32 %v737, %v773
        %v790 = vadd.f32 %v738, %v774
        %v791 = vadd.f32 %v739, %v775
        %v792 = vadd.f32 %v740, %v776
        %v793 = vadd.f32 %v741, %v777
        %v794 = vadd.f32 %v742, %v778
        %v795 = vadd.f32 %v743, %v779
        %v796 = vadd.f32 %v744, %v780
        %v797 = vadd.f32 %v745, %v781
        %v798 = vadd.f32 %v746, %v782
        %v799 = vadd.f32 %v747, %v783
        %v800 = vadd.f32 %v748, %v784
        %v801 = vadd.f32 %v749, %v785
        %v802 = vld [vmem:[%s645 + $0x3] sm:$0xff]
        %v803 = vld [vmem:[%s645 + $0xb] sm:$0xff]
        %v804 = vld [vmem:[%s645 + $0x1b] sm:$0xff]
        %v805 = vld [vmem:[%s645 + $0x23] sm:$0xff]
        %v806 = vld [vmem:[%s645 + $0x33] sm:$0xff]
        %v807 = vld [vmem:[%s645 + $0x3b] sm:$0xff]
        %v808 = vld [vmem:[%s645 + $0x4b] sm:$0xff]
        %v809 = vld [vmem:[%s645 + $0x53] sm:$0xff]
        %v810 = vld [vmem:[%s645 + $0x63] sm:$0xff]
        %v811 = vld [vmem:[%s645 + $0x6b] sm:$0xff]
        %v812 = vld [vmem:[%s645 + $0x7b] sm:$0xff]
        %v813 = vld [vmem:[%s645 + $0x83] sm:$0xff]
        %v814 = vld [vmem:[%s645 + $0x93] sm:$0xff]
        %v815 = vld [vmem:[%s645 + $0x9b] sm:$0xff]
        %v816 = vld [vmem:[%s645 + $0xab] sm:$0xff]
        %v817 = vld [vmem:[%s645 + $0xb3] sm:$0xff]
        %v818 = vlaneseq
        %v819 = vshrl.u32 %v818, 7
        %v820 = vsub.s32 3, %v819
        %v821 = vrot.slane %v637, %v820
        %v822 = vmul.f32 %v802, %v821
        %v823 = vmul.f32 %v803, %v821
        %v824 = vmul.f32 %v804, %v821
        %v825 = vmul.f32 %v805, %v821
        %v826 = vmul.f32 %v806, %v821
        %v827 = vmul.f32 %v807, %v821
        %v828 = vmul.f32 %v808, %v821
        %v829 = vmul.f32 %v809, %v821
        %v830 = vmul.f32 %v810, %v821
        %v831 = vmul.f32 %v811, %v821
        %v832 = vmul.f32 %v812, %v821
        %v833 = vmul.f32 %v813, %v821
        %v834 = vmul.f32 %v814, %v821
        %v835 = vmul.f32 %v815, %v821
        %v836 = vmul.f32 %v816, %v821
        %v837 = vmul.f32 %v817, %v821
        %v838 = vadd.f32 %v786, %v822
        %v839 = vadd.f32 %v787, %v823
        %v840 = vadd.f32 %v788, %v824
        %v841 = vadd.f32 %v789, %v825
        %v842 = vadd.f32 %v790, %v826
        %v843 = vadd.f32 %v791, %v827
        %v844 = vadd.f32 %v792, %v828
        %v845 = vadd.f32 %v793, %v829
        %v846 = vadd.f32 %v794, %v830
        %v847 = vadd.f32 %v795, %v831
        %v848 = vadd.f32 %v796, %v832
        %v849 = vadd.f32 %v797, %v833
        %v850 = vadd.f32 %v798, %v834
        %v851 = vadd.f32 %v799, %v835
        %v852 = vadd.f32 %v800, %v836
        %v853 = vadd.f32 %v801, %v837
        %v854 = vld [vmem:[%s645 + $0x4] sm:$0xff]
        %v855 = vld [vmem:[%s645 + $0xc] sm:$0xff]
        %v856 = vld [vmem:[%s645 + $0x1c] sm:$0xff]
        %v857 = vld [vmem:[%s645 + $0x24] sm:$0xff]
        %v858 = vld [vmem:[%s645 + $0x34] sm:$0xff]
        %v859 = vld [vmem:[%s645 + $0x3c] sm:$0xff]
        %v860 = vld [vmem:[%s645 + $0x4c] sm:$0xff]
        %v861 = vld [vmem:[%s645 + $0x54] sm:$0xff]
        %v862 = vld [vmem:[%s645 + $0x64] sm:$0xff]
        %v863 = vld [vmem:[%s645 + $0x6c] sm:$0xff]
        %v864 = vld [vmem:[%s645 + $0x7c] sm:$0xff]
        %v865 = vld [vmem:[%s645 + $0x84] sm:$0xff]
        %v866 = vld [vmem:[%s645 + $0x94] sm:$0xff]
        %v867 = vld [vmem:[%s645 + $0x9c] sm:$0xff]
        %v868 = vld [vmem:[%s645 + $0xac] sm:$0xff]
        %v869 = vld [vmem:[%s645 + $0xb4] sm:$0xff]
        %v870 = vlaneseq
        %v871 = vshrl.u32 %v870, 7
        %v872 = vsub.s32 4, %v871
        %v873 = vrot.slane %v637, %v872
        %v874 = vmul.f32 %v854, %v873
        %v875 = vmul.f32 %v855, %v873
        %v876 = vmul.f32 %v856, %v873
        %v877 = vmul.f32 %v857, %v873
        %v878 = vmul.f32 %v858, %v873
        %v879 = vmul.f32 %v859, %v873
        %v880 = vmul.f32 %v860, %v873
        %v881 = vmul.f32 %v861, %v873
        %v882 = vmul.f32 %v862, %v873
        %v883 = vmul.f32 %v863, %v873
        %v884 = vmul.f32 %v864, %v873
        %v885 = vmul.f32 %v865, %v873
        %v886 = vmul.f32 %v866, %v873
        %v887 = vmul.f32 %v867, %v873
        %v888 = vmul.f32 %v868, %v873
        %v889 = vmul.f32 %v869, %v873
        %v890 = vadd.f32 %v838, %v874
        %v891 = vadd.f32 %v839, %v875
        %v892 = vadd.f32 %v840, %v876
        %v893 = vadd.f32 %v841, %v877
        %v894 = vadd.f32 %v842, %v878
        %v895 = vadd.f32 %v843, %v879
        %v896 = vadd.f32 %v844, %v880
        %v897 = vadd.f32 %v845, %v881
        %v898 = vadd.f32 %v846, %v882
        %v899 = vadd.f32 %v847, %v883
        %v900 = vadd.f32 %v848, %v884
        %v901 = vadd.f32 %v849, %v885
        %v902 = vadd.f32 %v850, %v886
        %v903 = vadd.f32 %v851, %v887
        %v904 = vadd.f32 %v852, %v888
        %v905 = vadd.f32 %v853, %v889
        %v906 = vld [vmem:[%s645 + $0x5] sm:$0xff]
        %v907 = vld [vmem:[%s645 + $0xd] sm:$0xff]
        %v908 = vld [vmem:[%s645 + $0x1d] sm:$0xff]
        %v909 = vld [vmem:[%s645 + $0x25] sm:$0xff]
        %v910 = vld [vmem:[%s645 + $0x35] sm:$0xff]
        %v911 = vld [vmem:[%s645 + $0x3d] sm:$0xff]
        %v912 = vld [vmem:[%s645 + $0x4d] sm:$0xff]
        %v913 = vld [vmem:[%s645 + $0x55] sm:$0xff]
        %v914 = vld [vmem:[%s645 + $0x65] sm:$0xff]
        %v915 = vld [vmem:[%s645 + $0x6d] sm:$0xff]
        %v916 = vld [vmem:[%s645 + $0x7d] sm:$0xff]
        %v917 = vld [vmem:[%s645 + $0x85] sm:$0xff]
        %v918 = vld [vmem:[%s645 + $0x95] sm:$0xff]
        %v919 = vld [vmem:[%s645 + $0x9d] sm:$0xff]
        %v920 = vld [vmem:[%s645 + $0xad] sm:$0xff]
        %v921 = vld [vmem:[%s645 + $0xb5] sm:$0xff]
        %v922 = vlaneseq
        %v923 = vshrl.u32 %v922, 7
        %v924 = vsub.s32 5, %v923
        %v925 = vrot.slane %v637, %v924
        %v926 = vmul.f32 %v906, %v925
        %v927 = vmul.f32 %v907, %v925
        %v928 = vmul.f32 %v908, %v925
        %v929 = vmul.f32 %v909, %v925
        %v930 = vmul.f32 %v910, %v925
        %v931 = vmul.f32 %v911, %v925
        %v932 = vmul.f32 %v912, %v925
        %v933 = vmul.f32 %v913, %v925
        %v934 = vmul.f32 %v914, %v925
        %v935 = vmul.f32 %v915, %v925
        %v936 = vmul.f32 %v916, %v925
        %v937 = vmul.f32 %v917, %v925
        %v938 = vmul.f32 %v918, %v925
        %v939 = vmul.f32 %v919, %v925
        %v940 = vmul.f32 %v920, %v925
        %v941 = vmul.f32 %v921, %v925
        %v942 = vadd.f32 %v890, %v926
        %v943 = vadd.f32 %v891, %v927
        %v944 = vadd.f32 %v892, %v928
        %v945 = vadd.f32 %v893, %v929
        %v946 = vadd.f32 %v894, %v930
        %v947 = vadd.f32 %v895, %v931
        %v948 = vadd.f32 %v896, %v932
        %v949 = vadd.f32 %v897, %v933
        %v950 = vadd.f32 %v898, %v934
        %v951 = vadd.f32 %v899, %v935
        %v952 = vadd.f32 %v900, %v936
        %v953 = vadd.f32 %v901, %v937
        %v954 = vadd.f32 %v902, %v938
        %v955 = vadd.f32 %v903, %v939
        %v956 = vadd.f32 %v904, %v940
        %v957 = vadd.f32 %v905, %v941
        %v958 = vld [vmem:[%s645 + $0x6] sm:$0xff]
        %v959 = vld [vmem:[%s645 + $0xe] sm:$0xff]
        %v960 = vld [vmem:[%s645 + $0x1e] sm:$0xff]
        %v961 = vld [vmem:[%s645 + $0x26] sm:$0xff]
        %v962 = vld [vmem:[%s645 + $0x36] sm:$0xff]
        %v963 = vld [vmem:[%s645 + $0x3e] sm:$0xff]
        %v964 = vld [vmem:[%s645 + $0x4e] sm:$0xff]
        %v965 = vld [vmem:[%s645 + $0x56] sm:$0xff]
        %v966 = vld [vmem:[%s645 + $0x66] sm:$0xff]
        %v967 = vld [vmem:[%s645 + $0x6e] sm:$0xff]
        %v968 = vld [vmem:[%s645 + $0x7e] sm:$0xff]
        %v969 = vld [vmem:[%s645 + $0x86] sm:$0xff]
        %v970 = vld [vmem:[%s645 + $0x96] sm:$0xff]
        %v971 = vld [vmem:[%s645 + $0x9e] sm:$0xff]
        %v972 = vld [vmem:[%s645 + $0xae] sm:$0xff]
        %v973 = vld [vmem:[%s645 + $0xb6] sm:$0xff]
        %v974 = vlaneseq
        %v975 = vshrl.u32 %v974, 7
        %v976 = vsub.s32 6, %v975
        %v977 = vrot.slane %v637, %v976
        %v978 = vmul.f32 %v958, %v977
        %v979 = vmul.f32 %v959, %v977
        %v980 = vmul.f32 %v960, %v977
        %v981 = vmul.f32 %v961, %v977
        %v982 = vmul.f32 %v962, %v977
        %v983 = vmul.f32 %v963, %v977
        %v984 = vmul.f32 %v964, %v977
        %v985 = vmul.f32 %v965, %v977
        %v986 = vmul.f32 %v966, %v977
        %v987 = vmul.f32 %v967, %v977
        %v988 = vmul.f32 %v968, %v977
        %v989 = vmul.f32 %v969, %v977
        %v990 = vmul.f32 %v970, %v977
        %v991 = vmul.f32 %v971, %v977
        %v992 = vmul.f32 %v972, %v977
        %v993 = vmul.f32 %v973, %v977
        %v994 = vadd.f32 %v942, %v978
        %v995 = vadd.f32 %v943, %v979
        %v996 = vadd.f32 %v944, %v980
        %v997 = vadd.f32 %v945, %v981
        %v998 = vadd.f32 %v946, %v982
        %v999 = vadd.f32 %v947, %v983
        %v1000 = vadd.f32 %v948, %v984
        %v1001 = vadd.f32 %v949, %v985
        %v1002 = vadd.f32 %v950, %v986
        %v1003 = vadd.f32 %v951, %v987
        %v1004 = vadd.f32 %v952, %v988
        %v1005 = vadd.f32 %v953, %v989
        %v1006 = vadd.f32 %v954, %v990
        %v1007 = vadd.f32 %v955, %v991
        %v1008 = vadd.f32 %v956, %v992
        %v1009 = vadd.f32 %v957, %v993
        %s1010 = sadd.s32 %s636, 1
        %s1011 = smul.u32 %s1010, 24
        %s1012 = scalar_lea.vmem [#allocation2], %s1011
        %v1013 = vld [vmem:[%s1012] sm:$0xff]
        %v1014 = vld [vmem:[%s1012 + $0x8] sm:$0xff]
        %v1015 = vld [vmem:[%s1012 + $0x18] sm:$0xff]
        %v1016 = vld [vmem:[%s1012 + $0x20] sm:$0xff]
        %v1017 = vld [vmem:[%s1012 + $0x30] sm:$0xff]
        %v1018 = vld [vmem:[%s1012 + $0x38] sm:$0xff]
        %v1019 = vld [vmem:[%s1012 + $0x48] sm:$0xff]
        %v1020 = vld [vmem:[%s1012 + $0x50] sm:$0xff]
        %v1021 = vld [vmem:[%s1012 + $0x60] sm:$0xff]
        %v1022 = vld [vmem:[%s1012 + $0x68] sm:$0xff]
        %v1023 = vld [vmem:[%s1012 + $0x78] sm:$0xff]
        %v1024 = vld [vmem:[%s1012 + $0x80] sm:$0xff]
        %v1025 = vld [vmem:[%s1012 + $0x90] sm:$0xff]
        %v1026 = vld [vmem:[%s1012 + $0x98] sm:$0xff]
        %v1027 = vld [vmem:[%s1012 + $0xa8] sm:$0xff]
        %v1028 = vld [vmem:[%s1012 + $0xb0] sm:$0xff]
        %v1029 = vlaneseq
        %v1030 = vshrl.u32 %v1029, 7
        %v1031 = vsub.s32 7, %v1030
        %v1032 = vrot.slane %v637, %v1031
        %v1033 = vmul.f32 %v1013, %v1032
        %v1034 = vmul.f32 %v1014, %v1032
        %v1035 = vmul.f32 %v1015, %v1032
        %v1036 = vmul.f32 %v1016, %v1032
        %v1037 = vmul.f32 %v1017, %v1032
        %v1038 = vmul.f32 %v1018, %v1032
        %v1039 = vmul.f32 %v1019, %v1032
        %v1040 = vmul.f32 %v1020, %v1032
        %v1041 = vmul.f32 %v1021, %v1032
        %v1042 = vmul.f32 %v1022, %v1032
        %v1043 = vmul.f32 %v1023, %v1032
        %v1044 = vmul.f32 %v1024, %v1032
        %v1045 = vmul.f32 %v1025, %v1032
        %v1046 = vmul.f32 %v1026, %v1032
        %v1047 = vmul.f32 %v1027, %v1032
        %v1048 = vmul.f32 %v1028, %v1032
        %v1049 = vadd.f32 %v994, %v1033
        %v1050 = vadd.f32 %v995, %v1034
        %v1051 = vadd.f32 %v996, %v1035
        %v1052 = vadd.f32 %v997, %v1036
        %v1053 = vadd.f32 %v998, %v1037
        %v1054 = vadd.f32 %v999, %v1038
        %v1055 = vadd.f32 %v1000, %v1039
        %v1056 = vadd.f32 %v1001, %v1040
        %v1057 = vadd.f32 %v1002, %v1041
        %v1058 = vadd.f32 %v1003, %v1042
        %v1059 = vadd.f32 %v1004, %v1043
        %v1060 = vadd.f32 %v1005, %v1044
        %v1061 = vadd.f32 %v1006, %v1045
        %v1062 = vadd.f32 %v1007, %v1046
        %v1063 = vadd.f32 %v1008, %v1047
        %v1064 = vadd.f32 %v1009, %v1048
        %v1065 = vld [vmem:[%s1012 + $0x1] sm:$0xff]
        %v1066 = vld [vmem:[%s1012 + $0x9] sm:$0xff]
        %v1067 = vld [vmem:[%s1012 + $0x19] sm:$0xff]
        %v1068 = vld [vmem:[%s1012 + $0x21] sm:$0xff]
        %v1069 = vld [vmem:[%s1012 + $0x31] sm:$0xff]
        %v1070 = vld [vmem:[%s1012 + $0x39] sm:$0xff]
        %v1071 = vld [vmem:[%s1012 + $0x49] sm:$0xff]
        %v1072 = vld [vmem:[%s1012 + $0x51] sm:$0xff]
        %v1073 = vld [vmem:[%s1012 + $0x61] sm:$0xff]
        %v1074 = vld [vmem:[%s1012 + $0x69] sm:$0xff]
        %v1075 = vld [vmem:[%s1012 + $0x79] sm:$0xff]
        %v1076 = vld [vmem:[%s1012 + $0x81] sm:$0xff]
        %v1077 = vld [vmem:[%s1012 + $0x91] sm:$0xff]
        %v1078 = vld [vmem:[%s1012 + $0x99] sm:$0xff]
        %v1079 = vld [vmem:[%s1012 + $0xa9] sm:$0xff]
        %v1080 = vld [vmem:[%s1012 + $0xb1] sm:$0xff]
        %v1081 = vlaneseq
        %v1082 = vshrl.u32 %v1081, 7
        %v1083 = vsub.s32 0, %v1082
        %v1084 = vrot.slane %v638, %v1083
        %v1085 = vmul.f32 %v1065, %v1084
        %v1086 = vmul.f32 %v1066, %v1084
        %v1087 = vmul.f32 %v1067, %v1084
        %v1088 = vmul.f32 %v1068, %v1084
        %v1089 = vmul.f32 %v1069, %v1084
        %v1090 = vmul.f32 %v1070, %v1084
        %v1091 = vmul.f32 %v1071, %v1084
        %v1092 = vmul.f32 %v1072, %v1084
        %v1093 = vmul.f32 %v1073, %v1084
        %v1094 = vmul.f32 %v1074, %v1084
        %v1095 = vmul.f32 %v1075, %v1084
        %v1096 = vmul.f32 %v1076, %v1084
        %v1097 = vmul.f32 %v1077, %v1084
        %v1098 = vmul.f32 %v1078, %v1084
        %v1099 = vmul.f32 %v1079, %v1084
        %v1100 = vmul.f32 %v1080, %v1084
        %v1101 = vadd.f32 %v1049, %v1085
        %v1102 = vadd.f32 %v1050, %v1086
        %v1103 = vadd.f32 %v1051, %v1087
        %v1104 = vadd.f32 %v1052, %v1088
        %v1105 = vadd.f32 %v1053, %v1089
        %v1106 = vadd.f32 %v1054, %v1090
        %v1107 = vadd.f32 %v1055, %v1091
        %v1108 = vadd.f32 %v1056, %v1092
        %v1109 = vadd.f32 %v1057, %v1093
        %v1110 = vadd.f32 %v1058, %v1094
        %v1111 = vadd.f32 %v1059, %v1095
        %v1112 = vadd.f32 %v1060, %v1096
        %v1113 = vadd.f32 %v1061, %v1097
        %v1114 = vadd.f32 %v1062, %v1098
        %v1115 = vadd.f32 %v1063, %v1099
        %v1116 = vadd.f32 %v1064, %v1100
        %v1117 = vld [vmem:[%s1012 + $0x2] sm:$0xff]
        %v1118 = vld [vmem:[%s1012 + $0xa] sm:$0xff]
        %v1119 = vld [vmem:[%s1012 + $0x1a] sm:$0xff]
        %v1120 = vld [vmem:[%s1012 + $0x22] sm:$0xff]
        %v1121 = vld [vmem:[%s1012 + $0x32] sm:$0xff]
        %v1122 = vld [vmem:[%s1012 + $0x3a] sm:$0xff]
        %v1123 = vld [vmem:[%s1012 + $0x4a] sm:$0xff]
        %v1124 = vld [vmem:[%s1012 + $0x52] sm:$0xff]
        %v1125 = vld [vmem:[%s1012 + $0x62] sm:$0xff]
        %v1126 = vld [vmem:[%s1012 + $0x6a] sm:$0xff]
        %v1127 = vld [vmem:[%s1012 + $0x7a] sm:$0xff]
        %v1128 = vld [vmem:[%s1012 + $0x82] sm:$0xff]
        %v1129 = vld [vmem:[%s1012 + $0x92] sm:$0xff]
        %v1130 = vld [vmem:[%s1012 + $0x9a] sm:$0xff]
        %v1131 = vld [vmem:[%s1012 + $0xaa] sm:$0xff]
        %v1132 = vld [vmem:[%s1012 + $0xb2] sm:$0xff]
        %v1133 = vlaneseq
        %v1134 = vshrl.u32 %v1133, 7
        %v1135 = vsub.s32 1, %v1134
        %v1136 = vrot.slane %v638, %v1135
        %v1137 = vmul.f32 %v1117, %v1136
        %v1138 = vmul.f32 %v1118, %v1136
        %v1139 = vmul.f32 %v1119, %v1136
        %v1140 = vmul.f32 %v1120, %v1136
        %v1141 = vmul.f32 %v1121, %v1136
        %v1142 = vmul.f32 %v1122, %v1136
        %v1143 = vmul.f32 %v1123, %v1136
        %v1144 = vmul.f32 %v1124, %v1136
        %v1145 = vmul.f32 %v1125, %v1136
        %v1146 = vmul.f32 %v1126, %v1136
        %v1147 = vmul.f32 %v1127, %v1136
        %v1148 = vmul.f32 %v1128, %v1136
        %v1149 = vmul.f32 %v1129, %v1136
        %v1150 = vmul.f32 %v1130, %v1136
        %v1151 = vmul.f32 %v1131, %v1136
        %v1152 = vmul.f32 %v1132, %v1136
        %v1153 = vadd.f32 %v1101, %v1137
        %v1154 = vadd.f32 %v1102, %v1138
        %v1155 = vadd.f32 %v1103, %v1139
        %v1156 = vadd.f32 %v1104, %v1140
        %v1157 = vadd.f32 %v1105, %v1141
        %v1158 = vadd.f32 %v1106, %v1142
        %v1159 = vadd.f32 %v1107, %v1143
        %v1160 = vadd.f32 %v1108, %v1144
        %v1161 = vadd.f32 %v1109, %v1145
        %v1162 = vadd.f32 %v1110, %v1146
        %v1163 = vadd.f32 %v1111, %v1147
        %v1164 = vadd.f32 %v1112, %v1148
        %v1165 = vadd.f32 %v1113, %v1149
        %v1166 = vadd.f32 %v1114, %v1150
        %v1167 = vadd.f32 %v1115, %v1151
        %v1168 = vadd.f32 %v1116, %v1152
        %v1169 = vld [vmem:[%s1012 + $0x3] sm:$0xff]
        %v1170 = vld [vmem:[%s1012 + $0xb] sm:$0xff]
        %v1171 = vld [vmem:[%s1012 + $0x1b] sm:$0xff]
        %v1172 = vld [vmem:[%s1012 + $0x23] sm:$0xff]
        %v1173 = vld [vmem:[%s1012 + $0x33] sm:$0xff]
        %v1174 = vld [vmem:[%s1012 + $0x3b] sm:$0xff]
        %v1175 = vld [vmem:[%s1012 + $0x4b] sm:$0xff]
        %v1176 = vld [vmem:[%s1012 + $0x53] sm:$0xff]
        %v1177 = vld [vmem:[%s1012 + $0x63] sm:$0xff]
        %v1178 = vld [vmem:[%s1012 + $0x6b] sm:$0xff]
        %v1179 = vld [vmem:[%s1012 + $0x7b] sm:$0xff]
        %v1180 = vld [vmem:[%s1012 + $0x83] sm:$0xff]
        %v1181 = vld [vmem:[%s1012 + $0x93] sm:$0xff]
        %v1182 = vld [vmem:[%s1012 + $0x9b] sm:$0xff]
        %v1183 = vld [vmem:[%s1012 + $0xab] sm:$0xff]
        %v1184 = vld [vmem:[%s1012 + $0xb3] sm:$0xff]
        %v1185 = vlaneseq
        %v1186 = vshrl.u32 %v1185, 7
        %v1187 = vsub.s32 2, %v1186
        %v1188 = vrot.slane %v638, %v1187
        %v1189 = vmul.f32 %v1169, %v1188
        %v1190 = vmul.f32 %v1170, %v1188
        %v1191 = vmul.f32 %v1171, %v1188
        %v1192 = vmul.f32 %v1172, %v1188
        %v1193 = vmul.f32 %v1173, %v1188
        %v1194 = vmul.f32 %v1174, %v1188
        %v1195 = vmul.f32 %v1175, %v1188
        %v1196 = vmul.f32 %v1176, %v1188
        %v1197 = vmul.f32 %v1177, %v1188
        %v1198 = vmul.f32 %v1178, %v1188
        %v1199 = vmul.f32 %v1179, %v1188
        %v1200 = vmul.f32 %v1180, %v1188
        %v1201 = vmul.f32 %v1181, %v1188
        %v1202 = vmul.f32 %v1182, %v1188
        %v1203 = vmul.f32 %v1183, %v1188
        %v1204 = vmul.f32 %v1184, %v1188
        %v1205 = vadd.f32 %v1153, %v1189
        %v1206 = vadd.f32 %v1154, %v1190
        %v1207 = vadd.f32 %v1155, %v1191
        %v1208 = vadd.f32 %v1156, %v1192
        %v1209 = vadd.f32 %v1157, %v1193
        %v1210 = vadd.f32 %v1158, %v1194
        %v1211 = vadd.f32 %v1159, %v1195
        %v1212 = vadd.f32 %v1160, %v1196
        %v1213 = vadd.f32 %v1161, %v1197
        %v1214 = vadd.f32 %v1162, %v1198
        %v1215 = vadd.f32 %v1163, %v1199
        %v1216 = vadd.f32 %v1164, %v1200
        %v1217 = vadd.f32 %v1165, %v1201
        %v1218 = vadd.f32 %v1166, %v1202
        %v1219 = vadd.f32 %v1167, %v1203
        %v1220 = vadd.f32 %v1168, %v1204
        %v1221 = vld [vmem:[%s1012 + $0x4] sm:$0xff]
        %v1222 = vld [vmem:[%s1012 + $0xc] sm:$0xff]
        %v1223 = vld [vmem:[%s1012 + $0x1c] sm:$0xff]
        %v1224 = vld [vmem:[%s1012 + $0x24] sm:$0xff]
        %v1225 = vld [vmem:[%s1012 + $0x34] sm:$0xff]
        %v1226 = vld [vmem:[%s1012 + $0x3c] sm:$0xff]
        %v1227 = vld [vmem:[%s1012 + $0x4c] sm:$0xff]
        %v1228 = vld [vmem:[%s1012 + $0x54] sm:$0xff]
        %v1229 = vld [vmem:[%s1012 + $0x64] sm:$0xff]
        %v1230 = vld [vmem:[%s1012 + $0x6c] sm:$0xff]
        %v1231 = vld [vmem:[%s1012 + $0x7c] sm:$0xff]
        %v1232 = vld [vmem:[%s1012 + $0x84] sm:$0xff]
        %v1233 = vld [vmem:[%s1012 + $0x94] sm:$0xff]
        %v1234 = vld [vmem:[%s1012 + $0x9c] sm:$0xff]
        %v1235 = vld [vmem:[%s1012 + $0xac] sm:$0xff]
        %v1236 = vld [vmem:[%s1012 + $0xb4] sm:$0xff]
        %v1237 = vlaneseq
        %v1238 = vshrl.u32 %v1237, 7
        %v1239 = vsub.s32 3, %v1238
        %v1240 = vrot.slane %v638, %v1239
        %v1241 = vmul.f32 %v1221, %v1240
        %v1242 = vmul.f32 %v1222, %v1240
        %v1243 = vmul.f32 %v1223, %v1240
        %v1244 = vmul.f32 %v1224, %v1240
        %v1245 = vmul.f32 %v1225, %v1240
        %v1246 = vmul.f32 %v1226, %v1240
        %v1247 = vmul.f32 %v1227, %v1240
        %v1248 = vmul.f32 %v1228, %v1240
        %v1249 = vmul.f32 %v1229, %v1240
        %v1250 = vmul.f32 %v1230, %v1240
        %v1251 = vmul.f32 %v1231, %v1240
        %v1252 = vmul.f32 %v1232, %v1240
        %v1253 = vmul.f32 %v1233, %v1240
        %v1254 = vmul.f32 %v1234, %v1240
        %v1255 = vmul.f32 %v1235, %v1240
        %v1256 = vmul.f32 %v1236, %v1240
        %v1257 = vadd.f32 %v1205, %v1241
        %v1258 = vadd.f32 %v1206, %v1242
        %v1259 = vadd.f32 %v1207, %v1243
        %v1260 = vadd.f32 %v1208, %v1244
        %v1261 = vadd.f32 %v1209, %v1245
        %v1262 = vadd.f32 %v1210, %v1246
        %v1263 = vadd.f32 %v1211, %v1247
        %v1264 = vadd.f32 %v1212, %v1248
        %v1265 = vadd.f32 %v1213, %v1249
        %v1266 = vadd.f32 %v1214, %v1250
        %v1267 = vadd.f32 %v1215, %v1251
        %v1268 = vadd.f32 %v1216, %v1252
        %v1269 = vadd.f32 %v1217, %v1253
        %v1270 = vadd.f32 %v1218, %v1254
        %v1271 = vadd.f32 %v1219, %v1255
        %v1272 = vadd.f32 %v1220, %v1256
        %v1273 = vld [vmem:[%s1012 + $0x5] sm:$0xff]
        %v1274 = vld [vmem:[%s1012 + $0xd] sm:$0xff]
        %v1275 = vld [vmem:[%s1012 + $0x1d] sm:$0xff]
        %v1276 = vld [vmem:[%s1012 + $0x25] sm:$0xff]
        %v1277 = vld [vmem:[%s1012 + $0x35] sm:$0xff]
        %v1278 = vld [vmem:[%s1012 + $0x3d] sm:$0xff]
        %v1279 = vld [vmem:[%s1012 + $0x4d] sm:$0xff]
        %v1280 = vld [vmem:[%s1012 + $0x55] sm:$0xff]
        %v1281 = vld [vmem:[%s1012 + $0x65] sm:$0xff]
        %v1282 = vld [vmem:[%s1012 + $0x6d] sm:$0xff]
        %v1283 = vld [vmem:[%s1012 + $0x7d] sm:$0xff]
        %v1284 = vld [vmem:[%s1012 + $0x85] sm:$0xff]
        %v1285 = vld [vmem:[%s1012 + $0x95] sm:$0xff]
        %v1286 = vld [vmem:[%s1012 + $0x9d] sm:$0xff]
        %v1287 = vld [vmem:[%s1012 + $0xad] sm:$0xff]
        %v1288 = vld [vmem:[%s1012 + $0xb5] sm:$0xff]
        %v1289 = vlaneseq
        %v1290 = vshrl.u32 %v1289, 7
        %v1291 = vsub.s32 4, %v1290
        %v1292 = vrot.slane %v638, %v1291
        %v1293 = vmul.f32 %v1273, %v1292
        %v1294 = vmul.f32 %v1274, %v1292
        %v1295 = vmul.f32 %v1275, %v1292
        %v1296 = vmul.f32 %v1276, %v1292
        %v1297 = vmul.f32 %v1277, %v1292
        %v1298 = vmul.f32 %v1278, %v1292
        %v1299 = vmul.f32 %v1279, %v1292
        %v1300 = vmul.f32 %v1280, %v1292
        %v1301 = vmul.f32 %v1281, %v1292
        %v1302 = vmul.f32 %v1282, %v1292
        %v1303 = vmul.f32 %v1283, %v1292
        %v1304 = vmul.f32 %v1284, %v1292
        %v1305 = vmul.f32 %v1285, %v1292
        %v1306 = vmul.f32 %v1286, %v1292
        %v1307 = vmul.f32 %v1287, %v1292
        %v1308 = vmul.f32 %v1288, %v1292
        %v1309 = vadd.f32 %v1257, %v1293
        %v1310 = vadd.f32 %v1258, %v1294
        %v1311 = vadd.f32 %v1259, %v1295
        %v1312 = vadd.f32 %v1260, %v1296
        %v1313 = vadd.f32 %v1261, %v1297
        %v1314 = vadd.f32 %v1262, %v1298
        %v1315 = vadd.f32 %v1263, %v1299
        %v1316 = vadd.f32 %v1264, %v1300
        %v1317 = vadd.f32 %v1265, %v1301
        %v1318 = vadd.f32 %v1266, %v1302
        %v1319 = vadd.f32 %v1267, %v1303
        %v1320 = vadd.f32 %v1268, %v1304
        %v1321 = vadd.f32 %v1269, %v1305
        %v1322 = vadd.f32 %v1270, %v1306
        %v1323 = vadd.f32 %v1271, %v1307
        %v1324 = vadd.f32 %v1272, %v1308
        %v1325 = vld [vmem:[%s1012 + $0x6] sm:$0xff]
        %v1326 = vld [vmem:[%s1012 + $0xe] sm:$0xff]
        %v1327 = vld [vmem:[%s1012 + $0x1e] sm:$0xff]
        %v1328 = vld [vmem:[%s1012 + $0x26] sm:$0xff]
        %v1329 = vld [vmem:[%s1012 + $0x36] sm:$0xff]
        %v1330 = vld [vmem:[%s1012 + $0x3e] sm:$0xff]
        %v1331 = vld [vmem:[%s1012 + $0x4e] sm:$0xff]
        %v1332 = vld [vmem:[%s1012 + $0x56] sm:$0xff]
        %v1333 = vld [vmem:[%s1012 + $0x66] sm:$0xff]
        %v1334 = vld [vmem:[%s1012 + $0x6e] sm:$0xff]
        %v1335 = vld [vmem:[%s1012 + $0x7e] sm:$0xff]
        %v1336 = vld [vmem:[%s1012 + $0x86] sm:$0xff]
        %v1337 = vld [vmem:[%s1012 + $0x96] sm:$0xff]
        %v1338 = vld [vmem:[%s1012 + $0x9e] sm:$0xff]
        %v1339 = vld [vmem:[%s1012 + $0xae] sm:$0xff]
        %v1340 = vld [vmem:[%s1012 + $0xb6] sm:$0xff]
        %v1341 = vlaneseq
        %v1342 = vshrl.u32 %v1341, 7
        %v1343 = vsub.s32 5, %v1342
        %v1344 = vrot.slane %v638, %v1343
        %v1345 = vmul.f32 %v1325, %v1344
        %v1346 = vmul.f32 %v1326, %v1344
        %v1347 = vmul.f32 %v1327, %v1344
        %v1348 = vmul.f32 %v1328, %v1344
        %v1349 = vmul.f32 %v1329, %v1344
        %v1350 = vmul.f32 %v1330, %v1344
        %v1351 = vmul.f32 %v1331, %v1344
        %v1352 = vmul.f32 %v1332, %v1344
        %v1353 = vmul.f32 %v1333, %v1344
        %v1354 = vmul.f32 %v1334, %v1344
        %v1355 = vmul.f32 %v1335, %v1344
        %v1356 = vmul.f32 %v1336, %v1344
        %v1357 = vmul.f32 %v1337, %v1344
        %v1358 = vmul.f32 %v1338, %v1344
        %v1359 = vmul.f32 %v1339, %v1344
        %v1360 = vmul.f32 %v1340, %v1344
        %v1361 = vadd.f32 %v1309, %v1345
        %v1362 = vadd.f32 %v1310, %v1346
        %v1363 = vadd.f32 %v1311, %v1347
        %v1364 = vadd.f32 %v1312, %v1348
        %v1365 = vadd.f32 %v1313, %v1349
        %v1366 = vadd.f32 %v1314, %v1350
        %v1367 = vadd.f32 %v1315, %v1351
        %v1368 = vadd.f32 %v1316, %v1352
        %v1369 = vadd.f32 %v1317, %v1353
        %v1370 = vadd.f32 %v1318, %v1354
        %v1371 = vadd.f32 %v1319, %v1355
        %v1372 = vadd.f32 %v1320, %v1356
        %v1373 = vadd.f32 %v1321, %v1357
        %v1374 = vadd.f32 %v1322, %v1358
        %v1375 = vadd.f32 %v1323, %v1359
        %v1376 = vadd.f32 %v1324, %v1360
        %s1377 = sadd.s32 %s636, 2
        %s1378 = smul.u32 %s1377, 24
        %s1379 = scalar_lea.vmem [#allocation2], %s1378
        %v1380 = vld [vmem:[%s1379] sm:$0xff]
        %v1381 = vld [vmem:[%s1379 + $0x8] sm:$0xff]
        %v1382 = vld [vmem:[%s1379 + $0x18] sm:$0xff]
        %v1383 = vld [vmem:[%s1379 + $0x20] sm:$0xff]
        %v1384 = vld [vmem:[%s1379 + $0x30] sm:$0xff]
        %v1385 = vld [vmem:[%s1379 + $0x38] sm:$0xff]
        %v1386 = vld [vmem:[%s1379 + $0x48] sm:$0xff]
        %v1387 = vld [vmem:[%s1379 + $0x50] sm:$0xff]
        %v1388 = vld [vmem:[%s1379 + $0x60] sm:$0xff]
        %v1389 = vld [vmem:[%s1379 + $0x68] sm:$0xff]
        %v1390 = vld [vmem:[%s1379 + $0x78] sm:$0xff]
        %v1391 = vld [vmem:[%s1379 + $0x80] sm:$0xff]
        %v1392 = vld [vmem:[%s1379 + $0x90] sm:$0xff]
        %v1393 = vld [vmem:[%s1379 + $0x98] sm:$0xff]
        %v1394 = vld [vmem:[%s1379 + $0xa8] sm:$0xff]
        %v1395 = vld [vmem:[%s1379 + $0xb0] sm:$0xff]
        %v1396 = vlaneseq
        %v1397 = vshrl.u32 %v1396, 7
        %v1398 = vsub.s32 6, %v1397
        %v1399 = vrot.slane %v638, %v1398
        %v1400 = vmul.f32 %v1380, %v1399
        %v1401 = vmul.f32 %v1381, %v1399
        %v1402 = vmul.f32 %v1382, %v1399
        %v1403 = vmul.f32 %v1383, %v1399
        %v1404 = vmul.f32 %v1384, %v1399
        %v1405 = vmul.f32 %v1385, %v1399
        %v1406 = vmul.f32 %v1386, %v1399
        %v1407 = vmul.f32 %v1387, %v1399
        %v1408 = vmul.f32 %v1388, %v1399
        %v1409 = vmul.f32 %v1389, %v1399
        %v1410 = vmul.f32 %v1390, %v1399
        %v1411 = vmul.f32 %v1391, %v1399
        %v1412 = vmul.f32 %v1392, %v1399
        %v1413 = vmul.f32 %v1393, %v1399
        %v1414 = vmul.f32 %v1394, %v1399
        %v1415 = vmul.f32 %v1395, %v1399
        %v1416 = vadd.f32 %v1361, %v1400
        %v1417 = vadd.f32 %v1362, %v1401
        %v1418 = vadd.f32 %v1363, %v1402
        %v1419 = vadd.f32 %v1364, %v1403
        %v1420 = vadd.f32 %v1365, %v1404
        %v1421 = vadd.f32 %v1366, %v1405
        %v1422 = vadd.f32 %v1367, %v1406
        %v1423 = vadd.f32 %v1368, %v1407
        %v1424 = vadd.f32 %v1369, %v1408
        %v1425 = vadd.f32 %v1370, %v1409
        %v1426 = vadd.f32 %v1371, %v1410
        %v1427 = vadd.f32 %v1372, %v1411
        %v1428 = vadd.f32 %v1373, %v1412
        %v1429 = vadd.f32 %v1374, %v1413
        %v1430 = vadd.f32 %v1375, %v1414
        %v1431 = vadd.f32 %v1376, %v1415
        %v1432 = vld [vmem:[%s1379 + $0x1] sm:$0xff]
        %v1433 = vld [vmem:[%s1379 + $0x9] sm:$0xff]
        %v1434 = vld [vmem:[%s1379 + $0x19] sm:$0xff]
        %v1435 = vld [vmem:[%s1379 + $0x21] sm:$0xff]
        %v1436 = vld [vmem:[%s1379 + $0x31] sm:$0xff]
        %v1437 = vld [vmem:[%s1379 + $0x39] sm:$0xff]
        %v1438 = vld [vmem:[%s1379 + $0x49] sm:$0xff]
        %v1439 = vld [vmem:[%s1379 + $0x51] sm:$0xff]
        %v1440 = vld [vmem:[%s1379 + $0x61] sm:$0xff]
        %v1441 = vld [vmem:[%s1379 + $0x69] sm:$0xff]
        %v1442 = vld [vmem:[%s1379 + $0x79] sm:$0xff]
        %v1443 = vld [vmem:[%s1379 + $0x81] sm:$0xff]
        %v1444 = vld [vmem:[%s1379 + $0x91] sm:$0xff]
        %v1445 = vld [vmem:[%s1379 + $0x99] sm:$0xff]
        %v1446 = vld [vmem:[%s1379 + $0xa9] sm:$0xff]
        %v1447 = vld [vmem:[%s1379 + $0xb1] sm:$0xff]
        %v1448 = vlaneseq
        %v1449 = vshrl.u32 %v1448, 7
        %v1450 = vsub.s32 7, %v1449
        %v1451 = vrot.slane %v638, %v1450
        %v1452 = vmul.f32 %v1432, %v1451
        %v1453 = vmul.f32 %v1433, %v1451
        %v1454 = vmul.f32 %v1434, %v1451
        %v1455 = vmul.f32 %v1435, %v1451
        %v1456 = vmul.f32 %v1436, %v1451
        %v1457 = vmul.f32 %v1437, %v1451
        %v1458 = vmul.f32 %v1438, %v1451
        %v1459 = vmul.f32 %v1439, %v1451
        %v1460 = vmul.f32 %v1440, %v1451
        %v1461 = vmul.f32 %v1441, %v1451
        %v1462 = vmul.f32 %v1442, %v1451
        %v1463 = vmul.f32 %v1443, %v1451
        %v1464 = vmul.f32 %v1444, %v1451
        %v1465 = vmul.f32 %v1445, %v1451
        %v1466 = vmul.f32 %v1446, %v1451
        %v1467 = vmul.f32 %v1447, %v1451
        %v1468 = vadd.f32 %v1416, %v1452
        %v1469 = vadd.f32 %v1417, %v1453
        %v1470 = vadd.f32 %v1418, %v1454
        %v1471 = vadd.f32 %v1419, %v1455
        %v1472 = vadd.f32 %v1420, %v1456
        %v1473 = vadd.f32 %v1421, %v1457
        %v1474 = vadd.f32 %v1422, %v1458
        %v1475 = vadd.f32 %v1423, %v1459
        %v1476 = vadd.f32 %v1424, %v1460
        %v1477 = vadd.f32 %v1425, %v1461
        %v1478 = vadd.f32 %v1426, %v1462
        %v1479 = vadd.f32 %v1427, %v1463
        %v1480 = vadd.f32 %v1428, %v1464
        %v1481 = vadd.f32 %v1429, %v1465
        %v1482 = vadd.f32 %v1430, %v1466
        %v1483 = vadd.f32 %v1431, %v1467
        %v1484 = vld [vmem:[%s1379 + $0x2] sm:$0xff]
        %v1485 = vld [vmem:[%s1379 + $0xa] sm:$0xff]
        %v1486 = vld [vmem:[%s1379 + $0x1a] sm:$0xff]
        %v1487 = vld [vmem:[%s1379 + $0x22] sm:$0xff]
        %v1488 = vld [vmem:[%s1379 + $0x32] sm:$0xff]
        %v1489 = vld [vmem:[%s1379 + $0x3a] sm:$0xff]
        %v1490 = vld [vmem:[%s1379 + $0x4a] sm:$0xff]
        %v1491 = vld [vmem:[%s1379 + $0x52] sm:$0xff]
        %v1492 = vld [vmem:[%s1379 + $0x62] sm:$0xff]
        %v1493 = vld [vmem:[%s1379 + $0x6a] sm:$0xff]
        %v1494 = vld [vmem:[%s1379 + $0x7a] sm:$0xff]
        %v1495 = vld [vmem:[%s1379 + $0x82] sm:$0xff]
        %v1496 = vld [vmem:[%s1379 + $0x92] sm:$0xff]
        %v1497 = vld [vmem:[%s1379 + $0x9a] sm:$0xff]
        %v1498 = vld [vmem:[%s1379 + $0xaa] sm:$0xff]
        %v1499 = vld [vmem:[%s1379 + $0xb2] sm:$0xff]
        %v1500 = vlaneseq
        %v1501 = vshrl.u32 %v1500, 7
        %v1502 = vsub.s32 0, %v1501
        %v1503 = vrot.slane %v639, %v1502
        %v1504 = vmul.f32 %v1484, %v1503
        %v1505 = vmul.f32 %v1485, %v1503
        %v1506 = vmul.f32 %v1486, %v1503
        %v1507 = vmul.f32 %v1487, %v1503
        %v1508 = vmul.f32 %v1488, %v1503
        %v1509 = vmul.f32 %v1489, %v1503
        %v1510 = vmul.f32 %v1490, %v1503
        %v1511 = vmul.f32 %v1491, %v1503
        %v1512 = vmul.f32 %v1492, %v1503
        %v1513 = vmul.f32 %v1493, %v1503
        %v1514 = vmul.f32 %v1494, %v1503
        %v1515 = vmul.f32 %v1495, %v1503
        %v1516 = vmul.f32 %v1496, %v1503
        %v1517 = vmul.f32 %v1497, %v1503
        %v1518 = vmul.f32 %v1498, %v1503
        %v1519 = vmul.f32 %v1499, %v1503
        %v1520 = vadd.f32 %v1468, %v1504
        %v1521 = vadd.f32 %v1469, %v1505
        %v1522 = vadd.f32 %v1470, %v1506
        %v1523 = vadd.f32 %v1471, %v1507
        %v1524 = vadd.f32 %v1472, %v1508
        %v1525 = vadd.f32 %v1473, %v1509
        %v1526 = vadd.f32 %v1474, %v1510
        %v1527 = vadd.f32 %v1475, %v1511
        %v1528 = vadd.f32 %v1476, %v1512
        %v1529 = vadd.f32 %v1477, %v1513
        %v1530 = vadd.f32 %v1478, %v1514
        %v1531 = vadd.f32 %v1479, %v1515
        %v1532 = vadd.f32 %v1480, %v1516
        %v1533 = vadd.f32 %v1481, %v1517
        %v1534 = vadd.f32 %v1482, %v1518
        %v1535 = vadd.f32 %v1483, %v1519
        %v1536 = vld [vmem:[%s1379 + $0x3] sm:$0xff]
        %v1537 = vld [vmem:[%s1379 + $0xb] sm:$0xff]
        %v1538 = vld [vmem:[%s1379 + $0x1b] sm:$0xff]
        %v1539 = vld [vmem:[%s1379 + $0x23] sm:$0xff]
        %v1540 = vld [vmem:[%s1379 + $0x33] sm:$0xff]
        %v1541 = vld [vmem:[%s1379 + $0x3b] sm:$0xff]
        %v1542 = vld [vmem:[%s1379 + $0x4b] sm:$0xff]
        %v1543 = vld [vmem:[%s1379 + $0x53] sm:$0xff]
        %v1544 = vld [vmem:[%s1379 + $0x63] sm:$0xff]
        %v1545 = vld [vmem:[%s1379 + $0x6b] sm:$0xff]
        %v1546 = vld [vmem:[%s1379 + $0x7b] sm:$0xff]
        %v1547 = vld [vmem:[%s1379 + $0x83] sm:$0xff]
        %v1548 = vld [vmem:[%s1379 + $0x93] sm:$0xff]
        %v1549 = vld [vmem:[%s1379 + $0x9b] sm:$0xff]
        %v1550 = vld [vmem:[%s1379 + $0xab] sm:$0xff]
        %v1551 = vld [vmem:[%s1379 + $0xb3] sm:$0xff]
        %v1552 = vlaneseq
        %v1553 = vshrl.u32 %v1552, 7
        %v1554 = vsub.s32 1, %v1553
        %v1555 = vrot.slane %v639, %v1554
        %v1556 = vmul.f32 %v1536, %v1555
        %v1557 = vmul.f32 %v1537, %v1555
        %v1558 = vmul.f32 %v1538, %v1555
        %v1559 = vmul.f32 %v1539, %v1555
        %v1560 = vmul.f32 %v1540, %v1555
        %v1561 = vmul.f32 %v1541, %v1555
        %v1562 = vmul.f32 %v1542, %v1555
        %v1563 = vmul.f32 %v1543, %v1555
        %v1564 = vmul.f32 %v1544, %v1555
        %v1565 = vmul.f32 %v1545, %v1555
        %v1566 = vmul.f32 %v1546, %v1555
        %v1567 = vmul.f32 %v1547, %v1555
        %v1568 = vmul.f32 %v1548, %v1555
        %v1569 = vmul.f32 %v1549, %v1555
        %v1570 = vmul.f32 %v1550, %v1555
        %v1571 = vmul.f32 %v1551, %v1555
        %v1572 = vadd.f32 %v1520, %v1556
        %v1573 = vadd.f32 %v1521, %v1557
        %v1574 = vadd.f32 %v1522, %v1558
        %v1575 = vadd.f32 %v1523, %v1559
        %v1576 = vadd.f32 %v1524, %v1560
        %v1577 = vadd.f32 %v1525, %v1561
        %v1578 = vadd.f32 %v1526, %v1562
        %v1579 = vadd.f32 %v1527, %v1563
        %v1580 = vadd.f32 %v1528, %v1564
        %v1581 = vadd.f32 %v1529, %v1565
        %v1582 = vadd.f32 %v1530, %v1566
        %v1583 = vadd.f32 %v1531, %v1567
        %v1584 = vadd.f32 %v1532, %v1568
        %v1585 = vadd.f32 %v1533, %v1569
        %v1586 = vadd.f32 %v1534, %v1570
        %v1587 = vadd.f32 %v1535, %v1571
        %v1588 = vld [vmem:[%s1379 + $0x4] sm:$0xff]
        %v1589 = vld [vmem:[%s1379 + $0xc] sm:$0xff]
        %v1590 = vld [vmem:[%s1379 + $0x1c] sm:$0xff]
        %v1591 = vld [vmem:[%s1379 + $0x24] sm:$0xff]
        %v1592 = vld [vmem:[%s1379 + $0x34] sm:$0xff]
        %v1593 = vld [vmem:[%s1379 + $0x3c] sm:$0xff]
        %v1594 = vld [vmem:[%s1379 + $0x4c] sm:$0xff]
        %v1595 = vld [vmem:[%s1379 + $0x54] sm:$0xff]
        %v1596 = vld [vmem:[%s1379 + $0x64] sm:$0xff]
        %v1597 = vld [vmem:[%s1379 + $0x6c] sm:$0xff]
        %v1598 = vld [vmem:[%s1379 + $0x7c] sm:$0xff]
        %v1599 = vld [vmem:[%s1379 + $0x84] sm:$0xff]
        %v1600 = vld [vmem:[%s1379 + $0x94] sm:$0xff]
        %v1601 = vld [vmem:[%s1379 + $0x9c] sm:$0xff]
        %v1602 = vld [vmem:[%s1379 + $0xac] sm:$0xff]
        %v1603 = vld [vmem:[%s1379 + $0xb4] sm:$0xff]
        %v1604 = vlaneseq
        %v1605 = vshrl.u32 %v1604, 7
        %v1606 = vsub.s32 2, %v1605
        %v1607 = vrot.slane %v639, %v1606
        %v1608 = vmul.f32 %v1588, %v1607
        %v1609 = vmul.f32 %v1589, %v1607
        %v1610 = vmul.f32 %v1590, %v1607
        %v1611 = vmul.f32 %v1591, %v1607
        %v1612 = vmul.f32 %v1592, %v1607
        %v1613 = vmul.f32 %v1593, %v1607
        %v1614 = vmul.f32 %v1594, %v1607
        %v1615 = vmul.f32 %v1595, %v1607
        %v1616 = vmul.f32 %v1596, %v1607
        %v1617 = vmul.f32 %v1597, %v1607
        %v1618 = vmul.f32 %v1598, %v1607
        %v1619 = vmul.f32 %v1599, %v1607
        %v1620 = vmul.f32 %v1600, %v1607
        %v1621 = vmul.f32 %v1601, %v1607
        %v1622 = vmul.f32 %v1602, %v1607
        %v1623 = vmul.f32 %v1603, %v1607
        %v1624 = vadd.f32 %v1572, %v1608
        %v1625 = vadd.f32 %v1573, %v1609
        %v1626 = vadd.f32 %v1574, %v1610
        %v1627 = vadd.f32 %v1575, %v1611
        %v1628 = vadd.f32 %v1576, %v1612
        %v1629 = vadd.f32 %v1577, %v1613
        %v1630 = vadd.f32 %v1578, %v1614
        %v1631 = vadd.f32 %v1579, %v1615
        %v1632 = vadd.f32 %v1580, %v1616
        %v1633 = vadd.f32 %v1581, %v1617
        %v1634 = vadd.f32 %v1582, %v1618
        %v1635 = vadd.f32 %v1583, %v1619
        %v1636 = vadd.f32 %v1584, %v1620
        %v1637 = vadd.f32 %v1585, %v1621
        %v1638 = vadd.f32 %v1586, %v1622
        %v1639 = vadd.f32 %v1587, %v1623
        %v1640 = vld [vmem:[%s1379 + $0x5] sm:$0xff]
        %v1641 = vld [vmem:[%s1379 + $0xd] sm:$0xff]
        %v1642 = vld [vmem:[%s1379 + $0x1d] sm:$0xff]
        %v1643 = vld [vmem:[%s1379 + $0x25] sm:$0xff]
        %v1644 = vld [vmem:[%s1379 + $0x35] sm:$0xff]
        %v1645 = vld [vmem:[%s1379 + $0x3d] sm:$0xff]
        %v1646 = vld [vmem:[%s1379 + $0x4d] sm:$0xff]
        %v1647 = vld [vmem:[%s1379 + $0x55] sm:$0xff]
        %v1648 = vld [vmem:[%s1379 + $0x65] sm:$0xff]
        %v1649 = vld [vmem:[%s1379 + $0x6d] sm:$0xff]
        %v1650 = vld [vmem:[%s1379 + $0x7d] sm:$0xff]
        %v1651 = vld [vmem:[%s1379 + $0x85] sm:$0xff]
        %v1652 = vld [vmem:[%s1379 + $0x95] sm:$0xff]
        %v1653 = vld [vmem:[%s1379 + $0x9d] sm:$0xff]
        %v1654 = vld [vmem:[%s1379 + $0xad] sm:$0xff]
        %v1655 = vld [vmem:[%s1379 + $0xb5] sm:$0xff]
        %v1656 = vlaneseq
        %v1657 = vshrl.u32 %v1656, 7
        %v1658 = vsub.s32 3, %v1657
        %v1659 = vrot.slane %v639, %v1658
        %v1660 = vmul.f32 %v1640, %v1659
        %v1661 = vmul.f32 %v1641, %v1659
        %v1662 = vmul.f32 %v1642, %v1659
        %v1663 = vmul.f32 %v1643, %v1659
        %v1664 = vmul.f32 %v1644, %v1659
        %v1665 = vmul.f32 %v1645, %v1659
        %v1666 = vmul.f32 %v1646, %v1659
        %v1667 = vmul.f32 %v1647, %v1659
        %v1668 = vmul.f32 %v1648, %v1659
        %v1669 = vmul.f32 %v1649, %v1659
        %v1670 = vmul.f32 %v1650, %v1659
        %v1671 = vmul.f32 %v1651, %v1659
        %v1672 = vmul.f32 %v1652, %v1659
        %v1673 = vmul.f32 %v1653, %v1659
        %v1674 = vmul.f32 %v1654, %v1659
        %v1675 = vmul.f32 %v1655, %v1659
        %v1676 = vadd.f32 %v1624, %v1660
        %v1677 = vadd.f32 %v1625, %v1661
        %v1678 = vadd.f32 %v1626, %v1662
        %v1679 = vadd.f32 %v1627, %v1663
        %v1680 = vadd.f32 %v1628, %v1664
        %v1681 = vadd.f32 %v1629, %v1665
        %v1682 = vadd.f32 %v1630, %v1666
        %v1683 = vadd.f32 %v1631, %v1667
        %v1684 = vadd.f32 %v1632, %v1668
        %v1685 = vadd.f32 %v1633, %v1669
        %v1686 = vadd.f32 %v1634, %v1670
        %v1687 = vadd.f32 %v1635, %v1671
        %v1688 = vadd.f32 %v1636, %v1672
        %v1689 = vadd.f32 %v1637, %v1673
        %v1690 = vadd.f32 %v1638, %v1674
        %v1691 = vadd.f32 %v1639, %v1675
        %v1692 = vld [vmem:[%s1379 + $0x6] sm:$0xff]
        %v1693 = vld [vmem:[%s1379 + $0xe] sm:$0xff]
        %v1694 = vld [vmem:[%s1379 + $0x1e] sm:$0xff]
        %v1695 = vld [vmem:[%s1379 + $0x26] sm:$0xff]
        %v1696 = vld [vmem:[%s1379 + $0x36] sm:$0xff]
        %v1697 = vld [vmem:[%s1379 + $0x3e] sm:$0xff]
        %v1698 = vld [vmem:[%s1379 + $0x4e] sm:$0xff]
        %v1699 = vld [vmem:[%s1379 + $0x56] sm:$0xff]
        %v1700 = vld [vmem:[%s1379 + $0x66] sm:$0xff]
        %v1701 = vld [vmem:[%s1379 + $0x6e] sm:$0xff]
        %v1702 = vld [vmem:[%s1379 + $0x7e] sm:$0xff]
        %v1703 = vld [vmem:[%s1379 + $0x86] sm:$0xff]
        %v1704 = vld [vmem:[%s1379 + $0x96] sm:$0xff]
        %v1705 = vld [vmem:[%s1379 + $0x9e] sm:$0xff]
        %v1706 = vld [vmem:[%s1379 + $0xae] sm:$0xff]
        %v1707 = vld [vmem:[%s1379 + $0xb6] sm:$0xff]
        %v1708 = vlaneseq
        %v1709 = vshrl.u32 %v1708, 7
        %v1710 = vsub.s32 4, %v1709
        %v1711 = vrot.slane %v639, %v1710
        %v1712 = vmul.f32 %v1692, %v1711
        %v1713 = vmul.f32 %v1693, %v1711
        %v1714 = vmul.f32 %v1694, %v1711
        %v1715 = vmul.f32 %v1695, %v1711
        %v1716 = vmul.f32 %v1696, %v1711
        %v1717 = vmul.f32 %v1697, %v1711
        %v1718 = vmul.f32 %v1698, %v1711
        %v1719 = vmul.f32 %v1699, %v1711
        %v1720 = vmul.f32 %v1700, %v1711
        %v1721 = vmul.f32 %v1701, %v1711
        %v1722 = vmul.f32 %v1702, %v1711
        %v1723 = vmul.f32 %v1703, %v1711
        %v1724 = vmul.f32 %v1704, %v1711
        %v1725 = vmul.f32 %v1705, %v1711
        %v1726 = vmul.f32 %v1706, %v1711
        %v1727 = vmul.f32 %v1707, %v1711
        %v1728 = vadd.f32 %v1676, %v1712
        %v1729 = vadd.f32 %v1677, %v1713
        %v1730 = vadd.f32 %v1678, %v1714
        %v1731 = vadd.f32 %v1679, %v1715
        %v1732 = vadd.f32 %v1680, %v1716
        %v1733 = vadd.f32 %v1681, %v1717
        %v1734 = vadd.f32 %v1682, %v1718
        %v1735 = vadd.f32 %v1683, %v1719
        %v1736 = vadd.f32 %v1684, %v1720
        %v1737 = vadd.f32 %v1685, %v1721
        %v1738 = vadd.f32 %v1686, %v1722
        %v1739 = vadd.f32 %v1687, %v1723
        %v1740 = vadd.f32 %v1688, %v1724
        %v1741 = vadd.f32 %v1689, %v1725
        %v1742 = vadd.f32 %v1690, %v1726
        %v1743 = vadd.f32 %v1691, %v1727
        %s1744 = sadd.s32 %s636, 3
        %s1745 = smul.u32 %s1744, 24
        %s1746 = scalar_lea.vmem [#allocation2], %s1745
        %v1747 = vld [vmem:[%s1746] sm:$0xff]
        %v1748 = vld [vmem:[%s1746 + $0x8] sm:$0xff]
        %v1749 = vld [vmem:[%s1746 + $0x18] sm:$0xff]
        %v1750 = vld [vmem:[%s1746 + $0x20] sm:$0xff]
        %v1751 = vld [vmem:[%s1746 + $0x30] sm:$0xff]
        %v1752 = vld [vmem:[%s1746 + $0x38] sm:$0xff]
        %v1753 = vld [vmem:[%s1746 + $0x48] sm:$0xff]
        %v1754 = vld [vmem:[%s1746 + $0x50] sm:$0xff]
        %v1755 = vld [vmem:[%s1746 + $0x60] sm:$0xff]
        %v1756 = vld [vmem:[%s1746 + $0x68] sm:$0xff]
        %v1757 = vld [vmem:[%s1746 + $0x78] sm:$0xff]
        %v1758 = vld [vmem:[%s1746 + $0x80] sm:$0xff]
        %v1759 = vld [vmem:[%s1746 + $0x90] sm:$0xff]
        %v1760 = vld [vmem:[%s1746 + $0x98] sm:$0xff]
        %v1761 = vld [vmem:[%s1746 + $0xa8] sm:$0xff]
        %v1762 = vld [vmem:[%s1746 + $0xb0] sm:$0xff]
        %v1763 = vlaneseq
        %v1764 = vshrl.u32 %v1763, 7
        %v1765 = vsub.s32 5, %v1764
        %v1766 = vrot.slane %v639, %v1765
        %v1767 = vmul.f32 %v1747, %v1766
        %v1768 = vmul.f32 %v1748, %v1766
        %v1769 = vmul.f32 %v1749, %v1766
        %v1770 = vmul.f32 %v1750, %v1766
        %v1771 = vmul.f32 %v1751, %v1766
        %v1772 = vmul.f32 %v1752, %v1766
        %v1773 = vmul.f32 %v1753, %v1766
        %v1774 = vmul.f32 %v1754, %v1766
        %v1775 = vmul.f32 %v1755, %v1766
        %v1776 = vmul.f32 %v1756, %v1766
        %v1777 = vmul.f32 %v1757, %v1766
        %v1778 = vmul.f32 %v1758, %v1766
        %v1779 = vmul.f32 %v1759, %v1766
        %v1780 = vmul.f32 %v1760, %v1766
        %v1781 = vmul.f32 %v1761, %v1766
        %v1782 = vmul.f32 %v1762, %v1766
        %v1783 = vadd.f32 %v1728, %v1767
        %v1784 = vadd.f32 %v1729, %v1768
        %v1785 = vadd.f32 %v1730, %v1769
        %v1786 = vadd.f32 %v1731, %v1770
        %v1787 = vadd.f32 %v1732, %v1771
        %v1788 = vadd.f32 %v1733, %v1772
        %v1789 = vadd.f32 %v1734, %v1773
        %v1790 = vadd.f32 %v1735, %v1774
        %v1791 = vadd.f32 %v1736, %v1775
        %v1792 = vadd.f32 %v1737, %v1776
        %v1793 = vadd.f32 %v1738, %v1777
        %v1794 = vadd.f32 %v1739, %v1778
        %v1795 = vadd.f32 %v1740, %v1779
        %v1796 = vadd.f32 %v1741, %v1780
        %v1797 = vadd.f32 %v1742, %v1781
        %v1798 = vadd.f32 %v1743, %v1782
        %v1799 = vld [vmem:[%s1746 + $0x1] sm:$0xff]
        %v1800 = vld [vmem:[%s1746 + $0x9] sm:$0xff]
        %v1801 = vld [vmem:[%s1746 + $0x19] sm:$0xff]
        %v1802 = vld [vmem:[%s1746 + $0x21] sm:$0xff]
        %v1803 = vld [vmem:[%s1746 + $0x31] sm:$0xff]
        %v1804 = vld [vmem:[%s1746 + $0x39] sm:$0xff]
        %v1805 = vld [vmem:[%s1746 + $0x49] sm:$0xff]
        %v1806 = vld [vmem:[%s1746 + $0x51] sm:$0xff]
        %v1807 = vld [vmem:[%s1746 + $0x61] sm:$0xff]
        %v1808 = vld [vmem:[%s1746 + $0x69] sm:$0xff]
        %v1809 = vld [vmem:[%s1746 + $0x79] sm:$0xff]
        %v1810 = vld [vmem:[%s1746 + $0x81] sm:$0xff]
        %v1811 = vld [vmem:[%s1746 + $0x91] sm:$0xff]
        %v1812 = vld [vmem:[%s1746 + $0x99] sm:$0xff]
        %v1813 = vld [vmem:[%s1746 + $0xa9] sm:$0xff]
        %v1814 = vld [vmem:[%s1746 + $0xb1] sm:$0xff]
        %v1815 = vlaneseq
        %v1816 = vshrl.u32 %v1815, 7
        %v1817 = vsub.s32 6, %v1816
        %v1818 = vrot.slane %v639, %v1817
        %v1819 = vmul.f32 %v1799, %v1818
        %v1820 = vmul.f32 %v1800, %v1818
        %v1821 = vmul.f32 %v1801, %v1818
        %v1822 = vmul.f32 %v1802, %v1818
        %v1823 = vmul.f32 %v1803, %v1818
        %v1824 = vmul.f32 %v1804, %v1818
        %v1825 = vmul.f32 %v1805, %v1818
        %v1826 = vmul.f32 %v1806, %v1818
        %v1827 = vmul.f32 %v1807, %v1818
        %v1828 = vmul.f32 %v1808, %v1818
        %v1829 = vmul.f32 %v1809, %v1818
        %v1830 = vmul.f32 %v1810, %v1818
        %v1831 = vmul.f32 %v1811, %v1818
        %v1832 = vmul.f32 %v1812, %v1818
        %v1833 = vmul.f32 %v1813, %v1818
        %v1834 = vmul.f32 %v1814, %v1818
        %v1835 = vadd.f32 %v1783, %v1819
        %v1836 = vadd.f32 %v1784, %v1820
        %v1837 = vadd.f32 %v1785, %v1821
        %v1838 = vadd.f32 %v1786, %v1822
        %v1839 = vadd.f32 %v1787, %v1823
        %v1840 = vadd.f32 %v1788, %v1824
        %v1841 = vadd.f32 %v1789, %v1825
        %v1842 = vadd.f32 %v1790, %v1826
        %v1843 = vadd.f32 %v1791, %v1827
        %v1844 = vadd.f32 %v1792, %v1828
        %v1845 = vadd.f32 %v1793, %v1829
        %v1846 = vadd.f32 %v1794, %v1830
        %v1847 = vadd.f32 %v1795, %v1831
        %v1848 = vadd.f32 %v1796, %v1832
        %v1849 = vadd.f32 %v1797, %v1833
        %v1850 = vadd.f32 %v1798, %v1834
        %v1851 = vld [vmem:[%s1746 + $0x2] sm:$0xff]
        %v1852 = vld [vmem:[%s1746 + $0xa] sm:$0xff]
        %v1853 = vld [vmem:[%s1746 + $0x1a] sm:$0xff]
        %v1854 = vld [vmem:[%s1746 + $0x22] sm:$0xff]
        %v1855 = vld [vmem:[%s1746 + $0x32] sm:$0xff]
        %v1856 = vld [vmem:[%s1746 + $0x3a] sm:$0xff]
        %v1857 = vld [vmem:[%s1746 + $0x4a] sm:$0xff]
        %v1858 = vld [vmem:[%s1746 + $0x52] sm:$0xff]
        %v1859 = vld [vmem:[%s1746 + $0x62] sm:$0xff]
        %v1860 = vld [vmem:[%s1746 + $0x6a] sm:$0xff]
        %v1861 = vld [vmem:[%s1746 + $0x7a] sm:$0xff]
        %v1862 = vld [vmem:[%s1746 + $0x82] sm:$0xff]
        %v1863 = vld [vmem:[%s1746 + $0x92] sm:$0xff]
        %v1864 = vld [vmem:[%s1746 + $0x9a] sm:$0xff]
        %v1865 = vld [vmem:[%s1746 + $0xaa] sm:$0xff]
        %v1866 = vld [vmem:[%s1746 + $0xb2] sm:$0xff]
        %v1867 = vlaneseq
        %v1868 = vshrl.u32 %v1867, 7
        %v1869 = vsub.s32 7, %v1868
        %v1870 = vrot.slane %v639, %v1869
        %v1871 = vmul.f32 %v1851, %v1870
        %v1872 = vmul.f32 %v1852, %v1870
        %v1873 = vmul.f32 %v1853, %v1870
        %v1874 = vmul.f32 %v1854, %v1870
        %v1875 = vmul.f32 %v1855, %v1870
        %v1876 = vmul.f32 %v1856, %v1870
        %v1877 = vmul.f32 %v1857, %v1870
        %v1878 = vmul.f32 %v1858, %v1870
        %v1879 = vmul.f32 %v1859, %v1870
        %v1880 = vmul.f32 %v1860, %v1870
        %v1881 = vmul.f32 %v1861, %v1870
        %v1882 = vmul.f32 %v1862, %v1870
        %v1883 = vmul.f32 %v1863, %v1870
        %v1884 = vmul.f32 %v1864, %v1870
        %v1885 = vmul.f32 %v1865, %v1870
        %v1886 = vmul.f32 %v1866, %v1870
        %v1887 = vadd.f32 %v1835, %v1871
        %v1888 = vadd.f32 %v1836, %v1872
        %v1889 = vadd.f32 %v1837, %v1873
        %v1890 = vadd.f32 %v1838, %v1874
        %v1891 = vadd.f32 %v1839, %v1875
        %v1892 = vadd.f32 %v1840, %v1876
        %v1893 = vadd.f32 %v1841, %v1877
        %v1894 = vadd.f32 %v1842, %v1878
        %v1895 = vadd.f32 %v1843, %v1879
        %v1896 = vadd.f32 %v1844, %v1880
        %v1897 = vadd.f32 %v1845, %v1881
        %v1898 = vadd.f32 %v1846, %v1882
        %v1899 = vadd.f32 %v1847, %v1883
        %v1900 = vadd.f32 %v1848, %v1884
        %v1901 = vadd.f32 %v1849, %v1885
        %v1902 = vadd.f32 %v1850, %v1886
        %v1903 = vld [vmem:[%s1746 + $0x3] sm:$0xff]
        %v1904 = vld [vmem:[%s1746 + $0xb] sm:$0xff]
        %v1905 = vld [vmem:[%s1746 + $0x1b] sm:$0xff]
        %v1906 = vld [vmem:[%s1746 + $0x23] sm:$0xff]
        %v1907 = vld [vmem:[%s1746 + $0x33] sm:$0xff]
        %v1908 = vld [vmem:[%s1746 + $0x3b] sm:$0xff]
        %v1909 = vld [vmem:[%s1746 + $0x4b] sm:$0xff]
        %v1910 = vld [vmem:[%s1746 + $0x53] sm:$0xff]
        %v1911 = vld [vmem:[%s1746 + $0x63] sm:$0xff]
        %v1912 = vld [vmem:[%s1746 + $0x6b] sm:$0xff]
        %v1913 = vld [vmem:[%s1746 + $0x7b] sm:$0xff]
        %v1914 = vld [vmem:[%s1746 + $0x83] sm:$0xff]
        %v1915 = vld [vmem:[%s1746 + $0x93] sm:$0xff]
        %v1916 = vld [vmem:[%s1746 + $0x9b] sm:$0xff]
        %v1917 = vld [vmem:[%s1746 + $0xab] sm:$0xff]
        %v1918 = vld [vmem:[%s1746 + $0xb3] sm:$0xff]
        %v1919 = vlaneseq
        %v1920 = vshrl.u32 %v1919, 7
        %v1921 = vsub.s32 0, %v1920
        %v1922 = vrot.slane %v640, %v1921
        %v1923 = vmul.f32 %v1903, %v1922
        %v1924 = vmul.f32 %v1904, %v1922
        %v1925 = vmul.f32 %v1905, %v1922
        %v1926 = vmul.f32 %v1906, %v1922
        %v1927 = vmul.f32 %v1907, %v1922
        %v1928 = vmul.f32 %v1908, %v1922
        %v1929 = vmul.f32 %v1909, %v1922
        %v1930 = vmul.f32 %v1910, %v1922
        %v1931 = vmul.f32 %v1911, %v1922
        %v1932 = vmul.f32 %v1912, %v1922
        %v1933 = vmul.f32 %v1913, %v1922
        %v1934 = vmul.f32 %v1914, %v1922
        %v1935 = vmul.f32 %v1915, %v1922
        %v1936 = vmul.f32 %v1916, %v1922
        %v1937 = vmul.f32 %v1917, %v1922
        %v1938 = vmul.f32 %v1918, %v1922
        %v1939 = vadd.f32 %v1887, %v1923
        %v1940 = vadd.f32 %v1888, %v1924
        %v1941 = vadd.f32 %v1889, %v1925
        %v1942 = vadd.f32 %v1890, %v1926
        %v1943 = vadd.f32 %v1891, %v1927
        %v1944 = vadd.f32 %v1892, %v1928
        %v1945 = vadd.f32 %v1893, %v1929
        %v1946 = vadd.f32 %v1894, %v1930
        %v1947 = vadd.f32 %v1895, %v1931
        %v1948 = vadd.f32 %v1896, %v1932
        %v1949 = vadd.f32 %v1897, %v1933
        %v1950 = vadd.f32 %v1898, %v1934
        %v1951 = vadd.f32 %v1899, %v1935
        %v1952 = vadd.f32 %v1900, %v1936
        %v1953 = vadd.f32 %v1901, %v1937
        %v1954 = vadd.f32 %v1902, %v1938
        %v1955 = vld [vmem:[%s1746 + $0x4] sm:$0xff]
        %v1956 = vld [vmem:[%s1746 + $0xc] sm:$0xff]
        %v1957 = vld [vmem:[%s1746 + $0x1c] sm:$0xff]
        %v1958 = vld [vmem:[%s1746 + $0x24] sm:$0xff]
        %v1959 = vld [vmem:[%s1746 + $0x34] sm:$0xff]
        %v1960 = vld [vmem:[%s1746 + $0x3c] sm:$0xff]
        %v1961 = vld [vmem:[%s1746 + $0x4c] sm:$0xff]
        %v1962 = vld [vmem:[%s1746 + $0x54] sm:$0xff]
        %v1963 = vld [vmem:[%s1746 + $0x64] sm:$0xff]
        %v1964 = vld [vmem:[%s1746 + $0x6c] sm:$0xff]
        %v1965 = vld [vmem:[%s1746 + $0x7c] sm:$0xff]
        %v1966 = vld [vmem:[%s1746 + $0x84] sm:$0xff]
        %v1967 = vld [vmem:[%s1746 + $0x94] sm:$0xff]
        %v1968 = vld [vmem:[%s1746 + $0x9c] sm:$0xff]
        %v1969 = vld [vmem:[%s1746 + $0xac] sm:$0xff]
        %v1970 = vld [vmem:[%s1746 + $0xb4] sm:$0xff]
        %v1971 = vlaneseq
        %v1972 = vshrl.u32 %v1971, 7
        %v1973 = vsub.s32 1, %v1972
        %v1974 = vrot.slane %v640, %v1973
        %v1975 = vmul.f32 %v1955, %v1974
        %v1976 = vmul.f32 %v1956, %v1974
        %v1977 = vmul.f32 %v1957, %v1974
        %v1978 = vmul.f32 %v1958, %v1974
        %v1979 = vmul.f32 %v1959, %v1974
        %v1980 = vmul.f32 %v1960, %v1974
        %v1981 = vmul.f32 %v1961, %v1974
        %v1982 = vmul.f32 %v1962, %v1974
        %v1983 = vmul.f32 %v1963, %v1974
        %v1984 = vmul.f32 %v1964, %v1974
        %v1985 = vmul.f32 %v1965, %v1974
        %v1986 = vmul.f32 %v1966, %v1974
        %v1987 = vmul.f32 %v1967, %v1974
        %v1988 = vmul.f32 %v1968, %v1974
        %v1989 = vmul.f32 %v1969, %v1974
        %v1990 = vmul.f32 %v1970, %v1974
        %v1991 = vadd.f32 %v1939, %v1975
        %v1992 = vadd.f32 %v1940, %v1976
        %v1993 = vadd.f32 %v1941, %v1977
        %v1994 = vadd.f32 %v1942, %v1978
        %v1995 = vadd.f32 %v1943, %v1979
        %v1996 = vadd.f32 %v1944, %v1980
        %v1997 = vadd.f32 %v1945, %v1981
        %v1998 = vadd.f32 %v1946, %v1982
        %v1999 = vadd.f32 %v1947, %v1983
        %v2000 = vadd.f32 %v1948, %v1984
        %v2001 = vadd.f32 %v1949, %v1985
        %v2002 = vadd.f32 %v1950, %v1986
        %v2003 = vadd.f32 %v1951, %v1987
        %v2004 = vadd.f32 %v1952, %v1988
        %v2005 = vadd.f32 %v1953, %v1989
        %v2006 = vadd.f32 %v1954, %v1990
        %v2007 = vld [vmem:[%s1746 + $0x5] sm:$0xff]
        %v2008 = vld [vmem:[%s1746 + $0xd] sm:$0xff]
        %v2009 = vld [vmem:[%s1746 + $0x1d] sm:$0xff]
        %v2010 = vld [vmem:[%s1746 + $0x25] sm:$0xff]
        %v2011 = vld [vmem:[%s1746 + $0x35] sm:$0xff]
        %v2012 = vld [vmem:[%s1746 + $0x3d] sm:$0xff]
        %v2013 = vld [vmem:[%s1746 + $0x4d] sm:$0xff]
        %v2014 = vld [vmem:[%s1746 + $0x55] sm:$0xff]
        %v2015 = vld [vmem:[%s1746 + $0x65] sm:$0xff]
        %v2016 = vld [vmem:[%s1746 + $0x6d] sm:$0xff]
        %v2017 = vld [vmem:[%s1746 + $0x7d] sm:$0xff]
        %v2018 = vld [vmem:[%s1746 + $0x85] sm:$0xff]
        %v2019 = vld [vmem:[%s1746 + $0x95] sm:$0xff]
        %v2020 = vld [vmem:[%s1746 + $0x9d] sm:$0xff]
        %v2021 = vld [vmem:[%s1746 + $0xad] sm:$0xff]
        %v2022 = vld [vmem:[%s1746 + $0xb5] sm:$0xff]
        %v2023 = vlaneseq
        %v2024 = vshrl.u32 %v2023, 7
        %v2025 = vsub.s32 2, %v2024
        %v2026 = vrot.slane %v640, %v2025
        %v2027 = vmul.f32 %v2007, %v2026
        %v2028 = vmul.f32 %v2008, %v2026
        %v2029 = vmul.f32 %v2009, %v2026
        %v2030 = vmul.f32 %v2010, %v2026
        %v2031 = vmul.f32 %v2011, %v2026
        %v2032 = vmul.f32 %v2012, %v2026
        %v2033 = vmul.f32 %v2013, %v2026
        %v2034 = vmul.f32 %v2014, %v2026
        %v2035 = vmul.f32 %v2015, %v2026
        %v2036 = vmul.f32 %v2016, %v2026
        %v2037 = vmul.f32 %v2017, %v2026
        %v2038 = vmul.f32 %v2018, %v2026
        %v2039 = vmul.f32 %v2019, %v2026
        %v2040 = vmul.f32 %v2020, %v2026
        %v2041 = vmul.f32 %v2021, %v2026
        %v2042 = vmul.f32 %v2022, %v2026
        %v2043 = vadd.f32 %v1991, %v2027
        %v2044 = vadd.f32 %v1992, %v2028
        %v2045 = vadd.f32 %v1993, %v2029
        %v2046 = vadd.f32 %v1994, %v2030
        %v2047 = vadd.f32 %v1995, %v2031
        %v2048 = vadd.f32 %v1996, %v2032
        %v2049 = vadd.f32 %v1997, %v2033
        %v2050 = vadd.f32 %v1998, %v2034
        %v2051 = vadd.f32 %v1999, %v2035
        %v2052 = vadd.f32 %v2000, %v2036
        %v2053 = vadd.f32 %v2001, %v2037
        %v2054 = vadd.f32 %v2002, %v2038
        %v2055 = vadd.f32 %v2003, %v2039
        %v2056 = vadd.f32 %v2004, %v2040
        %v2057 = vadd.f32 %v2005, %v2041
        %v2058 = vadd.f32 %v2006, %v2042
        %v2059 = vld [vmem:[%s1746 + $0x6] sm:$0xff]
        %v2060 = vld [vmem:[%s1746 + $0xe] sm:$0xff]
        %v2061 = vld [vmem:[%s1746 + $0x1e] sm:$0xff]
        %v2062 = vld [vmem:[%s1746 + $0x26] sm:$0xff]
        %v2063 = vld [vmem:[%s1746 + $0x36] sm:$0xff]
        %v2064 = vld [vmem:[%s1746 + $0x3e] sm:$0xff]
        %v2065 = vld [vmem:[%s1746 + $0x4e] sm:$0xff]
        %v2066 = vld [vmem:[%s1746 + $0x56] sm:$0xff]
        %v2067 = vld [vmem:[%s1746 + $0x66] sm:$0xff]
        %v2068 = vld [vmem:[%s1746 + $0x6e] sm:$0xff]
        %v2069 = vld [vmem:[%s1746 + $0x7e] sm:$0xff]
        %v2070 = vld [vmem:[%s1746 + $0x86] sm:$0xff]
        %v2071 = vld [vmem:[%s1746 + $0x96] sm:$0xff]
        %v2072 = vld [vmem:[%s1746 + $0x9e] sm:$0xff]
        %v2073 = vld [vmem:[%s1746 + $0xae] sm:$0xff]
        %v2074 = vld [vmem:[%s1746 + $0xb6] sm:$0xff]
        %v2075 = vlaneseq
        %v2076 = vshrl.u32 %v2075, 7
        %v2077 = vsub.s32 3, %v2076
        %v2078 = vrot.slane %v640, %v2077
        %v2079 = vmul.f32 %v2059, %v2078
        %v2080 = vmul.f32 %v2060, %v2078
        %v2081 = vmul.f32 %v2061, %v2078
        %v2082 = vmul.f32 %v2062, %v2078
        %v2083 = vmul.f32 %v2063, %v2078
        %v2084 = vmul.f32 %v2064, %v2078
        %v2085 = vmul.f32 %v2065, %v2078
        %v2086 = vmul.f32 %v2066, %v2078
        %v2087 = vmul.f32 %v2067, %v2078
        %v2088 = vmul.f32 %v2068, %v2078
        %v2089 = vmul.f32 %v2069, %v2078
        %v2090 = vmul.f32 %v2070, %v2078
        %v2091 = vmul.f32 %v2071, %v2078
        %v2092 = vmul.f32 %v2072, %v2078
        %v2093 = vmul.f32 %v2073, %v2078
        %v2094 = vmul.f32 %v2074, %v2078
        %v2095 = vadd.f32 %v2043, %v2079
        %v2096 = vadd.f32 %v2044, %v2080
        %v2097 = vadd.f32 %v2045, %v2081
        %v2098 = vadd.f32 %v2046, %v2082
        %v2099 = vadd.f32 %v2047, %v2083
        %v2100 = vadd.f32 %v2048, %v2084
        %v2101 = vadd.f32 %v2049, %v2085
        %v2102 = vadd.f32 %v2050, %v2086
        %v2103 = vadd.f32 %v2051, %v2087
        %v2104 = vadd.f32 %v2052, %v2088
        %v2105 = vadd.f32 %v2053, %v2089
        %v2106 = vadd.f32 %v2054, %v2090
        %v2107 = vadd.f32 %v2055, %v2091
        %v2108 = vadd.f32 %v2056, %v2092
        %v2109 = vadd.f32 %v2057, %v2093
        %v2110 = vadd.f32 %v2058, %v2094
        %s2111 = sadd.s32 %s636, 4
        %s2112 = smul.u32 %s2111, 24
        %s2113 = scalar_lea.vmem [#allocation2], %s2112
        %v2114 = vld [vmem:[%s2113] sm:$0xff]
        %v2115 = vld [vmem:[%s2113 + $0x8] sm:$0xff]
        %v2116 = vld [vmem:[%s2113 + $0x18] sm:$0xff]
        %v2117 = vld [vmem:[%s2113 + $0x20] sm:$0xff]
        %v2118 = vld [vmem:[%s2113 + $0x30] sm:$0xff]
        %v2119 = vld [vmem:[%s2113 + $0x38] sm:$0xff]
        %v2120 = vld [vmem:[%s2113 + $0x48] sm:$0xff]
        %v2121 = vld [vmem:[%s2113 + $0x50] sm:$0xff]
        %v2122 = vld [vmem:[%s2113 + $0x60] sm:$0xff]
        %v2123 = vld [vmem:[%s2113 + $0x68] sm:$0xff]
        %v2124 = vld [vmem:[%s2113 + $0x78] sm:$0xff]
        %v2125 = vld [vmem:[%s2113 + $0x80] sm:$0xff]
        %v2126 = vld [vmem:[%s2113 + $0x90] sm:$0xff]
        %v2127 = vld [vmem:[%s2113 + $0x98] sm:$0xff]
        %v2128 = vld [vmem:[%s2113 + $0xa8] sm:$0xff]
        %v2129 = vld [vmem:[%s2113 + $0xb0] sm:$0xff]
        %v2130 = vlaneseq
        %v2131 = vshrl.u32 %v2130, 7
        %v2132 = vsub.s32 4, %v2131
        %v2133 = vrot.slane %v640, %v2132
        %v2134 = vmul.f32 %v2114, %v2133
        %v2135 = vmul.f32 %v2115, %v2133
        %v2136 = vmul.f32 %v2116, %v2133
        %v2137 = vmul.f32 %v2117, %v2133
        %v2138 = vmul.f32 %v2118, %v2133
        %v2139 = vmul.f32 %v2119, %v2133
        %v2140 = vmul.f32 %v2120, %v2133
        %v2141 = vmul.f32 %v2121, %v2133
        %v2142 = vmul.f32 %v2122, %v2133
        %v2143 = vmul.f32 %v2123, %v2133
        %v2144 = vmul.f32 %v2124, %v2133
        %v2145 = vmul.f32 %v2125, %v2133
        %v2146 = vmul.f32 %v2126, %v2133
        %v2147 = vmul.f32 %v2127, %v2133
        %v2148 = vmul.f32 %v2128, %v2133
        %v2149 = vmul.f32 %v2129, %v2133
        %v2150 = vadd.f32 %v2095, %v2134
        %v2151 = vadd.f32 %v2096, %v2135
        %v2152 = vadd.f32 %v2097, %v2136
        %v2153 = vadd.f32 %v2098, %v2137
        %v2154 = vadd.f32 %v2099, %v2138
        %v2155 = vadd.f32 %v2100, %v2139
        %v2156 = vadd.f32 %v2101, %v2140
        %v2157 = vadd.f32 %v2102, %v2141
        %v2158 = vadd.f32 %v2103, %v2142
        %v2159 = vadd.f32 %v2104, %v2143
        %v2160 = vadd.f32 %v2105, %v2144
        %v2161 = vadd.f32 %v2106, %v2145
        %v2162 = vadd.f32 %v2107, %v2146
        %v2163 = vadd.f32 %v2108, %v2147
        %v2164 = vadd.f32 %v2109, %v2148
        %v2165 = vadd.f32 %v2110, %v2149
        %v2166 = vld [vmem:[%s2113 + $0x1] sm:$0xff]
        %v2167 = vld [vmem:[%s2113 + $0x9] sm:$0xff]
        %v2168 = vld [vmem:[%s2113 + $0x19] sm:$0xff]
        %v2169 = vld [vmem:[%s2113 + $0x21] sm:$0xff]
        %v2170 = vld [vmem:[%s2113 + $0x31] sm:$0xff]
        %v2171 = vld [vmem:[%s2113 + $0x39] sm:$0xff]
        %v2172 = vld [vmem:[%s2113 + $0x49] sm:$0xff]
        %v2173 = vld [vmem:[%s2113 + $0x51] sm:$0xff]
        %v2174 = vld [vmem:[%s2113 + $0x61] sm:$0xff]
        %v2175 = vld [vmem:[%s2113 + $0x69] sm:$0xff]
        %v2176 = vld [vmem:[%s2113 + $0x79] sm:$0xff]
        %v2177 = vld [vmem:[%s2113 + $0x81] sm:$0xff]
        %v2178 = vld [vmem:[%s2113 + $0x91] sm:$0xff]
        %v2179 = vld [vmem:[%s2113 + $0x99] sm:$0xff]
        %v2180 = vld [vmem:[%s2113 + $0xa9] sm:$0xff]
        %v2181 = vld [vmem:[%s2113 + $0xb1] sm:$0xff]
        %v2182 = vlaneseq
        %v2183 = vshrl.u32 %v2182, 7
        %v2184 = vsub.s32 5, %v2183
        %v2185 = vrot.slane %v640, %v2184
        %v2186 = vmul.f32 %v2166, %v2185
        %v2187 = vmul.f32 %v2167, %v2185
        %v2188 = vmul.f32 %v2168, %v2185
        %v2189 = vmul.f32 %v2169, %v2185
        %v2190 = vmul.f32 %v2170, %v2185
        %v2191 = vmul.f32 %v2171, %v2185
        %v2192 = vmul.f32 %v2172, %v2185
        %v2193 = vmul.f32 %v2173, %v2185
        %v2194 = vmul.f32 %v2174, %v2185
        %v2195 = vmul.f32 %v2175, %v2185
        %v2196 = vmul.f32 %v2176, %v2185
        %v2197 = vmul.f32 %v2177, %v2185
        %v2198 = vmul.f32 %v2178, %v2185
        %v2199 = vmul.f32 %v2179, %v2185
        %v2200 = vmul.f32 %v2180, %v2185
        %v2201 = vmul.f32 %v2181, %v2185
        %v2202 = vadd.f32 %v2150, %v2186
        %v2203 = vadd.f32 %v2151, %v2187
        %v2204 = vadd.f32 %v2152, %v2188
        %v2205 = vadd.f32 %v2153, %v2189
        %v2206 = vadd.f32 %v2154, %v2190
        %v2207 = vadd.f32 %v2155, %v2191
        %v2208 = vadd.f32 %v2156, %v2192
        %v2209 = vadd.f32 %v2157, %v2193
        %v2210 = vadd.f32 %v2158, %v2194
        %v2211 = vadd.f32 %v2159, %v2195
        %v2212 = vadd.f32 %v2160, %v2196
        %v2213 = vadd.f32 %v2161, %v2197
        %v2214 = vadd.f32 %v2162, %v2198
        %v2215 = vadd.f32 %v2163, %v2199
        %v2216 = vadd.f32 %v2164, %v2200
        %v2217 = vadd.f32 %v2165, %v2201
        %v2218 = vld [vmem:[%s2113 + $0x2] sm:$0xff]
        %v2219 = vld [vmem:[%s2113 + $0xa] sm:$0xff]
        %v2220 = vld [vmem:[%s2113 + $0x1a] sm:$0xff]
        %v2221 = vld [vmem:[%s2113 + $0x22] sm:$0xff]
        %v2222 = vld [vmem:[%s2113 + $0x32] sm:$0xff]
        %v2223 = vld [vmem:[%s2113 + $0x3a] sm:$0xff]
        %v2224 = vld [vmem:[%s2113 + $0x4a] sm:$0xff]
        %v2225 = vld [vmem:[%s2113 + $0x52] sm:$0xff]
        %v2226 = vld [vmem:[%s2113 + $0x62] sm:$0xff]
        %v2227 = vld [vmem:[%s2113 + $0x6a] sm:$0xff]
        %v2228 = vld [vmem:[%s2113 + $0x7a] sm:$0xff]
        %v2229 = vld [vmem:[%s2113 + $0x82] sm:$0xff]
        %v2230 = vld [vmem:[%s2113 + $0x92] sm:$0xff]
        %v2231 = vld [vmem:[%s2113 + $0x9a] sm:$0xff]
        %v2232 = vld [vmem:[%s2113 + $0xaa] sm:$0xff]
        %v2233 = vld [vmem:[%s2113 + $0xb2] sm:$0xff]
        %v2234 = vlaneseq
        %v2235 = vshrl.u32 %v2234, 7
        %v2236 = vsub.s32 6, %v2235
        %v2237 = vrot.slane %v640, %v2236
        %v2238 = vmul.f32 %v2218, %v2237
        %v2239 = vmul.f32 %v2219, %v2237
        %v2240 = vmul.f32 %v2220, %v2237
        %v2241 = vmul.f32 %v2221, %v2237
        %v2242 = vmul.f32 %v2222, %v2237
        %v2243 = vmul.f32 %v2223, %v2237
        %v2244 = vmul.f32 %v2224, %v2237
        %v2245 = vmul.f32 %v2225, %v2237
        %v2246 = vmul.f32 %v2226, %v2237
        %v2247 = vmul.f32 %v2227, %v2237
        %v2248 = vmul.f32 %v2228, %v2237
        %v2249 = vmul.f32 %v2229, %v2237
        %v2250 = vmul.f32 %v2230, %v2237
        %v2251 = vmul.f32 %v2231, %v2237
        %v2252 = vmul.f32 %v2232, %v2237
        %v2253 = vmul.f32 %v2233, %v2237
        %v2254 = vadd.f32 %v2202, %v2238
        %v2255 = vadd.f32 %v2203, %v2239
        %v2256 = vadd.f32 %v2204, %v2240
        %v2257 = vadd.f32 %v2205, %v2241
        %v2258 = vadd.f32 %v2206, %v2242
        %v2259 = vadd.f32 %v2207, %v2243
        %v2260 = vadd.f32 %v2208, %v2244
        %v2261 = vadd.f32 %v2209, %v2245
        %v2262 = vadd.f32 %v2210, %v2246
        %v2263 = vadd.f32 %v2211, %v2247
        %v2264 = vadd.f32 %v2212, %v2248
        %v2265 = vadd.f32 %v2213, %v2249
        %v2266 = vadd.f32 %v2214, %v2250
        %v2267 = vadd.f32 %v2215, %v2251
        %v2268 = vadd.f32 %v2216, %v2252
        %v2269 = vadd.f32 %v2217, %v2253
        %v2270 = vld [vmem:[%s2113 + $0x3] sm:$0xff]
        %v2271 = vld [vmem:[%s2113 + $0xb] sm:$0xff]
        %v2272 = vld [vmem:[%s2113 + $0x1b] sm:$0xff]
        %v2273 = vld [vmem:[%s2113 + $0x23] sm:$0xff]
        %v2274 = vld [vmem:[%s2113 + $0x33] sm:$0xff]
        %v2275 = vld [vmem:[%s2113 + $0x3b] sm:$0xff]
        %v2276 = vld [vmem:[%s2113 + $0x4b] sm:$0xff]
        %v2277 = vld [vmem:[%s2113 + $0x53] sm:$0xff]
        %v2278 = vld [vmem:[%s2113 + $0x63] sm:$0xff]
        %v2279 = vld [vmem:[%s2113 + $0x6b] sm:$0xff]
        %v2280 = vld [vmem:[%s2113 + $0x7b] sm:$0xff]
        %v2281 = vld [vmem:[%s2113 + $0x83] sm:$0xff]
        %v2282 = vld [vmem:[%s2113 + $0x93] sm:$0xff]
        %v2283 = vld [vmem:[%s2113 + $0x9b] sm:$0xff]
        %v2284 = vld [vmem:[%s2113 + $0xab] sm:$0xff]
        %v2285 = vld [vmem:[%s2113 + $0xb3] sm:$0xff]
        %v2286 = vlaneseq
        %v2287 = vshrl.u32 %v2286, 7
        %v2288 = vsub.s32 7, %v2287
        %v2289 = vrot.slane %v640, %v2288
        %v2290 = vmul.f32 %v2270, %v2289
        %v2291 = vmul.f32 %v2271, %v2289
        %v2292 = vmul.f32 %v2272, %v2289
        %v2293 = vmul.f32 %v2273, %v2289
        %v2294 = vmul.f32 %v2274, %v2289
        %v2295 = vmul.f32 %v2275, %v2289
        %v2296 = vmul.f32 %v2276, %v2289
        %v2297 = vmul.f32 %v2277, %v2289
        %v2298 = vmul.f32 %v2278, %v2289
        %v2299 = vmul.f32 %v2279, %v2289
        %v2300 = vmul.f32 %v2280, %v2289
        %v2301 = vmul.f32 %v2281, %v2289
        %v2302 = vmul.f32 %v2282, %v2289
        %v2303 = vmul.f32 %v2283, %v2289
        %v2304 = vmul.f32 %v2284, %v2289
        %v2305 = vmul.f32 %v2285, %v2289
        %v2306 = vadd.f32 %v2254, %v2290
        %v2307 = vadd.f32 %v2255, %v2291
        %v2308 = vadd.f32 %v2256, %v2292
        %v2309 = vadd.f32 %v2257, %v2293
        %v2310 = vadd.f32 %v2258, %v2294
        %v2311 = vadd.f32 %v2259, %v2295
        %v2312 = vadd.f32 %v2260, %v2296
        %v2313 = vadd.f32 %v2261, %v2297
        %v2314 = vadd.f32 %v2262, %v2298
        %v2315 = vadd.f32 %v2263, %v2299
        %v2316 = vadd.f32 %v2264, %v2300
        %v2317 = vadd.f32 %v2265, %v2301
        %v2318 = vadd.f32 %v2266, %v2302
        %v2319 = vadd.f32 %v2267, %v2303
        %v2320 = vadd.f32 %v2268, %v2304
        %v2321 = vadd.f32 %v2269, %v2305
        %v2322 = vld [vmem:[%s2113 + $0x4] sm:$0xff]
        %v2323 = vld [vmem:[%s2113 + $0xc] sm:$0xff]
        %v2324 = vld [vmem:[%s2113 + $0x1c] sm:$0xff]
        %v2325 = vld [vmem:[%s2113 + $0x24] sm:$0xff]
        %v2326 = vld [vmem:[%s2113 + $0x34] sm:$0xff]
        %v2327 = vld [vmem:[%s2113 + $0x3c] sm:$0xff]
        %v2328 = vld [vmem:[%s2113 + $0x4c] sm:$0xff]
        %v2329 = vld [vmem:[%s2113 + $0x54] sm:$0xff]
        %v2330 = vld [vmem:[%s2113 + $0x64] sm:$0xff]
        %v2331 = vld [vmem:[%s2113 + $0x6c] sm:$0xff]
        %v2332 = vld [vmem:[%s2113 + $0x7c] sm:$0xff]
        %v2333 = vld [vmem:[%s2113 + $0x84] sm:$0xff]
        %v2334 = vld [vmem:[%s2113 + $0x94] sm:$0xff]
        %v2335 = vld [vmem:[%s2113 + $0x9c] sm:$0xff]
        %v2336 = vld [vmem:[%s2113 + $0xac] sm:$0xff]
        %v2337 = vld [vmem:[%s2113 + $0xb4] sm:$0xff]
        %v2338 = vlaneseq
        %v2339 = vshrl.u32 %v2338, 7
        %v2340 = vsub.s32 0, %v2339
        %v2341 = vrot.slane %v641, %v2340
        %v2342 = vmul.f32 %v2322, %v2341
        %v2343 = vmul.f32 %v2323, %v2341
        %v2344 = vmul.f32 %v2324, %v2341
        %v2345 = vmul.f32 %v2325, %v2341
        %v2346 = vmul.f32 %v2326, %v2341
        %v2347 = vmul.f32 %v2327, %v2341
        %v2348 = vmul.f32 %v2328, %v2341
        %v2349 = vmul.f32 %v2329, %v2341
        %v2350 = vmul.f32 %v2330, %v2341
        %v2351 = vmul.f32 %v2331, %v2341
        %v2352 = vmul.f32 %v2332, %v2341
        %v2353 = vmul.f32 %v2333, %v2341
        %v2354 = vmul.f32 %v2334, %v2341
        %v2355 = vmul.f32 %v2335, %v2341
        %v2356 = vmul.f32 %v2336, %v2341
        %v2357 = vmul.f32 %v2337, %v2341
        %v2358 = vadd.f32 %v2306, %v2342
        %v2359 = vadd.f32 %v2307, %v2343
        %v2360 = vadd.f32 %v2308, %v2344
        %v2361 = vadd.f32 %v2309, %v2345
        %v2362 = vadd.f32 %v2310, %v2346
        %v2363 = vadd.f32 %v2311, %v2347
        %v2364 = vadd.f32 %v2312, %v2348
        %v2365 = vadd.f32 %v2313, %v2349
        %v2366 = vadd.f32 %v2314, %v2350
        %v2367 = vadd.f32 %v2315, %v2351
        %v2368 = vadd.f32 %v2316, %v2352
        %v2369 = vadd.f32 %v2317, %v2353
        %v2370 = vadd.f32 %v2318, %v2354
        %v2371 = vadd.f32 %v2319, %v2355
        %v2372 = vadd.f32 %v2320, %v2356
        %v2373 = vadd.f32 %v2321, %v2357
        %v2374 = vld [vmem:[%s2113 + $0x5] sm:$0xff]
        %v2375 = vld [vmem:[%s2113 + $0xd] sm:$0xff]
        %v2376 = vld [vmem:[%s2113 + $0x1d] sm:$0xff]
        %v2377 = vld [vmem:[%s2113 + $0x25] sm:$0xff]
        %v2378 = vld [vmem:[%s2113 + $0x35] sm:$0xff]
        %v2379 = vld [vmem:[%s2113 + $0x3d] sm:$0xff]
        %v2380 = vld [vmem:[%s2113 + $0x4d] sm:$0xff]
        %v2381 = vld [vmem:[%s2113 + $0x55] sm:$0xff]
        %v2382 = vld [vmem:[%s2113 + $0x65] sm:$0xff]
        %v2383 = vld [vmem:[%s2113 + $0x6d] sm:$0xff]
        %v2384 = vld [vmem:[%s2113 + $0x7d] sm:$0xff]
        %v2385 = vld [vmem:[%s2113 + $0x85] sm:$0xff]
        %v2386 = vld [vmem:[%s2113 + $0x95] sm:$0xff]
        %v2387 = vld [vmem:[%s2113 + $0x9d] sm:$0xff]
        %v2388 = vld [vmem:[%s2113 + $0xad] sm:$0xff]
        %v2389 = vld [vmem:[%s2113 + $0xb5] sm:$0xff]
        %v2390 = vlaneseq
        %v2391 = vshrl.u32 %v2390, 7
        %v2392 = vsub.s32 1, %v2391
        %v2393 = vrot.slane %v641, %v2392
        %v2394 = vmul.f32 %v2374, %v2393
        %v2395 = vmul.f32 %v2375, %v2393
        %v2396 = vmul.f32 %v2376, %v2393
        %v2397 = vmul.f32 %v2377, %v2393
        %v2398 = vmul.f32 %v2378, %v2393
        %v2399 = vmul.f32 %v2379, %v2393
        %v2400 = vmul.f32 %v2380, %v2393
        %v2401 = vmul.f32 %v2381, %v2393
        %v2402 = vmul.f32 %v2382, %v2393
        %v2403 = vmul.f32 %v2383, %v2393
        %v2404 = vmul.f32 %v2384, %v2393
        %v2405 = vmul.f32 %v2385, %v2393
        %v2406 = vmul.f32 %v2386, %v2393
        %v2407 = vmul.f32 %v2387, %v2393
        %v2408 = vmul.f32 %v2388, %v2393
        %v2409 = vmul.f32 %v2389, %v2393
        %v2410 = vadd.f32 %v2358, %v2394
        %v2411 = vadd.f32 %v2359, %v2395
        %v2412 = vadd.f32 %v2360, %v2396
        %v2413 = vadd.f32 %v2361, %v2397
        %v2414 = vadd.f32 %v2362, %v2398
        %v2415 = vadd.f32 %v2363, %v2399
        %v2416 = vadd.f32 %v2364, %v2400
        %v2417 = vadd.f32 %v2365, %v2401
        %v2418 = vadd.f32 %v2366, %v2402
        %v2419 = vadd.f32 %v2367, %v2403
        %v2420 = vadd.f32 %v2368, %v2404
        %v2421 = vadd.f32 %v2369, %v2405
        %v2422 = vadd.f32 %v2370, %v2406
        %v2423 = vadd.f32 %v2371, %v2407
        %v2424 = vadd.f32 %v2372, %v2408
        %v2425 = vadd.f32 %v2373, %v2409
        %v2426 = vld [vmem:[%s2113 + $0x6] sm:$0xff]
        %v2427 = vld [vmem:[%s2113 + $0xe] sm:$0xff]
        %v2428 = vld [vmem:[%s2113 + $0x1e] sm:$0xff]
        %v2429 = vld [vmem:[%s2113 + $0x26] sm:$0xff]
        %v2430 = vld [vmem:[%s2113 + $0x36] sm:$0xff]
        %v2431 = vld [vmem:[%s2113 + $0x3e] sm:$0xff]
        %v2432 = vld [vmem:[%s2113 + $0x4e] sm:$0xff]
        %v2433 = vld [vmem:[%s2113 + $0x56] sm:$0xff]
        %v2434 = vld [vmem:[%s2113 + $0x66] sm:$0xff]
        %v2435 = vld [vmem:[%s2113 + $0x6e] sm:$0xff]
        %v2436 = vld [vmem:[%s2113 + $0x7e] sm:$0xff]
        %v2437 = vld [vmem:[%s2113 + $0x86] sm:$0xff]
        %v2438 = vld [vmem:[%s2113 + $0x96] sm:$0xff]
        %v2439 = vld [vmem:[%s2113 + $0x9e] sm:$0xff]
        %v2440 = vld [vmem:[%s2113 + $0xae] sm:$0xff]
        %v2441 = vld [vmem:[%s2113 + $0xb6] sm:$0xff]
        %v2442 = vlaneseq
        %v2443 = vshrl.u32 %v2442, 7
        %v2444 = vsub.s32 2, %v2443
        %v2445 = vrot.slane %v641, %v2444
        %v2446 = vmul.f32 %v2426, %v2445
        %v2447 = vmul.f32 %v2427, %v2445
        %v2448 = vmul.f32 %v2428, %v2445
        %v2449 = vmul.f32 %v2429, %v2445
        %v2450 = vmul.f32 %v2430, %v2445
        %v2451 = vmul.f32 %v2431, %v2445
        %v2452 = vmul.f32 %v2432, %v2445
        %v2453 = vmul.f32 %v2433, %v2445
        %v2454 = vmul.f32 %v2434, %v2445
        %v2455 = vmul.f32 %v2435, %v2445
        %v2456 = vmul.f32 %v2436, %v2445
        %v2457 = vmul.f32 %v2437, %v2445
        %v2458 = vmul.f32 %v2438, %v2445
        %v2459 = vmul.f32 %v2439, %v2445
        %v2460 = vmul.f32 %v2440, %v2445
        %v2461 = vmul.f32 %v2441, %v2445
        %v2462 = vadd.f32 %v2410, %v2446
        %v2463 = vadd.f32 %v2411, %v2447
        %v2464 = vadd.f32 %v2412, %v2448
        %v2465 = vadd.f32 %v2413, %v2449
        %v2466 = vadd.f32 %v2414, %v2450
        %v2467 = vadd.f32 %v2415, %v2451
        %v2468 = vadd.f32 %v2416, %v2452
        %v2469 = vadd.f32 %v2417, %v2453
        %v2470 = vadd.f32 %v2418, %v2454
        %v2471 = vadd.f32 %v2419, %v2455
        %v2472 = vadd.f32 %v2420, %v2456
        %v2473 = vadd.f32 %v2421, %v2457
        %v2474 = vadd.f32 %v2422, %v2458
        %v2475 = vadd.f32 %v2423, %v2459
        %v2476 = vadd.f32 %v2424, %v2460
        %v2477 = vadd.f32 %v2425, %v2461
        %s2478 = sadd.s32 %s636, 5
        %s2479 = smul.u32 %s2478, 24
        %s2480 = scalar_lea.vmem [#allocation2], %s2479
        %v2481 = vld [vmem:[%s2480] sm:$0xff]
        %v2482 = vld [vmem:[%s2480 + $0x8] sm:$0xff]
        %v2483 = vld [vmem:[%s2480 + $0x18] sm:$0xff]
        %v2484 = vld [vmem:[%s2480 + $0x20] sm:$0xff]
        %v2485 = vld [vmem:[%s2480 + $0x30] sm:$0xff]
        %v2486 = vld [vmem:[%s2480 + $0x38] sm:$0xff]
        %v2487 = vld [vmem:[%s2480 + $0x48] sm:$0xff]
        %v2488 = vld [vmem:[%s2480 + $0x50] sm:$0xff]
        %v2489 = vld [vmem:[%s2480 + $0x60] sm:$0xff]
        %v2490 = vld [vmem:[%s2480 + $0x68] sm:$0xff]
        %v2491 = vld [vmem:[%s2480 + $0x78] sm:$0xff]
        %v2492 = vld [vmem:[%s2480 + $0x80] sm:$0xff]
        %v2493 = vld [vmem:[%s2480 + $0x90] sm:$0xff]
        %v2494 = vld [vmem:[%s2480 + $0x98] sm:$0xff]
        %v2495 = vld [vmem:[%s2480 + $0xa8] sm:$0xff]
        %v2496 = vld [vmem:[%s2480 + $0xb0] sm:$0xff]
        %v2497 = vlaneseq
        %v2498 = vshrl.u32 %v2497, 7
        %v2499 = vsub.s32 3, %v2498
        %v2500 = vrot.slane %v641, %v2499
        %v2501 = vmul.f32 %v2481, %v2500
        %v2502 = vmul.f32 %v2482, %v2500
        %v2503 = vmul.f32 %v2483, %v2500
        %v2504 = vmul.f32 %v2484, %v2500
        %v2505 = vmul.f32 %v2485, %v2500
        %v2506 = vmul.f32 %v2486, %v2500
        %v2507 = vmul.f32 %v2487, %v2500
        %v2508 = vmul.f32 %v2488, %v2500
        %v2509 = vmul.f32 %v2489, %v2500
        %v2510 = vmul.f32 %v2490, %v2500
        %v2511 = vmul.f32 %v2491, %v2500
        %v2512 = vmul.f32 %v2492, %v2500
        %v2513 = vmul.f32 %v2493, %v2500
        %v2514 = vmul.f32 %v2494, %v2500
        %v2515 = vmul.f32 %v2495, %v2500
        %v2516 = vmul.f32 %v2496, %v2500
        %v2517 = vadd.f32 %v2462, %v2501
        %v2518 = vadd.f32 %v2463, %v2502
        %v2519 = vadd.f32 %v2464, %v2503
        %v2520 = vadd.f32 %v2465, %v2504
        %v2521 = vadd.f32 %v2466, %v2505
        %v2522 = vadd.f32 %v2467, %v2506
        %v2523 = vadd.f32 %v2468, %v2507
        %v2524 = vadd.f32 %v2469, %v2508
        %v2525 = vadd.f32 %v2470, %v2509
        %v2526 = vadd.f32 %v2471, %v2510
        %v2527 = vadd.f32 %v2472, %v2511
        %v2528 = vadd.f32 %v2473, %v2512
        %v2529 = vadd.f32 %v2474, %v2513
        %v2530 = vadd.f32 %v2475, %v2514
        %v2531 = vadd.f32 %v2476, %v2515
        %v2532 = vadd.f32 %v2477, %v2516
        %v2533 = vld [vmem:[%s2480 + $0x1] sm:$0xff]
        %v2534 = vld [vmem:[%s2480 + $0x9] sm:$0xff]
        %v2535 = vld [vmem:[%s2480 + $0x19] sm:$0xff]
        %v2536 = vld [vmem:[%s2480 + $0x21] sm:$0xff]
        %v2537 = vld [vmem:[%s2480 + $0x31] sm:$0xff]
        %v2538 = vld [vmem:[%s2480 + $0x39] sm:$0xff]
        %v2539 = vld [vmem:[%s2480 + $0x49] sm:$0xff]
        %v2540 = vld [vmem:[%s2480 + $0x51] sm:$0xff]
        %v2541 = vld [vmem:[%s2480 + $0x61] sm:$0xff]
        %v2542 = vld [vmem:[%s2480 + $0x69] sm:$0xff]
        %v2543 = vld [vmem:[%s2480 + $0x79] sm:$0xff]
        %v2544 = vld [vmem:[%s2480 + $0x81] sm:$0xff]
        %v2545 = vld [vmem:[%s2480 + $0x91] sm:$0xff]
        %v2546 = vld [vmem:[%s2480 + $0x99] sm:$0xff]
        %v2547 = vld [vmem:[%s2480 + $0xa9] sm:$0xff]
        %v2548 = vld [vmem:[%s2480 + $0xb1] sm:$0xff]
        %v2549 = vlaneseq
        %v2550 = vshrl.u32 %v2549, 7
        %v2551 = vsub.s32 4, %v2550
        %v2552 = vrot.slane %v641, %v2551
        %v2553 = vmul.f32 %v2533, %v2552
        %v2554 = vmul.f32 %v2534, %v2552
        %v2555 = vmul.f32 %v2535, %v2552
        %v2556 = vmul.f32 %v2536, %v2552
        %v2557 = vmul.f32 %v2537, %v2552
        %v2558 = vmul.f32 %v2538, %v2552
        %v2559 = vmul.f32 %v2539, %v2552
        %v2560 = vmul.f32 %v2540, %v2552
        %v2561 = vmul.f32 %v2541, %v2552
        %v2562 = vmul.f32 %v2542, %v2552
        %v2563 = vmul.f32 %v2543, %v2552
        %v2564 = vmul.f32 %v2544, %v2552
        %v2565 = vmul.f32 %v2545, %v2552
        %v2566 = vmul.f32 %v2546, %v2552
        %v2567 = vmul.f32 %v2547, %v2552
        %v2568 = vmul.f32 %v2548, %v2552
        %v2569 = vadd.f32 %v2517, %v2553
        %v2570 = vadd.f32 %v2518, %v2554
        %v2571 = vadd.f32 %v2519, %v2555
        %v2572 = vadd.f32 %v2520, %v2556
        %v2573 = vadd.f32 %v2521, %v2557
        %v2574 = vadd.f32 %v2522, %v2558
        %v2575 = vadd.f32 %v2523, %v2559
        %v2576 = vadd.f32 %v2524, %v2560
        %v2577 = vadd.f32 %v2525, %v2561
        %v2578 = vadd.f32 %v2526, %v2562
        %v2579 = vadd.f32 %v2527, %v2563
        %v2580 = vadd.f32 %v2528, %v2564
        %v2581 = vadd.f32 %v2529, %v2565
        %v2582 = vadd.f32 %v2530, %v2566
        %v2583 = vadd.f32 %v2531, %v2567
        %v2584 = vadd.f32 %v2532, %v2568
        %v2585 = vld [vmem:[%s2480 + $0x2] sm:$0xff]
        %v2586 = vld [vmem:[%s2480 + $0xa] sm:$0xff]
        %v2587 = vld [vmem:[%s2480 + $0x1a] sm:$0xff]
        %v2588 = vld [vmem:[%s2480 + $0x22] sm:$0xff]
        %v2589 = vld [vmem:[%s2480 + $0x32] sm:$0xff]
        %v2590 = vld [vmem:[%s2480 + $0x3a] sm:$0xff]
        %v2591 = vld [vmem:[%s2480 + $0x4a] sm:$0xff]
        %v2592 = vld [vmem:[%s2480 + $0x52] sm:$0xff]
        %v2593 = vld [vmem:[%s2480 + $0x62] sm:$0xff]
        %v2594 = vld [vmem:[%s2480 + $0x6a] sm:$0xff]
        %v2595 = vld [vmem:[%s2480 + $0x7a] sm:$0xff]
        %v2596 = vld [vmem:[%s2480 + $0x82] sm:$0xff]
        %v2597 = vld [vmem:[%s2480 + $0x92] sm:$0xff]
        %v2598 = vld [vmem:[%s2480 + $0x9a] sm:$0xff]
        %v2599 = vld [vmem:[%s2480 + $0xaa] sm:$0xff]
        %v2600 = vld [vmem:[%s2480 + $0xb2] sm:$0xff]
        %v2601 = vlaneseq
        %v2602 = vshrl.u32 %v2601, 7
        %v2603 = vsub.s32 5, %v2602
        %v2604 = vrot.slane %v641, %v2603
        %v2605 = vmul.f32 %v2585, %v2604
        %v2606 = vmul.f32 %v2586, %v2604
        %v2607 = vmul.f32 %v2587, %v2604
        %v2608 = vmul.f32 %v2588, %v2604
        %v2609 = vmul.f32 %v2589, %v2604
        %v2610 = vmul.f32 %v2590, %v2604
        %v2611 = vmul.f32 %v2591, %v2604
        %v2612 = vmul.f32 %v2592, %v2604
        %v2613 = vmul.f32 %v2593, %v2604
        %v2614 = vmul.f32 %v2594, %v2604
        %v2615 = vmul.f32 %v2595, %v2604
        %v2616 = vmul.f32 %v2596, %v2604
        %v2617 = vmul.f32 %v2597, %v2604
        %v2618 = vmul.f32 %v2598, %v2604
        %v2619 = vmul.f32 %v2599, %v2604
        %v2620 = vmul.f32 %v2600, %v2604
        %v2621 = vadd.f32 %v2569, %v2605
        %v2622 = vadd.f32 %v2570, %v2606
        %v2623 = vadd.f32 %v2571, %v2607
        %v2624 = vadd.f32 %v2572, %v2608
        %v2625 = vadd.f32 %v2573, %v2609
        %v2626 = vadd.f32 %v2574, %v2610
        %v2627 = vadd.f32 %v2575, %v2611
        %v2628 = vadd.f32 %v2576, %v2612
        %v2629 = vadd.f32 %v2577, %v2613
        %v2630 = vadd.f32 %v2578, %v2614
        %v2631 = vadd.f32 %v2579, %v2615
        %v2632 = vadd.f32 %v2580, %v2616
        %v2633 = vadd.f32 %v2581, %v2617
        %v2634 = vadd.f32 %v2582, %v2618
        %v2635 = vadd.f32 %v2583, %v2619
        %v2636 = vadd.f32 %v2584, %v2620
        %v2637 = vld [vmem:[%s2480 + $0x3] sm:$0xff]
        %v2638 = vld [vmem:[%s2480 + $0xb] sm:$0xff]
        %v2639 = vld [vmem:[%s2480 + $0x1b] sm:$0xff]
        %v2640 = vld [vmem:[%s2480 + $0x23] sm:$0xff]
        %v2641 = vld [vmem:[%s2480 + $0x33] sm:$0xff]
        %v2642 = vld [vmem:[%s2480 + $0x3b] sm:$0xff]
        %v2643 = vld [vmem:[%s2480 + $0x4b] sm:$0xff]
        %v2644 = vld [vmem:[%s2480 + $0x53] sm:$0xff]
        %v2645 = vld [vmem:[%s2480 + $0x63] sm:$0xff]
        %v2646 = vld [vmem:[%s2480 + $0x6b] sm:$0xff]
        %v2647 = vld [vmem:[%s2480 + $0x7b] sm:$0xff]
        %v2648 = vld [vmem:[%s2480 + $0x83] sm:$0xff]
        %v2649 = vld [vmem:[%s2480 + $0x93] sm:$0xff]
        %v2650 = vld [vmem:[%s2480 + $0x9b] sm:$0xff]
        %v2651 = vld [vmem:[%s2480 + $0xab] sm:$0xff]
        %v2652 = vld [vmem:[%s2480 + $0xb3] sm:$0xff]
        %v2653 = vlaneseq
        %v2654 = vshrl.u32 %v2653, 7
        %v2655 = vsub.s32 6, %v2654
        %v2656 = vrot.slane %v641, %v2655
        %v2657 = vmul.f32 %v2637, %v2656
        %v2658 = vmul.f32 %v2638, %v2656
        %v2659 = vmul.f32 %v2639, %v2656
        %v2660 = vmul.f32 %v2640, %v2656
        %v2661 = vmul.f32 %v2641, %v2656
        %v2662 = vmul.f32 %v2642, %v2656
        %v2663 = vmul.f32 %v2643, %v2656
        %v2664 = vmul.f32 %v2644, %v2656
        %v2665 = vmul.f32 %v2645, %v2656
        %v2666 = vmul.f32 %v2646, %v2656
        %v2667 = vmul.f32 %v2647, %v2656
        %v2668 = vmul.f32 %v2648, %v2656
        %v2669 = vmul.f32 %v2649, %v2656
        %v2670 = vmul.f32 %v2650, %v2656
        %v2671 = vmul.f32 %v2651, %v2656
        %v2672 = vmul.f32 %v2652, %v2656
        %v2673 = vadd.f32 %v2621, %v2657
        %v2674 = vadd.f32 %v2622, %v2658
        %v2675 = vadd.f32 %v2623, %v2659
        %v2676 = vadd.f32 %v2624, %v2660
        %v2677 = vadd.f32 %v2625, %v2661
        %v2678 = vadd.f32 %v2626, %v2662
        %v2679 = vadd.f32 %v2627, %v2663
        %v2680 = vadd.f32 %v2628, %v2664
        %v2681 = vadd.f32 %v2629, %v2665
        %v2682 = vadd.f32 %v2630, %v2666
        %v2683 = vadd.f32 %v2631, %v2667
        %v2684 = vadd.f32 %v2632, %v2668
        %v2685 = vadd.f32 %v2633, %v2669
        %v2686 = vadd.f32 %v2634, %v2670
        %v2687 = vadd.f32 %v2635, %v2671
        %v2688 = vadd.f32 %v2636, %v2672
        %v2689 = vld [vmem:[%s2480 + $0x4] sm:$0xff]
        %v2690 = vld [vmem:[%s2480 + $0xc] sm:$0xff]
        %v2691 = vld [vmem:[%s2480 + $0x1c] sm:$0xff]
        %v2692 = vld [vmem:[%s2480 + $0x24] sm:$0xff]
        %v2693 = vld [vmem:[%s2480 + $0x34] sm:$0xff]
        %v2694 = vld [vmem:[%s2480 + $0x3c] sm:$0xff]
        %v2695 = vld [vmem:[%s2480 + $0x4c] sm:$0xff]
        %v2696 = vld [vmem:[%s2480 + $0x54] sm:$0xff]
        %v2697 = vld [vmem:[%s2480 + $0x64] sm:$0xff]
        %v2698 = vld [vmem:[%s2480 + $0x6c] sm:$0xff]
        %v2699 = vld [vmem:[%s2480 + $0x7c] sm:$0xff]
        %v2700 = vld [vmem:[%s2480 + $0x84] sm:$0xff]
        %v2701 = vld [vmem:[%s2480 + $0x94] sm:$0xff]
        %v2702 = vld [vmem:[%s2480 + $0x9c] sm:$0xff]
        %v2703 = vld [vmem:[%s2480 + $0xac] sm:$0xff]
        %v2704 = vld [vmem:[%s2480 + $0xb4] sm:$0xff]
        %v2705 = vlaneseq
        %v2706 = vshrl.u32 %v2705, 7
        %v2707 = vsub.s32 7, %v2706
        %v2708 = vrot.slane %v641, %v2707
        %v2709 = vmul.f32 %v2689, %v2708
        %v2710 = vmul.f32 %v2690, %v2708
        %v2711 = vmul.f32 %v2691, %v2708
        %v2712 = vmul.f32 %v2692, %v2708
        %v2713 = vmul.f32 %v2693, %v2708
        %v2714 = vmul.f32 %v2694, %v2708
        %v2715 = vmul.f32 %v2695, %v2708
        %v2716 = vmul.f32 %v2696, %v2708
        %v2717 = vmul.f32 %v2697, %v2708
        %v2718 = vmul.f32 %v2698, %v2708
        %v2719 = vmul.f32 %v2699, %v2708
        %v2720 = vmul.f32 %v2700, %v2708
        %v2721 = vmul.f32 %v2701, %v2708
        %v2722 = vmul.f32 %v2702, %v2708
        %v2723 = vmul.f32 %v2703, %v2708
        %v2724 = vmul.f32 %v2704, %v2708
        %v2725 = vadd.f32 %v2673, %v2709
        %v2726 = vadd.f32 %v2674, %v2710
        %v2727 = vadd.f32 %v2675, %v2711
        %v2728 = vadd.f32 %v2676, %v2712
        %v2729 = vadd.f32 %v2677, %v2713
        %v2730 = vadd.f32 %v2678, %v2714
        %v2731 = vadd.f32 %v2679, %v2715
        %v2732 = vadd.f32 %v2680, %v2716
        %v2733 = vadd.f32 %v2681, %v2717
        %v2734 = vadd.f32 %v2682, %v2718
        %v2735 = vadd.f32 %v2683, %v2719
        %v2736 = vadd.f32 %v2684, %v2720
        %v2737 = vadd.f32 %v2685, %v2721
        %v2738 = vadd.f32 %v2686, %v2722
        %v2739 = vadd.f32 %v2687, %v2723
        %v2740 = vadd.f32 %v2688, %v2724
        %v2741 = vld [vmem:[%s2480 + $0x5] sm:$0xff]
        %v2742 = vld [vmem:[%s2480 + $0xd] sm:$0xff]
        %v2743 = vld [vmem:[%s2480 + $0x1d] sm:$0xff]
        %v2744 = vld [vmem:[%s2480 + $0x25] sm:$0xff]
        %v2745 = vld [vmem:[%s2480 + $0x35] sm:$0xff]
        %v2746 = vld [vmem:[%s2480 + $0x3d] sm:$0xff]
        %v2747 = vld [vmem:[%s2480 + $0x4d] sm:$0xff]
        %v2748 = vld [vmem:[%s2480 + $0x55] sm:$0xff]
        %v2749 = vld [vmem:[%s2480 + $0x65] sm:$0xff]
        %v2750 = vld [vmem:[%s2480 + $0x6d] sm:$0xff]
        %v2751 = vld [vmem:[%s2480 + $0x7d] sm:$0xff]
        %v2752 = vld [vmem:[%s2480 + $0x85] sm:$0xff]
        %v2753 = vld [vmem:[%s2480 + $0x95] sm:$0xff]
        %v2754 = vld [vmem:[%s2480 + $0x9d] sm:$0xff]
        %v2755 = vld [vmem:[%s2480 + $0xad] sm:$0xff]
        %v2756 = vld [vmem:[%s2480 + $0xb5] sm:$0xff]
        %v2757 = vlaneseq
        %v2758 = vshrl.u32 %v2757, 7
        %v2759 = vsub.s32 0, %v2758
        %v2760 = vrot.slane %v642, %v2759
        %v2761 = vmul.f32 %v2741, %v2760
        %v2762 = vmul.f32 %v2742, %v2760
        %v2763 = vmul.f32 %v2743, %v2760
        %v2764 = vmul.f32 %v2744, %v2760
        %v2765 = vmul.f32 %v2745, %v2760
        %v2766 = vmul.f32 %v2746, %v2760
        %v2767 = vmul.f32 %v2747, %v2760
        %v2768 = vmul.f32 %v2748, %v2760
        %v2769 = vmul.f32 %v2749, %v2760
        %v2770 = vmul.f32 %v2750, %v2760
        %v2771 = vmul.f32 %v2751, %v2760
        %v2772 = vmul.f32 %v2752, %v2760
        %v2773 = vmul.f32 %v2753, %v2760
        %v2774 = vmul.f32 %v2754, %v2760
        %v2775 = vmul.f32 %v2755, %v2760
        %v2776 = vmul.f32 %v2756, %v2760
        %v2777 = vadd.f32 %v2725, %v2761
        %v2778 = vadd.f32 %v2726, %v2762
        %v2779 = vadd.f32 %v2727, %v2763
        %v2780 = vadd.f32 %v2728, %v2764
        %v2781 = vadd.f32 %v2729, %v2765
        %v2782 = vadd.f32 %v2730, %v2766
        %v2783 = vadd.f32 %v2731, %v2767
        %v2784 = vadd.f32 %v2732, %v2768
        %v2785 = vadd.f32 %v2733, %v2769
        %v2786 = vadd.f32 %v2734, %v2770
        %v2787 = vadd.f32 %v2735, %v2771
        %v2788 = vadd.f32 %v2736, %v2772
        %v2789 = vadd.f32 %v2737, %v2773
        %v2790 = vadd.f32 %v2738, %v2774
        %v2791 = vadd.f32 %v2739, %v2775
        %v2792 = vadd.f32 %v2740, %v2776
        %v2793 = vld [vmem:[%s2480 + $0x6] sm:$0xff]
        %v2794 = vld [vmem:[%s2480 + $0xe] sm:$0xff]
        %v2795 = vld [vmem:[%s2480 + $0x1e] sm:$0xff]
        %v2796 = vld [vmem:[%s2480 + $0x26] sm:$0xff]
        %v2797 = vld [vmem:[%s2480 + $0x36] sm:$0xff]
        %v2798 = vld [vmem:[%s2480 + $0x3e] sm:$0xff]
        %v2799 = vld [vmem:[%s2480 + $0x4e] sm:$0xff]
        %v2800 = vld [vmem:[%s2480 + $0x56] sm:$0xff]
        %v2801 = vld [vmem:[%s2480 + $0x66] sm:$0xff]
        %v2802 = vld [vmem:[%s2480 + $0x6e] sm:$0xff]
        %v2803 = vld [vmem:[%s2480 + $0x7e] sm:$0xff]
        %v2804 = vld [vmem:[%s2480 + $0x86] sm:$0xff]
        %v2805 = vld [vmem:[%s2480 + $0x96] sm:$0xff]
        %v2806 = vld [vmem:[%s2480 + $0x9e] sm:$0xff]
        %v2807 = vld [vmem:[%s2480 + $0xae] sm:$0xff]
        %v2808 = vld [vmem:[%s2480 + $0xb6] sm:$0xff]
        %v2809 = vlaneseq
        %v2810 = vshrl.u32 %v2809, 7
        %v2811 = vsub.s32 1, %v2810
        %v2812 = vrot.slane %v642, %v2811
        %v2813 = vmul.f32 %v2793, %v2812
        %v2814 = vmul.f32 %v2794, %v2812
        %v2815 = vmul.f32 %v2795, %v2812
        %v2816 = vmul.f32 %v2796, %v2812
        %v2817 = vmul.f32 %v2797, %v2812
        %v2818 = vmul.f32 %v2798, %v2812
        %v2819 = vmul.f32 %v2799, %v2812
        %v2820 = vmul.f32 %v2800, %v2812
        %v2821 = vmul.f32 %v2801, %v2812
        %v2822 = vmul.f32 %v2802, %v2812
        %v2823 = vmul.f32 %v2803, %v2812
        %v2824 = vmul.f32 %v2804, %v2812
        %v2825 = vmul.f32 %v2805, %v2812
        %v2826 = vmul.f32 %v2806, %v2812
        %v2827 = vmul.f32 %v2807, %v2812
        %v2828 = vmul.f32 %v2808, %v2812
        %v2829 = vadd.f32 %v2777, %v2813
        %v2830 = vadd.f32 %v2778, %v2814
        %v2831 = vadd.f32 %v2779, %v2815
        %v2832 = vadd.f32 %v2780, %v2816
        %v2833 = vadd.f32 %v2781, %v2817
        %v2834 = vadd.f32 %v2782, %v2818
        %v2835 = vadd.f32 %v2783, %v2819
        %v2836 = vadd.f32 %v2784, %v2820
        %v2837 = vadd.f32 %v2785, %v2821
        %v2838 = vadd.f32 %v2786, %v2822
        %v2839 = vadd.f32 %v2787, %v2823
        %v2840 = vadd.f32 %v2788, %v2824
        %v2841 = vadd.f32 %v2789, %v2825
        %v2842 = vadd.f32 %v2790, %v2826
        %v2843 = vadd.f32 %v2791, %v2827
        %v2844 = vadd.f32 %v2792, %v2828
        %s2845 = sadd.s32 %s636, 6
        %s2846 = smul.u32 %s2845, 24
        %s2847 = scalar_lea.vmem [#allocation2], %s2846
        %v2848 = vld [vmem:[%s2847] sm:$0xff]
        %v2849 = vld [vmem:[%s2847 + $0x8] sm:$0xff]
        %v2850 = vld [vmem:[%s2847 + $0x18] sm:$0xff]
        %v2851 = vld [vmem:[%s2847 + $0x20] sm:$0xff]
        %v2852 = vld [vmem:[%s2847 + $0x30] sm:$0xff]
        %v2853 = vld [vmem:[%s2847 + $0x38] sm:$0xff]
        %v2854 = vld [vmem:[%s2847 + $0x48] sm:$0xff]
        %v2855 = vld [vmem:[%s2847 + $0x50] sm:$0xff]
        %v2856 = vld [vmem:[%s2847 + $0x60] sm:$0xff]
        %v2857 = vld [vmem:[%s2847 + $0x68] sm:$0xff]
        %v2858 = vld [vmem:[%s2847 + $0x78] sm:$0xff]
        %v2859 = vld [vmem:[%s2847 + $0x80] sm:$0xff]
        %v2860 = vld [vmem:[%s2847 + $0x90] sm:$0xff]
        %v2861 = vld [vmem:[%s2847 + $0x98] sm:$0xff]
        %v2862 = vld [vmem:[%s2847 + $0xa8] sm:$0xff]
        %v2863 = vld [vmem:[%s2847 + $0xb0] sm:$0xff]
        %v2864 = vlaneseq
        %v2865 = vshrl.u32 %v2864, 7
        %v2866 = vsub.s32 2, %v2865
        %v2867 = vrot.slane %v642, %v2866
        %v2868 = vmul.f32 %v2848, %v2867
        %v2869 = vmul.f32 %v2849, %v2867
        %v2870 = vmul.f32 %v2850, %v2867
        %v2871 = vmul.f32 %v2851, %v2867
        %v2872 = vmul.f32 %v2852, %v2867
        %v2873 = vmul.f32 %v2853, %v2867
        %v2874 = vmul.f32 %v2854, %v2867
        %v2875 = vmul.f32 %v2855, %v2867
        %v2876 = vmul.f32 %v2856, %v2867
        %v2877 = vmul.f32 %v2857, %v2867
        %v2878 = vmul.f32 %v2858, %v2867
        %v2879 = vmul.f32 %v2859, %v2867
        %v2880 = vmul.f32 %v2860, %v2867
        %v2881 = vmul.f32 %v2861, %v2867
        %v2882 = vmul.f32 %v2862, %v2867
        %v2883 = vmul.f32 %v2863, %v2867
        %v2884 = vadd.f32 %v2829, %v2868
        %v2885 = vadd.f32 %v2830, %v2869
        %v2886 = vadd.f32 %v2831, %v2870
        %v2887 = vadd.f32 %v2832, %v2871
        %v2888 = vadd.f32 %v2833, %v2872
        %v2889 = vadd.f32 %v2834, %v2873
        %v2890 = vadd.f32 %v2835, %v2874
        %v2891 = vadd.f32 %v2836, %v2875
        %v2892 = vadd.f32 %v2837, %v2876
        %v2893 = vadd.f32 %v2838, %v2877
        %v2894 = vadd.f32 %v2839, %v2878
        %v2895 = vadd.f32 %v2840, %v2879
        %v2896 = vadd.f32 %v2841, %v2880
        %v2897 = vadd.f32 %v2842, %v2881
        %v2898 = vadd.f32 %v2843, %v2882
        %v2899 = vadd.f32 %v2844, %v2883
        %v2900 = vld [vmem:[%s2847 + $0x1] sm:$0xff]
        %v2901 = vld [vmem:[%s2847 + $0x9] sm:$0xff]
        %v2902 = vld [vmem:[%s2847 + $0x19] sm:$0xff]
        %v2903 = vld [vmem:[%s2847 + $0x21] sm:$0xff]
        %v2904 = vld [vmem:[%s2847 + $0x31] sm:$0xff]
        %v2905 = vld [vmem:[%s2847 + $0x39] sm:$0xff]
        %v2906 = vld [vmem:[%s2847 + $0x49] sm:$0xff]
        %v2907 = vld [vmem:[%s2847 + $0x51] sm:$0xff]
        %v2908 = vld [vmem:[%s2847 + $0x61] sm:$0xff]
        %v2909 = vld [vmem:[%s2847 + $0x69] sm:$0xff]
        %v2910 = vld [vmem:[%s2847 + $0x79] sm:$0xff]
        %v2911 = vld [vmem:[%s2847 + $0x81] sm:$0xff]
        %v2912 = vld [vmem:[%s2847 + $0x91] sm:$0xff]
        %v2913 = vld [vmem:[%s2847 + $0x99] sm:$0xff]
        %v2914 = vld [vmem:[%s2847 + $0xa9] sm:$0xff]
        %v2915 = vld [vmem:[%s2847 + $0xb1] sm:$0xff]
        %v2916 = vlaneseq
        %v2917 = vshrl.u32 %v2916, 7
        %v2918 = vsub.s32 3, %v2917
        %v2919 = vrot.slane %v642, %v2918
        %v2920 = vmul.f32 %v2900, %v2919
        %v2921 = vmul.f32 %v2901, %v2919
        %v2922 = vmul.f32 %v2902, %v2919
        %v2923 = vmul.f32 %v2903, %v2919
        %v2924 = vmul.f32 %v2904, %v2919
        %v2925 = vmul.f32 %v2905, %v2919
        %v2926 = vmul.f32 %v2906, %v2919
        %v2927 = vmul.f32 %v2907, %v2919
        %v2928 = vmul.f32 %v2908, %v2919
        %v2929 = vmul.f32 %v2909, %v2919
        %v2930 = vmul.f32 %v2910, %v2919
        %v2931 = vmul.f32 %v2911, %v2919
        %v2932 = vmul.f32 %v2912, %v2919
        %v2933 = vmul.f32 %v2913, %v2919
        %v2934 = vmul.f32 %v2914, %v2919
        %v2935 = vmul.f32 %v2915, %v2919
        %v2936 = vadd.f32 %v2884, %v2920
        %v2937 = vadd.f32 %v2885, %v2921
        %v2938 = vadd.f32 %v2886, %v2922
        %v2939 = vadd.f32 %v2887, %v2923
        %v2940 = vadd.f32 %v2888, %v2924
        %v2941 = vadd.f32 %v2889, %v2925
        %v2942 = vadd.f32 %v2890, %v2926
        %v2943 = vadd.f32 %v2891, %v2927
        %v2944 = vadd.f32 %v2892, %v2928
        %v2945 = vadd.f32 %v2893, %v2929
        %v2946 = vadd.f32 %v2894, %v2930
        %v2947 = vadd.f32 %v2895, %v2931
        %v2948 = vadd.f32 %v2896, %v2932
        %v2949 = vadd.f32 %v2897, %v2933
        %v2950 = vadd.f32 %v2898, %v2934
        %v2951 = vadd.f32 %v2899, %v2935
        %v2952 = vld [vmem:[%s2847 + $0x2] sm:$0xff]
        %v2953 = vld [vmem:[%s2847 + $0xa] sm:$0xff]
        %v2954 = vld [vmem:[%s2847 + $0x1a] sm:$0xff]
        %v2955 = vld [vmem:[%s2847 + $0x22] sm:$0xff]
        %v2956 = vld [vmem:[%s2847 + $0x32] sm:$0xff]
        %v2957 = vld [vmem:[%s2847 + $0x3a] sm:$0xff]
        %v2958 = vld [vmem:[%s2847 + $0x4a] sm:$0xff]
        %v2959 = vld [vmem:[%s2847 + $0x52] sm:$0xff]
        %v2960 = vld [vmem:[%s2847 + $0x62] sm:$0xff]
        %v2961 = vld [vmem:[%s2847 + $0x6a] sm:$0xff]
        %v2962 = vld [vmem:[%s2847 + $0x7a] sm:$0xff]
        %v2963 = vld [vmem:[%s2847 + $0x82] sm:$0xff]
        %v2964 = vld [vmem:[%s2847 + $0x92] sm:$0xff]
        %v2965 = vld [vmem:[%s2847 + $0x9a] sm:$0xff]
        %v2966 = vld [vmem:[%s2847 + $0xaa] sm:$0xff]
        %v2967 = vld [vmem:[%s2847 + $0xb2] sm:$0xff]
        %v2968 = vlaneseq
        %v2969 = vshrl.u32 %v2968, 7
        %v2970 = vsub.s32 4, %v2969
        %v2971 = vrot.slane %v642, %v2970
        %v2972 = vmul.f32 %v2952, %v2971
        %v2973 = vmul.f32 %v2953, %v2971
        %v2974 = vmul.f32 %v2954, %v2971
        %v2975 = vmul.f32 %v2955, %v2971
        %v2976 = vmul.f32 %v2956, %v2971
        %v2977 = vmul.f32 %v2957, %v2971
        %v2978 = vmul.f32 %v2958, %v2971
        %v2979 = vmul.f32 %v2959, %v2971
        %v2980 = vmul.f32 %v2960, %v2971
        %v2981 = vmul.f32 %v2961, %v2971
        %v2982 = vmul.f32 %v2962, %v2971
        %v2983 = vmul.f32 %v2963, %v2971
        %v2984 = vmul.f32 %v2964, %v2971
        %v2985 = vmul.f32 %v2965, %v2971
        %v2986 = vmul.f32 %v2966, %v2971
        %v2987 = vmul.f32 %v2967, %v2971
        %v2988 = vadd.f32 %v2936, %v2972
        %v2989 = vadd.f32 %v2937, %v2973
        %v2990 = vadd.f32 %v2938, %v2974
        %v2991 = vadd.f32 %v2939, %v2975
        %v2992 = vadd.f32 %v2940, %v2976
        %v2993 = vadd.f32 %v2941, %v2977
        %v2994 = vadd.f32 %v2942, %v2978
        %v2995 = vadd.f32 %v2943, %v2979
        %v2996 = vadd.f32 %v2944, %v2980
        %v2997 = vadd.f32 %v2945, %v2981
        %v2998 = vadd.f32 %v2946, %v2982
        %v2999 = vadd.f32 %v2947, %v2983
        %v3000 = vadd.f32 %v2948, %v2984
        %v3001 = vadd.f32 %v2949, %v2985
        %v3002 = vadd.f32 %v2950, %v2986
        %v3003 = vadd.f32 %v2951, %v2987
        %v3004 = vld [vmem:[%s2847 + $0x3] sm:$0xff]
        %v3005 = vld [vmem:[%s2847 + $0xb] sm:$0xff]
        %v3006 = vld [vmem:[%s2847 + $0x1b] sm:$0xff]
        %v3007 = vld [vmem:[%s2847 + $0x23] sm:$0xff]
        %v3008 = vld [vmem:[%s2847 + $0x33] sm:$0xff]
        %v3009 = vld [vmem:[%s2847 + $0x3b] sm:$0xff]
        %v3010 = vld [vmem:[%s2847 + $0x4b] sm:$0xff]
        %v3011 = vld [vmem:[%s2847 + $0x53] sm:$0xff]
        %v3012 = vld [vmem:[%s2847 + $0x63] sm:$0xff]
        %v3013 = vld [vmem:[%s2847 + $0x6b] sm:$0xff]
        %v3014 = vld [vmem:[%s2847 + $0x7b] sm:$0xff]
        %v3015 = vld [vmem:[%s2847 + $0x83] sm:$0xff]
        %v3016 = vld [vmem:[%s2847 + $0x93] sm:$0xff]
        %v3017 = vld [vmem:[%s2847 + $0x9b] sm:$0xff]
        %v3018 = vld [vmem:[%s2847 + $0xab] sm:$0xff]
        %v3019 = vld [vmem:[%s2847 + $0xb3] sm:$0xff]
        %v3020 = vlaneseq
        %v3021 = vshrl.u32 %v3020, 7
        %v3022 = vsub.s32 5, %v3021
        %v3023 = vrot.slane %v642, %v3022
        %v3024 = vmul.f32 %v3004, %v3023
        %v3025 = vmul.f32 %v3005, %v3023
        %v3026 = vmul.f32 %v3006, %v3023
        %v3027 = vmul.f32 %v3007, %v3023
        %v3028 = vmul.f32 %v3008, %v3023
        %v3029 = vmul.f32 %v3009, %v3023
        %v3030 = vmul.f32 %v3010, %v3023
        %v3031 = vmul.f32 %v3011, %v3023
        %v3032 = vmul.f32 %v3012, %v3023
        %v3033 = vmul.f32 %v3013, %v3023
        %v3034 = vmul.f32 %v3014, %v3023
        %v3035 = vmul.f32 %v3015, %v3023
        %v3036 = vmul.f32 %v3016, %v3023
        %v3037 = vmul.f32 %v3017, %v3023
        %v3038 = vmul.f32 %v3018, %v3023
        %v3039 = vmul.f32 %v3019, %v3023
        %v3040 = vadd.f32 %v2988, %v3024
        %v3041 = vadd.f32 %v2989, %v3025
        %v3042 = vadd.f32 %v2990, %v3026
        %v3043 = vadd.f32 %v2991, %v3027
        %v3044 = vadd.f32 %v2992, %v3028
        %v3045 = vadd.f32 %v2993, %v3029
        %v3046 = vadd.f32 %v2994, %v3030
        %v3047 = vadd.f32 %v2995, %v3031
        %v3048 = vadd.f32 %v2996, %v3032
        %v3049 = vadd.f32 %v2997, %v3033
        %v3050 = vadd.f32 %v2998, %v3034
        %v3051 = vadd.f32 %v2999, %v3035
        %v3052 = vadd.f32 %v3000, %v3036
        %v3053 = vadd.f32 %v3001, %v3037
        %v3054 = vadd.f32 %v3002, %v3038
        %v3055 = vadd.f32 %v3003, %v3039
        %v3056 = vld [vmem:[%s2847 + $0x4] sm:$0xff]
        %v3057 = vld [vmem:[%s2847 + $0xc] sm:$0xff]
        %v3058 = vld [vmem:[%s2847 + $0x1c] sm:$0xff]
        %v3059 = vld [vmem:[%s2847 + $0x24] sm:$0xff]
        %v3060 = vld [vmem:[%s2847 + $0x34] sm:$0xff]
        %v3061 = vld [vmem:[%s2847 + $0x3c] sm:$0xff]
        %v3062 = vld [vmem:[%s2847 + $0x4c] sm:$0xff]
        %v3063 = vld [vmem:[%s2847 + $0x54] sm:$0xff]
        %v3064 = vld [vmem:[%s2847 + $0x64] sm:$0xff]
        %v3065 = vld [vmem:[%s2847 + $0x6c] sm:$0xff]
        %v3066 = vld [vmem:[%s2847 + $0x7c] sm:$0xff]
        %v3067 = vld [vmem:[%s2847 + $0x84] sm:$0xff]
        %v3068 = vld [vmem:[%s2847 + $0x94] sm:$0xff]
        %v3069 = vld [vmem:[%s2847 + $0x9c] sm:$0xff]
        %v3070 = vld [vmem:[%s2847 + $0xac] sm:$0xff]
        %v3071 = vld [vmem:[%s2847 + $0xb4] sm:$0xff]
        %v3072 = vlaneseq
        %v3073 = vshrl.u32 %v3072, 7
        %v3074 = vsub.s32 6, %v3073
        %v3075 = vrot.slane %v642, %v3074
        %v3076 = vmul.f32 %v3056, %v3075
        %v3077 = vmul.f32 %v3057, %v3075
        %v3078 = vmul.f32 %v3058, %v3075
        %v3079 = vmul.f32 %v3059, %v3075
        %v3080 = vmul.f32 %v3060, %v3075
        %v3081 = vmul.f32 %v3061, %v3075
        %v3082 = vmul.f32 %v3062, %v3075
        %v3083 = vmul.f32 %v3063, %v3075
        %v3084 = vmul.f32 %v3064, %v3075
        %v3085 = vmul.f32 %v3065, %v3075
        %v3086 = vmul.f32 %v3066, %v3075
        %v3087 = vmul.f32 %v3067, %v3075
        %v3088 = vmul.f32 %v3068, %v3075
        %v3089 = vmul.f32 %v3069, %v3075
        %v3090 = vmul.f32 %v3070, %v3075
        %v3091 = vmul.f32 %v3071, %v3075
        %v3092 = vadd.f32 %v3040, %v3076
        %v3093 = vadd.f32 %v3041, %v3077
        %v3094 = vadd.f32 %v3042, %v3078
        %v3095 = vadd.f32 %v3043, %v3079
        %v3096 = vadd.f32 %v3044, %v3080
        %v3097 = vadd.f32 %v3045, %v3081
        %v3098 = vadd.f32 %v3046, %v3082
        %v3099 = vadd.f32 %v3047, %v3083
        %v3100 = vadd.f32 %v3048, %v3084
        %v3101 = vadd.f32 %v3049, %v3085
        %v3102 = vadd.f32 %v3050, %v3086
        %v3103 = vadd.f32 %v3051, %v3087
        %v3104 = vadd.f32 %v3052, %v3088
        %v3105 = vadd.f32 %v3053, %v3089
        %v3106 = vadd.f32 %v3054, %v3090
        %v3107 = vadd.f32 %v3055, %v3091
        %v3108 = vld [vmem:[%s2847 + $0x5] sm:$0xff]
        %v3109 = vld [vmem:[%s2847 + $0xd] sm:$0xff]
        %v3110 = vld [vmem:[%s2847 + $0x1d] sm:$0xff]
        %v3111 = vld [vmem:[%s2847 + $0x25] sm:$0xff]
        %v3112 = vld [vmem:[%s2847 + $0x35] sm:$0xff]
        %v3113 = vld [vmem:[%s2847 + $0x3d] sm:$0xff]
        %v3114 = vld [vmem:[%s2847 + $0x4d] sm:$0xff]
        %v3115 = vld [vmem:[%s2847 + $0x55] sm:$0xff]
        %v3116 = vld [vmem:[%s2847 + $0x65] sm:$0xff]
        %v3117 = vld [vmem:[%s2847 + $0x6d] sm:$0xff]
        %v3118 = vld [vmem:[%s2847 + $0x7d] sm:$0xff]
        %v3119 = vld [vmem:[%s2847 + $0x85] sm:$0xff]
        %v3120 = vld [vmem:[%s2847 + $0x95] sm:$0xff]
        %v3121 = vld [vmem:[%s2847 + $0x9d] sm:$0xff]
        %v3122 = vld [vmem:[%s2847 + $0xad] sm:$0xff]
        %v3123 = vld [vmem:[%s2847 + $0xb5] sm:$0xff]
        %v3124 = vlaneseq
        %v3125 = vshrl.u32 %v3124, 7
        %v3126 = vsub.s32 7, %v3125
        %v3127 = vrot.slane %v642, %v3126
        %v3128 = vmul.f32 %v3108, %v3127
        %v3129 = vmul.f32 %v3109, %v3127
        %v3130 = vmul.f32 %v3110, %v3127
        %v3131 = vmul.f32 %v3111, %v3127
        %v3132 = vmul.f32 %v3112, %v3127
        %v3133 = vmul.f32 %v3113, %v3127
        %v3134 = vmul.f32 %v3114, %v3127
        %v3135 = vmul.f32 %v3115, %v3127
        %v3136 = vmul.f32 %v3116, %v3127
        %v3137 = vmul.f32 %v3117, %v3127
        %v3138 = vmul.f32 %v3118, %v3127
        %v3139 = vmul.f32 %v3119, %v3127
        %v3140 = vmul.f32 %v3120, %v3127
        %v3141 = vmul.f32 %v3121, %v3127
        %v3142 = vmul.f32 %v3122, %v3127
        %v3143 = vmul.f32 %v3123, %v3127
        %v3144 = vadd.f32 %v3092, %v3128
        %v3145 = vadd.f32 %v3093, %v3129
        %v3146 = vadd.f32 %v3094, %v3130
        %v3147 = vadd.f32 %v3095, %v3131
        %v3148 = vadd.f32 %v3096, %v3132
        %v3149 = vadd.f32 %v3097, %v3133
        %v3150 = vadd.f32 %v3098, %v3134
        %v3151 = vadd.f32 %v3099, %v3135
        %v3152 = vadd.f32 %v3100, %v3136
        %v3153 = vadd.f32 %v3101, %v3137
        %v3154 = vadd.f32 %v3102, %v3138
        %v3155 = vadd.f32 %v3103, %v3139
        %v3156 = vadd.f32 %v3104, %v3140
        %v3157 = vadd.f32 %v3105, %v3141
        %v3158 = vadd.f32 %v3106, %v3142
        %v3159 = vadd.f32 %v3107, %v3143
        %v3160 = vld [vmem:[%s2847 + $0x6] sm:$0xff]
        %v3161 = vld [vmem:[%s2847 + $0xe] sm:$0xff]
        %v3162 = vld [vmem:[%s2847 + $0x1e] sm:$0xff]
        %v3163 = vld [vmem:[%s2847 + $0x26] sm:$0xff]
        %v3164 = vld [vmem:[%s2847 + $0x36] sm:$0xff]
        %v3165 = vld [vmem:[%s2847 + $0x3e] sm:$0xff]
        %v3166 = vld [vmem:[%s2847 + $0x4e] sm:$0xff]
        %v3167 = vld [vmem:[%s2847 + $0x56] sm:$0xff]
        %v3168 = vld [vmem:[%s2847 + $0x66] sm:$0xff]
        %v3169 = vld [vmem:[%s2847 + $0x6e] sm:$0xff]
        %v3170 = vld [vmem:[%s2847 + $0x7e] sm:$0xff]
        %v3171 = vld [vmem:[%s2847 + $0x86] sm:$0xff]
        %v3172 = vld [vmem:[%s2847 + $0x96] sm:$0xff]
        %v3173 = vld [vmem:[%s2847 + $0x9e] sm:$0xff]
        %v3174 = vld [vmem:[%s2847 + $0xae] sm:$0xff]
        %v3175 = vld [vmem:[%s2847 + $0xb6] sm:$0xff]
        %v3176 = vlaneseq
        %v3177 = vshrl.u32 %v3176, 7
        %v3178 = vsub.s32 0, %v3177
        %v3179 = vrot.slane %v643, %v3178
        %v3180 = vmul.f32 %v3160, %v3179
        %v3181 = vmul.f32 %v3161, %v3179
        %v3182 = vmul.f32 %v3162, %v3179
        %v3183 = vmul.f32 %v3163, %v3179
        %v3184 = vmul.f32 %v3164, %v3179
        %v3185 = vmul.f32 %v3165, %v3179
        %v3186 = vmul.f32 %v3166, %v3179
        %v3187 = vmul.f32 %v3167, %v3179
        %v3188 = vmul.f32 %v3168, %v3179
        %v3189 = vmul.f32 %v3169, %v3179
        %v3190 = vmul.f32 %v3170, %v3179
        %v3191 = vmul.f32 %v3171, %v3179
        %v3192 = vmul.f32 %v3172, %v3179
        %v3193 = vmul.f32 %v3173, %v3179
        %v3194 = vmul.f32 %v3174, %v3179
        %v3195 = vmul.f32 %v3175, %v3179
        %v3196 = vadd.f32 %v3144, %v3180
        %v3197 = vadd.f32 %v3145, %v3181
        %v3198 = vadd.f32 %v3146, %v3182
        %v3199 = vadd.f32 %v3147, %v3183
        %v3200 = vadd.f32 %v3148, %v3184
        %v3201 = vadd.f32 %v3149, %v3185
        %v3202 = vadd.f32 %v3150, %v3186
        %v3203 = vadd.f32 %v3151, %v3187
        %v3204 = vadd.f32 %v3152, %v3188
        %v3205 = vadd.f32 %v3153, %v3189
        %v3206 = vadd.f32 %v3154, %v3190
        %v3207 = vadd.f32 %v3155, %v3191
        %v3208 = vadd.f32 %v3156, %v3192
        %v3209 = vadd.f32 %v3157, %v3193
        %v3210 = vadd.f32 %v3158, %v3194
        %v3211 = vadd.f32 %v3159, %v3195
        %v3212 = vld [vmem:[#allocation8] sm:$0x1]
        %v3214 = vlaneseq
        %v3215 = vshrl.u32 %v3214, 7
        %v3216 = vsub.s32 0, %v3215
        %v3217 = vrot.slane %v3212, %v3216
        %v3219 = vadd.f32 %v3196, %v3217
        %v3220 = vadd.f32 %v3197, %v3217
        %v3221 = vadd.f32 %v3198, %v3217
        %v3222 = vadd.f32 %v3199, %v3217
        %v3223 = vadd.f32 %v3200, %v3217
        %v3224 = vadd.f32 %v3201, %v3217
        %v3225 = vadd.f32 %v3202, %v3217
        %v3226 = vadd.f32 %v3203, %v3217
        %v3227 = vadd.f32 %v3204, %v3217
        %v3228 = vadd.f32 %v3205, %v3217
        %v3229 = vadd.f32 %v3206, %v3217
        %v3230 = vadd.f32 %v3207, %v3217
        %v3231 = vadd.f32 %v3208, %v3217
        %v3232 = vadd.f32 %v3209, %v3217
        %v3233 = vadd.f32 %v3210, %v3217
        %v3234 = vadd.f32 %v3211, %v3217
        %vm3235 = vcmask 261120
        %v3236 = vsel %vm3235, %v3219, 0.0
        %3237 = vadd.xlane.f32.xlu0 %v3236
        %v3238 = vpop.xlane.xlu0 %3237
        %v3239 = vsel %vm3235, %v3220, 0.0
        %3240 = vadd.xlane.f32.xlu0 %v3239
        %v3241 = vpop.xlane.xlu0 %3240
        %v3242 = vsel %vm3235, %v3221, 0.0
        %3243 = vadd.xlane.f32.xlu0 %v3242
        %v3244 = vpop.xlane.xlu0 %3243
        %v3245 = vsel %vm3235, %v3222, 0.0
        %3246 = vadd.xlane.f32.xlu0 %v3245
        %v3247 = vpop.xlane.xlu0 %3246
        %v3248 = vsel %vm3235, %v3223, 0.0
        %3249 = vadd.xlane.f32.xlu0 %v3248
        %v3250 = vpop.xlane.xlu0 %3249
        %v3251 = vsel %vm3235, %v3224, 0.0
        %3252 = vadd.xlane.f32.xlu0 %v3251
        %v3253 = vpop.xlane.xlu0 %3252
        %v3254 = vsel %vm3235, %v3225, 0.0
        %3255 = vadd.xlane.f32.xlu0 %v3254
        %v3256 = vpop.xlane.xlu0 %3255
        %v3257 = vsel %vm3235, %v3226, 0.0
        %3258 = vadd.xlane.f32.xlu0 %v3257
        %v3259 = vpop.xlane.xlu0 %3258
        %v3260 = vsel %vm3235, %v3227, 0.0
        %3261 = vadd.xlane.f32.xlu0 %v3260
        %v3262 = vpop.xlane.xlu0 %3261
        %v3263 = vsel %vm3235, %v3228, 0.0
        %3264 = vadd.xlane.f32.xlu0 %v3263
        %v3265 = vpop.xlane.xlu0 %3264
        %v3266 = vsel %vm3235, %v3229, 0.0
        %3267 = vadd.xlane.f32.xlu0 %v3266
        %v3268 = vpop.xlane.xlu0 %3267
        %v3269 = vsel %vm3235, %v3230, 0.0
        %3270 = vadd.xlane.f32.xlu0 %v3269
        %v3271 = vpop.xlane.xlu0 %3270
        %v3272 = vsel %vm3235, %v3231, 0.0
        %3273 = vadd.xlane.f32.xlu0 %v3272
        %v3274 = vpop.xlane.xlu0 %3273
        %v3275 = vsel %vm3235, %v3232, 0.0
        %3276 = vadd.xlane.f32.xlu0 %v3275
        %v3277 = vpop.xlane.xlu0 %3276
        %v3278 = vsel %vm3235, %v3233, 0.0
        %3279 = vadd.xlane.f32.xlu0 %v3278
        %v3280 = vpop.xlane.xlu0 %3279
        %v3281 = vsel %vm3235, %v3234, 0.0
        %3282 = vadd.xlane.f32.xlu0 %v3281
        %v3283 = vpop.xlane.xlu0 %3282
        %v3284 = vmul.f32 %v3238, 0.03125
        %v3285 = vmul.f32 %v3241, 0.03125
        %v3286 = vmul.f32 %v3244, 0.03125
        %v3287 = vmul.f32 %v3247, 0.03125
        %v3288 = vmul.f32 %v3250, 0.03125
        %v3289 = vmul.f32 %v3253, 0.03125
        %v3290 = vmul.f32 %v3256, 0.03125
        %v3291 = vmul.f32 %v3259, 0.03125
        %v3292 = vmul.f32 %v3262, 0.03125
        %v3293 = vmul.f32 %v3265, 0.03125
        %v3294 = vmul.f32 %v3268, 0.03125
        %v3295 = vmul.f32 %v3271, 0.03125
        %v3296 = vmul.f32 %v3274, 0.03125
        %v3297 = vmul.f32 %v3277, 0.03125
        %v3298 = vmul.f32 %v3280, 0.03125
        %v3299 = vmul.f32 %v3283, 0.03125
        %v3300 = vmul.f32 %v3219, %v3219
        %v3301 = vmul.f32 %v3220, %v3220
        %v3302 = vmul.f32 %v3221, %v3221
        %v3303 = vmul.f32 %v3222, %v3222
        %v3304 = vmul.f32 %v3223, %v3223
        %v3305 = vmul.f32 %v3224, %v3224
        %v3306 = vmul.f32 %v3225, %v3225
        %v3307 = vmul.f32 %v3226, %v3226
        %v3308 = vmul.f32 %v3227, %v3227
        %v3309 = vmul.f32 %v3228, %v3228
        %v3310 = vmul.f32 %v3229, %v3229
        %v3311 = vmul.f32 %v3230, %v3230
        %v3312 = vmul.f32 %v3231, %v3231
        %v3313 = vmul.f32 %v3232, %v3232
        %v3314 = vmul.f32 %v3233, %v3233
        %v3315 = vmul.f32 %v3234, %v3234
        %v3316 = vsel %vm3235, %v3300, 0.0
        %3317 = vadd.xlane.f32.xlu0 %v3316
        %v3318 = vpop.xlane.xlu0 %3317
        %v3319 = vsel %vm3235, %v3301, 0.0
        %3320 = vadd.xlane.f32.xlu0 %v3319
        %v3321 = vpop.xlane.xlu0 %3320
        %v3322 = vsel %vm3235, %v3302, 0.0
        %3323 = vadd.xlane.f32.xlu0 %v3322
        %v3324 = vpop.xlane.xlu0 %3323
        %v3325 = vsel %vm3235, %v3303, 0.0
        %3326 = vadd.xlane.f32.xlu0 %v3325
        %v3327 = vpop.xlane.xlu0 %3326
        %v3328 = vsel %vm3235, %v3304, 0.0
        %3329 = vadd.xlane.f32.xlu0 %v3328
        %v3330 = vpop.xlane.xlu0 %3329
        %v3331 = vsel %vm3235, %v3305, 0.0
        %3332 = vadd.xlane.f32.xlu0 %v3331
        %v3333 = vpop.xlane.xlu0 %3332
        %v3334 = vsel %vm3235, %v3306, 0.0
        %3335 = vadd.xlane.f32.xlu0 %v3334
        %v3336 = vpop.xlane.xlu0 %3335
        %v3337 = vsel %vm3235, %v3307, 0.0
        %3338 = vadd.xlane.f32.xlu0 %v3337
        %v3339 = vpop.xlane.xlu0 %3338
        %v3340 = vsel %vm3235, %v3308, 0.0
        %3341 = vadd.xlane.f32.xlu0 %v3340
        %v3342 = vpop.xlane.xlu0 %3341
        %v3343 = vsel %vm3235, %v3309, 0.0
        %3344 = vadd.xlane.f32.xlu0 %v3343
        %v3345 = vpop.xlane.xlu0 %3344
        %v3346 = vsel %vm3235, %v3310, 0.0
        %3347 = vadd.xlane.f32.xlu0 %v3346
        %v3348 = vpop.xlane.xlu0 %3347
        %v3349 = vsel %vm3235, %v3311, 0.0
        %3350 = vadd.xlane.f32.xlu0 %v3349
        %v3351 = vpop.xlane.xlu0 %3350
        %v3352 = vsel %vm3235, %v3312, 0.0
        %3353 = vadd.xlane.f32.xlu0 %v3352
        %v3354 = vpop.xlane.xlu0 %3353
        %v3355 = vsel %vm3235, %v3313, 0.0
        %3356 = vadd.xlane.f32.xlu0 %v3355
        %v3357 = vpop.xlane.xlu0 %3356
        %v3358 = vsel %vm3235, %v3314, 0.0
        %3359 = vadd.xlane.f32.xlu0 %v3358
        %v3360 = vpop.xlane.xlu0 %3359
        %v3361 = vsel %vm3235, %v3315, 0.0
        %3362 = vadd.xlane.f32.xlu0 %v3361
        %v3363 = vpop.xlane.xlu0 %3362
        %v3364 = vmul.f32 %v3318, 0.03125
        %v3365 = vmul.f32 %v3321, 0.03125
        %v3366 = vmul.f32 %v3324, 0.03125
        %v3367 = vmul.f32 %v3327, 0.03125
        %v3368 = vmul.f32 %v3330, 0.03125
        %v3369 = vmul.f32 %v3333, 0.03125
        %v3370 = vmul.f32 %v3336, 0.03125
        %v3371 = vmul.f32 %v3339, 0.03125
        %v3372 = vmul.f32 %v3342, 0.03125
        %v3373 = vmul.f32 %v3345, 0.03125
        %v3374 = vmul.f32 %v3348, 0.03125
        %v3375 = vmul.f32 %v3351, 0.03125
        %v3376 = vmul.f32 %v3354, 0.03125
        %v3377 = vmul.f32 %v3357, 0.03125
        %v3378 = vmul.f32 %v3360, 0.03125
        %v3379 = vmul.f32 %v3363, 0.03125
        %v3380 = vmul.f32 %v3284, %v3284
        %v3381 = vmul.f32 %v3285, %v3285
        %v3382 = vmul.f32 %v3286, %v3286
        %v3383 = vmul.f32 %v3287, %v3287
        %v3384 = vmul.f32 %v3288, %v3288
        %v3385 = vmul.f32 %v3289, %v3289
        %v3386 = vmul.f32 %v3290, %v3290
        %v3387 = vmul.f32 %v3291, %v3291
        %v3388 = vmul.f32 %v3292, %v3292
        %v3389 = vmul.f32 %v3293, %v3293
        %v3390 = vmul.f32 %v3294, %v3294
        %v3391 = vmul.f32 %v3295, %v3295
        %v3392 = vmul.f32 %v3296, %v3296
        %v3393 = vmul.f32 %v3297, %v3297
        %v3394 = vmul.f32 %v3298, %v3298
        %v3395 = vmul.f32 %v3299, %v3299
        %v3396 = vsub.f32 %v3364, %v3380
        %v3397 = vsub.f32 %v3365, %v3381
        %v3398 = vsub.f32 %v3366, %v3382
        %v3399 = vsub.f32 %v3367, %v3383
        %v3400 = vsub.f32 %v3368, %v3384
        %v3401 = vsub.f32 %v3369, %v3385
        %v3402 = vsub.f32 %v3370, %v3386
        %v3403 = vsub.f32 %v3371, %v3387
        %v3404 = vsub.f32 %v3372, %v3388
        %v3405 = vsub.f32 %v3373, %v3389
        %v3406 = vsub.f32 %v3374, %v3390
        %v3407 = vsub.f32 %v3375, %v3391
        %v3408 = vsub.f32 %v3376, %v3392
        %v3409 = vsub.f32 %v3377, %v3393
        %v3410 = vsub.f32 %v3378, %v3394
        %v3411 = vsub.f32 %v3379, %v3395
        %v3412 = vmax.f32 %v3396, 0.0
        %v3413 = vmax.f32 %v3397, 0.0
        %v3414 = vmax.f32 %v3398, 0.0
        %v3415 = vmax.f32 %v3399, 0.0
        %v3416 = vmax.f32 %v3400, 0.0
        %v3417 = vmax.f32 %v3401, 0.0
        %v3418 = vmax.f32 %v3402, 0.0
        %v3419 = vmax.f32 %v3403, 0.0
        %v3420 = vmax.f32 %v3404, 0.0
        %v3421 = vmax.f32 %v3405, 0.0
        %v3422 = vmax.f32 %v3406, 0.0
        %v3423 = vmax.f32 %v3407, 0.0
        %v3424 = vmax.f32 %v3408, 0.0
        %v3425 = vmax.f32 %v3409, 0.0
        %v3426 = vmax.f32 %v3410, 0.0
        %v3427 = vmax.f32 %v3411, 0.0
        %v3428 = vsub.f32 %v3219, %v3284
        %v3429 = vsub.f32 %v3220, %v3285
        %v3430 = vsub.f32 %v3221, %v3286
        %v3431 = vsub.f32 %v3222, %v3287
        %v3432 = vsub.f32 %v3223, %v3288
        %v3433 = vsub.f32 %v3224, %v3289
        %v3434 = vsub.f32 %v3225, %v3290
        %v3435 = vsub.f32 %v3226, %v3291
        %v3436 = vsub.f32 %v3227, %v3292
        %v3437 = vsub.f32 %v3228, %v3293
        %v3438 = vsub.f32 %v3229, %v3294
        %v3439 = vsub.f32 %v3230, %v3295
        %v3440 = vsub.f32 %v3231, %v3296
        %v3441 = vsub.f32 %v3232, %v3297
        %v3442 = vsub.f32 %v3233, %v3298
        %v3443 = vsub.f32 %v3234, %v3299
        %v3444 = vadd.f32 %v3412, 1e-06
        %v3445 = vadd.f32 %v3413, 1e-06
        %v3446 = vadd.f32 %v3414, 1e-06
        %v3447 = vadd.f32 %v3415, 1e-06
        %v3448 = vadd.f32 %v3416, 1e-06
        %v3449 = vadd.f32 %v3417, 1e-06
        %v3450 = vadd.f32 %v3418, 1e-06
        %v3451 = vadd.f32 %v3419, 1e-06
        %v3452 = vadd.f32 %v3420, 1e-06
        %v3453 = vadd.f32 %v3421, 1e-06
        %v3454 = vadd.f32 %v3422, 1e-06
        %v3455 = vadd.f32 %v3423, 1e-06
        %v3456 = vadd.f32 %v3424, 1e-06
        %v3457 = vadd.f32 %v3425, 1e-06
        %v3458 = vadd.f32 %v3426, 1e-06
        %v3459 = vadd.f32 %v3427, 1e-06
        %v3460 = vrsqrt.pop %v3444
        %v3461 = vrsqrt.pop %v3445
        %v3462 = vrsqrt.pop %v3446
        %v3463 = vrsqrt.pop %v3447
        %v3464 = vrsqrt.pop %v3448
        %v3465 = vrsqrt.pop %v3449
        %v3466 = vrsqrt.pop %v3450
        %v3467 = vrsqrt.pop %v3451
        %v3468 = vrsqrt.pop %v3452
        %v3469 = vrsqrt.pop %v3453
        %v3470 = vrsqrt.pop %v3454
        %v3471 = vrsqrt.pop %v3455
        %v3472 = vrsqrt.pop %v3456
        %v3473 = vrsqrt.pop %v3457
        %v3474 = vrsqrt.pop %v3458
        %v3475 = vrsqrt.pop %v3459
        %v3476 = vmul.f32 %v3428, %v3460
        %v3477 = vmul.f32 %v3429, %v3461
        %v3478 = vmul.f32 %v3430, %v3462
        %v3479 = vmul.f32 %v3431, %v3463
        %v3480 = vmul.f32 %v3432, %v3464
        %v3481 = vmul.f32 %v3433, %v3465
        %v3482 = vmul.f32 %v3434, %v3466
        %v3483 = vmul.f32 %v3435, %v3467
        %v3484 = vmul.f32 %v3436, %v3468
        %v3485 = vmul.f32 %v3437, %v3469
        %v3486 = vmul.f32 %v3438, %v3470
        %v3487 = vmul.f32 %v3439, %v3471
        %v3488 = vmul.f32 %v3440, %v3472
        %v3489 = vmul.f32 %v3441, %v3473
        %v3490 = vmul.f32 %v3442, %v3474
        %v3491 = vmul.f32 %v3443, %v3475
        %v3492 = vld [vmem:[#allocation9] sm:$0x1]
        %v3494 = vlaneseq
        %v3495 = vshrl.u32 %v3494, 7
        %v3496 = vsub.s32 0, %v3495
        %v3497 = vrot.slane %v3492, %v3496
        %v3499 = vmul.f32 %v3476, %v3497
        %v3500 = vmul.f32 %v3477, %v3497
        %v3501 = vmul.f32 %v3478, %v3497
        %v3502 = vmul.f32 %v3479, %v3497
        %v3503 = vmul.f32 %v3480, %v3497
        %v3504 = vmul.f32 %v3481, %v3497
        %v3505 = vmul.f32 %v3482, %v3497
        %v3506 = vmul.f32 %v3483, %v3497
        %v3507 = vmul.f32 %v3484, %v3497
        %v3508 = vmul.f32 %v3485, %v3497
        %v3509 = vmul.f32 %v3486, %v3497
        %v3510 = vmul.f32 %v3487, %v3497
        %v3511 = vmul.f32 %v3488, %v3497
        %v3512 = vmul.f32 %v3489, %v3497
        %v3513 = vmul.f32 %v3490, %v3497
        %v3514 = vmul.f32 %v3491, %v3497
        %v3515 = vld [vmem:[#allocation11] sm:$0x1]
        %v3517 = vlaneseq
        %v3518 = vshrl.u32 %v3517, 7
        %v3519 = vsub.s32 0, %v3518
        %v3520 = vrot.slane %v3515, %v3519
        %v3522 = vadd.f32 %v3499, %v3520
        %v3523 = vadd.f32 %v3500, %v3520
        %v3524 = vadd.f32 %v3501, %v3520
        %v3525 = vadd.f32 %v3502, %v3520
        %v3526 = vadd.f32 %v3503, %v3520
        %v3527 = vadd.f32 %v3504, %v3520
        %v3528 = vadd.f32 %v3505, %v3520
        %v3529 = vadd.f32 %v3506, %v3520
        %v3530 = vadd.f32 %v3507, %v3520
        %v3531 = vadd.f32 %v3508, %v3520
        %v3532 = vadd.f32 %v3509, %v3520
        %v3533 = vadd.f32 %v3510, %v3520
        %v3534 = vadd.f32 %v3511, %v3520
        %v3535 = vadd.f32 %v3512, %v3520
        %v3536 = vadd.f32 %v3513, %v3520
        %v3537 = vadd.f32 %v3514, %v3520
        %v3538 = vpack.c.bf16 %v3523, %v3522
        %v3539 = vpack.c.bf16 %v3525, %v3524
        %v3540 = vpack.c.bf16 %v3527, %v3526
        %v3541 = vpack.c.bf16 %v3529, %v3528
        %v3542 = vpack.c.bf16 %v3531, %v3530
        %v3543 = vpack.c.bf16 %v3533, %v3532
        %v3544 = vpack.c.bf16 %v3535, %v3534
        %v3545 = vpack.c.bf16 %v3537, %v3536
        %v3546 = vld [vmem:[#allocation12] sm:$0xf]
        %v3547 = vld [vmem:[#allocation12 + $0x4] sm:$0xf]
        %v3548 = vld [vmem:[#allocation12 + $0x8] sm:$0xf]
        %v3549 = vld [vmem:[#allocation12 + $0xc] sm:$0xf]
        %v3550 = vld [vmem:[#allocation14] sm:$0x1]
        %v3552 = vlaneseq
        %v3553 = vshrl.u32 %v3552, 7
        %v3554 = vsub.s32 0, %v3553
        %v3555 = vrot.slane %v3550, %v3554
        %v3561 = vunpack.c.l.b16 %v3546
        %v3562 = vunpack.c.l.b16 %v3547
        %v3563 = vunpack.c.l.b16 %v3548
        %v3564 = vunpack.c.l.b16 %v3549
        %v3565 = vpack.c.b16 %v3562, %v3561
        %v3566 = vpack.c.b16 %v3564, %v3563
        %v3570 = vsel %vm3235, %v3538, 0
        %v3573 = vsel %vm3235, %v3539, 0
        %v3576 = vsel %vm3235, %v3540, 0
        %v3579 = vsel %vm3235, %v3541, 0
        %v3582 = vsel %vm3235, %v3542, 0
        %v3585 = vsel %vm3235, %v3543, 0
        %v3588 = vsel %vm3235, %v3544, 0
        %v3591 = vsel %vm3235, %v3545, 0
        %3593 = vmatprep.subr.bf16.mxu0 0
        %3594 = vmatpush1.bf16.msra.mxu0 %v3565
        %3595 = vmatprep.subr.bf16.mxu0 0
        %3596 = vmatpush1.bf16.msra.mxu0 %v3566
        %3597 = vmatprep.subr.bf16.mxu0 0
        %3598 = vmatpush1.bf16.msra.mxu0 0
        %3599 = vmatprep.subr.bf16.mxu0 0
        %3600 = vmatpush1.bf16.msra.mxu0 0
        %3601 = vmatprep.subr.bf16.mxu0 0
        %3602 = vmatpush1.bf16.msra.mxu0 0
        %3603 = vmatprep.subr.bf16.mxu0 0
        %3604 = vmatpush1.bf16.msra.mxu0 0
        %3605 = vmatprep.subr.bf16.mxu0 0
        %3606 = vmatpush1.bf16.msra.mxu0 0
        %3607 = vmatprep.subr.bf16.mxu0 0
        %3608 = vmatpush1.bf16.msra.mxu0 0
        %3609 = vmatprep.subr.bf16.mxu0 0
        %3610 = vmatpush1.bf16.msra.mxu0 0
        %3611 = vmatprep.subr.bf16.mxu0 0
        %3612 = vmatpush1.bf16.msra.mxu0 0
        %3613 = vmatprep.subr.bf16.mxu0 0
        %3614 = vmatpush1.bf16.msra.mxu0 0
        %3615 = vmatprep.subr.bf16.mxu0 0
        %3616 = vmatpush1.bf16.msra.mxu0 0
        %3617 = vmatprep.subr.bf16.mxu0 0
        %3618 = vmatpush1.bf16.msra.mxu0 0
        %3619 = vmatprep.subr.bf16.mxu0 0
        %3620 = vmatpush1.bf16.msra.mxu0 0
        %3621 = vmatprep.subr.bf16.mxu0 0
        %3622 = vmatpush1.bf16.msra.mxu0 0
        %3623 = vmatprep.subr.bf16.mxu0 0
        %3624 = vmatpush1.bf16.msra.mxu0 0
        %3625 = vmatprep.mubr.bf16.mxu0 0
        %3626 = vmatmul.mubr.bf16.gmra.mrb[0].mxu0 %v3570
        %v3627 = vpop.f32.mrb[0].mxu0
        %v3628 = vadd.f32 %v3555, %v3627
        %v3629 = vpop.f32.mrb[0].mxu0
        %v3630 = vpop.f32.mrb[0].mxu0
        %v3631 = vadd.f32 %v3555, %v3630
        %v3632 = vpop.f32.mrb[0].mxu0
        %3633 = vmatprep.mubr.bf16.mxu0 0
        %3634 = vmatmul.mubr.bf16.gmra.mrb[0].mxu0 %v3573
        %v3635 = vpop.f32.mrb[0].mxu0
        %v3636 = vadd.f32 %v3555, %v3635
        %v3637 = vpop.f32.mrb[0].mxu0
        %v3638 = vpop.f32.mrb[0].mxu0
        %v3639 = vadd.f32 %v3555, %v3638
        %v3640 = vpop.f32.mrb[0].mxu0
        %3641 = vmatprep.mubr.bf16.mxu0 0
        %3642 = vmatmul.mubr.bf16.gmra.mrb[0].mxu0 %v3576
        %v3643 = vpop.f32.mrb[0].mxu0
        %v3644 = vadd.f32 %v3555, %v3643
        %v3645 = vpop.f32.mrb[0].mxu0
        %v3646 = vpop.f32.mrb[0].mxu0
        %v3647 = vadd.f32 %v3555, %v3646
        %v3648 = vpop.f32.mrb[0].mxu0
        %3649 = vmatprep.mubr.bf16.mxu0 0
        %3650 = vmatmul.mubr.bf16.gmra.mrb[0].mxu0 %v3579
        %v3651 = vpop.f32.mrb[0].mxu0
        %v3652 = vadd.f32 %v3555, %v3651
        %v3653 = vpop.f32.mrb[0].mxu0
        %v3654 = vpop.f32.mrb[0].mxu0
        %v3655 = vadd.f32 %v3555, %v3654
        %v3656 = vpop.f32.mrb[0].mxu0
        %3657 = vmatprep.mubr.bf16.mxu0 0
        %3658 = vmatmul.mubr.bf16.gmra.mrb[0].mxu0 %v3582
        %v3659 = vpop.f32.mrb[0].mxu0
        %v3660 = vadd.f32 %v3555, %v3659
        %v3661 = vpop.f32.mrb[0].mxu0
        %v3662 = vpop.f32.mrb[0].mxu0
        %v3663 = vadd.f32 %v3555, %v3662
        %v3664 = vpop.f32.mrb[0].mxu0
        %3665 = vmatprep.mubr.bf16.mxu0 0
        %3666 = vmatmul.mubr.bf16.gmra.mrb[0].mxu0 %v3585
        %v3667 = vpop.f32.mrb[0].mxu0
        %v3668 = vadd.f32 %v3555, %v3667
        %v3669 = vpop.f32.mrb[0].mxu0
        %v3670 = vpop.f32.mrb[0].mxu0
        %v3671 = vadd.f32 %v3555, %v3670
        %v3672 = vpop.f32.mrb[0].mxu0
        %3673 = vmatprep.mubr.bf16.mxu0 0
        %3674 = vmatmul.mubr.bf16.gmra.mrb[0].mxu0 %v3588
        %v3675 = vpop.f32.mrb[0].mxu0
        %v3676 = vadd.f32 %v3555, %v3675
        %v3677 = vpop.f32.mrb[0].mxu0
        %v3678 = vpop.f32.mrb[0].mxu0
        %v3679 = vadd.f32 %v3555, %v3678
        %v3680 = vpop.f32.mrb[0].mxu0
        %3681 = vmatprep.mubr.bf16.mxu0 0
        %3682 = vmatmul.mubr.bf16.gmra.mrb[0].mxu0 %v3591
        %v3683 = vpop.f32.mrb[0].mxu0
        %v3684 = vadd.f32 %v3555, %v3683
        %v3685 = vpop.f32.mrb[0].mxu0
        %v3686 = vpop.f32.mrb[0].mxu0
        %v3687 = vadd.f32 %v3555, %v3686
        %v3688 = vpop.f32.mrb[0].mxu0
        %3689 = vdwg.mxu0
        %v3690 = vmul.f32 %v3628, 0.5
        %v3691 = vmul.f32 %v3631, 0.5
        %v3692 = vmul.f32 %v3636, 0.5
        %v3693 = vmul.f32 %v3639, 0.5
        %v3694 = vmul.f32 %v3644, 0.5
        %v3695 = vmul.f32 %v3647, 0.5
        %v3696 = vmul.f32 %v3652, 0.5
        %v3697 = vmul.f32 %v3655, 0.5
        %v3698 = vmul.f32 %v3660, 0.5
        %v3699 = vmul.f32 %v3663, 0.5
        %v3700 = vmul.f32 %v3668, 0.5
        %v3701 = vmul.f32 %v3671, 0.5
        %v3702 = vmul.f32 %v3676, 0.5
        %v3703 = vmul.f32 %v3679, 0.5
        %v3704 = vmul.f32 %v3684, 0.5
        %v3705 = vmul.f32 %v3687, 0.5
        %v3706 = vmul.f32 %v3628, 0.70710677
        %v3707 = vmul.f32 %v3631, 0.70710677
        %v3708 = vmul.f32 %v3636, 0.70710677
        %v3709 = vmul.f32 %v3639, 0.70710677
        %v3710 = vmul.f32 %v3644, 0.70710677
        %v3711 = vmul.f32 %v3647, 0.70710677
        %v3712 = vmul.f32 %v3652, 0.70710677
        %v3713 = vmul.f32 %v3655, 0.70710677
        %v3714 = vmul.f32 %v3660, 0.70710677
        %v3715 = vmul.f32 %v3663, 0.70710677
        %v3716 = vmul.f32 %v3668, 0.70710677
        %v3717 = vmul.f32 %v3671, 0.70710677
        %v3718 = vmul.f32 %v3676, 0.70710677
        %v3719 = vmul.f32 %v3679, 0.70710677
        %v3720 = vmul.f32 %v3684, 0.70710677
        %v3721 = vmul.f32 %v3687, 0.70710677
        %v3722 = vand.u32 2147483647, %v3706
        %v3723 = vand.u32 2147483647, %v3707
        %v3724 = vand.u32 2147483647, %v3708
        %v3725 = vand.u32 2147483647, %v3709
        %v3726 = vand.u32 2147483647, %v3710
        %v3727 = vand.u32 2147483647, %v3711
        %v3728 = vand.u32 2147483647, %v3712
        %v3729 = vand.u32 2147483647, %v3713
        %v3730 = vand.u32 2147483647, %v3714
        %v3731 = vand.u32 2147483647, %v3715
        %v3732 = vand.u32 2147483647, %v3716
        %v3733 = vand.u32 2147483647, %v3717
        %v3734 = vand.u32 2147483647, %v3718
        %v3735 = vand.u32 2147483647, %v3719
        %v3736 = vand.u32 2147483647, %v3720
        %v3737 = vand.u32 2147483647, %v3721
        %v3738 = vmul.f32 %v3722, 0.3275911
        %v3739 = vmul.f32 %v3723, 0.3275911
        %v3740 = vmul.f32 %v3724, 0.3275911
        %v3741 = vmul.f32 %v3725, 0.3275911
        %v3742 = vmul.f32 %v3726, 0.3275911
        %v3743 = vmul.f32 %v3727, 0.3275911
        %v3744 = vmul.f32 %v3728, 0.3275911
        %v3745 = vmul.f32 %v3729, 0.3275911
        %v3746 = vmul.f32 %v3730, 0.3275911
        %v3747 = vmul.f32 %v3731, 0.3275911
        %v3748 = vmul.f32 %v3732, 0.3275911
        %v3749 = vmul.f32 %v3733, 0.3275911
        %v3750 = vmul.f32 %v3734, 0.3275911
        %v3751 = vmul.f32 %v3735, 0.3275911
        %v3752 = vmul.f32 %v3736, 0.3275911
        %v3753 = vmul.f32 %v3737, 0.3275911
        %v3754 = vadd.f32 %v3738, 1.0
        %v3755 = vadd.f32 %v3739, 1.0
        %v3756 = vadd.f32 %v3740, 1.0
        %v3757 = vadd.f32 %v3741, 1.0
        %v3758 = vadd.f32 %v3742, 1.0
        %v3759 = vadd.f32 %v3743, 1.0
        %v3760 = vadd.f32 %v3744, 1.0
        %v3761 = vadd.f32 %v3745, 1.0
        %v3762 = vadd.f32 %v3746, 1.0
        %v3763 = vadd.f32 %v3747, 1.0
        %v3764 = vadd.f32 %v3748, 1.0
        %v3765 = vadd.f32 %v3749, 1.0
        %v3766 = vadd.f32 %v3750, 1.0
        %v3767 = vadd.f32 %v3751, 1.0
        %v3768 = vadd.f32 %v3752, 1.0
        %v3769 = vadd.f32 %v3753, 1.0
        %v3770 = vrcp.pop %v3754
        %v3771 = vrcp.pop %v3755
        %v3772 = vrcp.pop %v3756
        %v3773 = vrcp.pop %v3757
        %v3774 = vrcp.pop %v3758
        %v3775 = vrcp.pop %v3759
        %v3776 = vrcp.pop %v3760
        %v3777 = vrcp.pop %v3761
        %v3778 = vrcp.pop %v3762
        %v3779 = vrcp.pop %v3763
        %v3780 = vrcp.pop %v3764
        %v3781 = vrcp.pop %v3765
        %v3782 = vrcp.pop %v3766
        %v3783 = vrcp.pop %v3767
        %v3784 = vrcp.pop %v3768
        %v3785 = vrcp.pop %v3769
        %v3786 = vmul.f32 %v3770, 1.0614054
        %v3787 = vmul.f32 %v3771, 1.0614054
        %v3788 = vmul.f32 %v3772, 1.0614054
        %v3789 = vmul.f32 %v3773, 1.0614054
        %v3790 = vmul.f32 %v3774, 1.0614054
        %v3791 = vmul.f32 %v3775, 1.0614054
        %v3792 = vmul.f32 %v3776, 1.0614054
        %v3793 = vmul.f32 %v3777, 1.0614054
        %v3794 = vmul.f32 %v3778, 1.0614054
        %v3795 = vmul.f32 %v3779, 1.0614054
        %v3796 = vmul.f32 %v3780, 1.0614054
        %v3797 = vmul.f32 %v3781, 1.0614054
        %v3798 = vmul.f32 %v3782, 1.0614054
        %v3799 = vmul.f32 %v3783, 1.0614054
        %v3800 = vmul.f32 %v3784, 1.0614054
        %v3801 = vmul.f32 %v3785, 1.0614054
        %v3802 = vadd.f32 %v3786, -1.4531521
        %v3803 = vadd.f32 %v3787, -1.4531521
        %v3804 = vadd.f32 %v3788, -1.4531521
        %v3805 = vadd.f32 %v3789, -1.4531521
        %v3806 = vadd.f32 %v3790, -1.4531521
        %v3807 = vadd.f32 %v3791, -1.4531521
        %v3808 = vadd.f32 %v3792, -1.4531521
        %v3809 = vadd.f32 %v3793, -1.4531521
        %v3810 = vadd.f32 %v3794, -1.4531521
        %v3811 = vadd.f32 %v3795, -1.4531521
        %v3812 = vadd.f32 %v3796, -1.4531521
        %v3813 = vadd.f32 %v3797, -1.4531521
        %v3814 = vadd.f32 %v3798, -1.4531521
        %v3815 = vadd.f32 %v3799, -1.4531521
        %v3816 = vadd.f32 %v3800, -1.4531521
        %v3817 = vadd.f32 %v3801, -1.4531521
        %v3818 = vmul.f32 %v3802, %v3770
        %v3819 = vmul.f32 %v3803, %v3771
        %v3820 = vmul.f32 %v3804, %v3772
        %v3821 = vmul.f32 %v3805, %v3773
        %v3822 = vmul.f32 %v3806, %v3774
        %v3823 = vmul.f32 %v3807, %v3775
        %v3824 = vmul.f32 %v3808, %v3776
        %v3825 = vmul.f32 %v3809, %v3777
        %v3826 = vmul.f32 %v3810, %v3778
        %v3827 = vmul.f32 %v3811, %v3779
        %v3828 = vmul.f32 %v3812, %v3780
        %v3829 = vmul.f32 %v3813, %v3781
        %v3830 = vmul.f32 %v3814, %v3782
        %v3831 = vmul.f32 %v3815, %v3783
        %v3832 = vmul.f32 %v3816, %v3784
        %v3833 = vmul.f32 %v3817, %v3785
        %v3834 = vadd.f32 %v3818, 1.4214138
        %v3835 = vadd.f32 %v3819, 1.4214138
        %v3836 = vadd.f32 %v3820, 1.4214138
        %v3837 = vadd.f32 %v3821, 1.4214138
        %v3838 = vadd.f32 %v3822, 1.4214138
        %v3839 = vadd.f32 %v3823, 1.4214138
        %v3840 = vadd.f32 %v3824, 1.4214138
        %v3841 = vadd.f32 %v3825, 1.4214138
        %v3842 = vadd.f32 %v3826, 1.4214138
        %v3843 = vadd.f32 %v3827, 1.4214138
        %v3844 = vadd.f32 %v3828, 1.4214138
        %v3845 = vadd.f32 %v3829, 1.4214138
        %v3846 = vadd.f32 %v3830, 1.4214138
        %v3847 = vadd.f32 %v3831, 1.4214138
        %v3848 = vadd.f32 %v3832, 1.4214138
        %v3849 = vadd.f32 %v3833, 1.4214138
        %v3850 = vmul.f32 %v3834, %v3770
        %v3851 = vmul.f32 %v3835, %v3771
        %v3852 = vmul.f32 %v3836, %v3772
        %v3853 = vmul.f32 %v3837, %v3773
        %v3854 = vmul.f32 %v3838, %v3774
        %v3855 = vmul.f32 %v3839, %v3775
        %v3856 = vmul.f32 %v3840, %v3776
        %v3857 = vmul.f32 %v3841, %v3777
        %v3858 = vmul.f32 %v3842, %v3778
        %v3859 = vmul.f32 %v3843, %v3779
        %v3860 = vmul.f32 %v3844, %v3780
        %v3861 = vmul.f32 %v3845, %v3781
        %v3862 = vmul.f32 %v3846, %v3782
        %v3863 = vmul.f32 %v3847, %v3783
        %v3864 = vmul.f32 %v3848, %v3784
        %v3865 = vmul.f32 %v3849, %v3785
        %v3866 = vadd.f32 %v3850, -0.28449672
        %v3867 = vadd.f32 %v3851, -0.28449672
        %v3868 = vadd.f32 %v3852, -0.28449672
        %v3869 = vadd.f32 %v3853, -0.28449672
        %v3870 = vadd.f32 %v3854, -0.28449672
        %v3871 = vadd.f32 %v3855, -0.28449672
        %v3872 = vadd.f32 %v3856, -0.28449672
        %v3873 = vadd.f32 %v3857, -0.28449672
        %v3874 = vadd.f32 %v3858, -0.28449672
        %v3875 = vadd.f32 %v3859, -0.28449672
        %v3876 = vadd.f32 %v3860, -0.28449672
        %v3877 = vadd.f32 %v3861, -0.28449672
        %v3878 = vadd.f32 %v3862, -0.28449672
        %v3879 = vadd.f32 %v3863, -0.28449672
        %v3880 = vadd.f32 %v3864, -0.28449672
        %v3881 = vadd.f32 %v3865, -0.28449672
        %v3882 = vmul.f32 %v3866, %v3770
        %v3883 = vmul.f32 %v3867, %v3771
        %v3884 = vmul.f32 %v3868, %v3772
        %v3885 = vmul.f32 %v3869, %v3773
        %v3886 = vmul.f32 %v3870, %v3774
        %v3887 = vmul.f32 %v3871, %v3775
        %v3888 = vmul.f32 %v3872, %v3776
        %v3889 = vmul.f32 %v3873, %v3777
        %v3890 = vmul.f32 %v3874, %v3778
        %v3891 = vmul.f32 %v3875, %v3779
        %v3892 = vmul.f32 %v3876, %v3780
        %v3893 = vmul.f32 %v3877, %v3781
        %v3894 = vmul.f32 %v3878, %v3782
        %v3895 = vmul.f32 %v3879, %v3783
        %v3896 = vmul.f32 %v3880, %v3784
        %v3897 = vmul.f32 %v3881, %v3785
        %v3898 = vadd.f32 %v3882, 0.2548296
        %v3899 = vadd.f32 %v3883, 0.2548296
        %v3900 = vadd.f32 %v3884, 0.2548296
        %v3901 = vadd.f32 %v3885, 0.2548296
        %v3902 = vadd.f32 %v3886, 0.2548296
        %v3903 = vadd.f32 %v3887, 0.2548296
        %v3904 = vadd.f32 %v3888, 0.2548296
        %v3905 = vadd.f32 %v3889, 0.2548296
        %v3906 = vadd.f32 %v3890, 0.2548296
        %v3907 = vadd.f32 %v3891, 0.2548296
        %v3908 = vadd.f32 %v3892, 0.2548296
        %v3909 = vadd.f32 %v3893, 0.2548296
        %v3910 = vadd.f32 %v3894, 0.2548296
        %v3911 = vadd.f32 %v3895, 0.2548296
        %v3912 = vadd.f32 %v3896, 0.2548296
        %v3913 = vadd.f32 %v3897, 0.2548296
        %v3914 = vmul.f32 %v3898, %v3770
        %v3915 = vmul.f32 %v3899, %v3771
        %v3916 = vmul.f32 %v3900, %v3772
        %v3917 = vmul.f32 %v3901, %v3773
        %v3918 = vmul.f32 %v3902, %v3774
        %v3919 = vmul.f32 %v3903, %v3775
        %v3920 = vmul.f32 %v3904, %v3776
        %v3921 = vmul.f32 %v3905, %v3777
        %v3922 = vmul.f32 %v3906, %v3778
        %v3923 = vmul.f32 %v3907, %v3779
        %v3924 = vmul.f32 %v3908, %v3780
        %v3925 = vmul.f32 %v3909, %v3781
        %v3926 = vmul.f32 %v3910, %v3782
        %v3927 = vmul.f32 %v3911, %v3783
        %v3928 = vmul.f32 %v3912, %v3784
        %v3929 = vmul.f32 %v3913, %v3785
        %v3930 = vsub.f32 0.0, %v3722
        %v3931 = vsub.f32 0.0, %v3723
        %v3932 = vsub.f32 0.0, %v3724
        %v3933 = vsub.f32 0.0, %v3725
        %v3934 = vsub.f32 0.0, %v3726
        %v3935 = vsub.f32 0.0, %v3727
        %v3936 = vsub.f32 0.0, %v3728
        %v3937 = vsub.f32 0.0, %v3729
        %v3938 = vsub.f32 0.0, %v3730
        %v3939 = vsub.f32 0.0, %v3731
        %v3940 = vsub.f32 0.0, %v3732
        %v3941 = vsub.f32 0.0, %v3733
        %v3942 = vsub.f32 0.0, %v3734
        %v3943 = vsub.f32 0.0, %v3735
        %v3944 = vsub.f32 0.0, %v3736
        %v3945 = vsub.f32 0.0, %v3737
        %v3946 = vmul.f32 %v3930, %v3722
        %v3947 = vmul.f32 %v3931, %v3723
        %v3948 = vmul.f32 %v3932, %v3724
        %v3949 = vmul.f32 %v3933, %v3725
        %v3950 = vmul.f32 %v3934, %v3726
        %v3951 = vmul.f32 %v3935, %v3727
        %v3952 = vmul.f32 %v3936, %v3728
        %v3953 = vmul.f32 %v3937, %v3729
        %v3954 = vmul.f32 %v3938, %v3730
        %v3955 = vmul.f32 %v3939, %v3731
        %v3956 = vmul.f32 %v3940, %v3732
        %v3957 = vmul.f32 %v3941, %v3733
        %v3958 = vmul.f32 %v3942, %v3734
        %v3959 = vmul.f32 %v3943, %v3735
        %v3960 = vmul.f32 %v3944, %v3736
        %v3961 = vmul.f32 %v3945, %v3737
        %v3962 = vmul.f32 %v3946, 1.442695
        %v3963 = vpow.pop %v3962
        %v3964 = vmul.f32 %v3947, 1.442695
        %v3965 = vpow.pop %v3964
        %v3966 = vmul.f32 %v3948, 1.442695
        %v3967 = vpow.pop %v3966
        %v3968 = vmul.f32 %v3949, 1.442695
        %v3969 = vpow.pop %v3968
        %v3970 = vmul.f32 %v3950, 1.442695
        %v3971 = vpow.pop %v3970
        %v3972 = vmul.f32 %v3951, 1.442695
        %v3973 = vpow.pop %v3972
        %v3974 = vmul.f32 %v3952, 1.442695
        %v3975 = vpow.pop %v3974
        %v3976 = vmul.f32 %v3953, 1.442695
        %v3977 = vpow.pop %v3976
        %v3978 = vmul.f32 %v3954, 1.442695
        %v3979 = vpow.pop %v3978
        %v3980 = vmul.f32 %v3955, 1.442695
        %v3981 = vpow.pop %v3980
        %v3982 = vmul.f32 %v3956, 1.442695
        %v3983 = vpow.pop %v3982
        %v3984 = vmul.f32 %v3957, 1.442695
        %v3985 = vpow.pop %v3984
        %v3986 = vmul.f32 %v3958, 1.442695
        %v3987 = vpow.pop %v3986
        %v3988 = vmul.f32 %v3959, 1.442695
        %v3989 = vpow.pop %v3988
        %v3990 = vmul.f32 %v3960, 1.442695
        %v3991 = vpow.pop %v3990
        %v3992 = vmul.f32 %v3961, 1.442695
        %v3993 = vpow.pop %v3992
        %v3994 = vmul.f32 %v3914, %v3963
        %v3995 = vmul.f32 %v3915, %v3965
        %v3996 = vmul.f32 %v3916, %v3967
        %v3997 = vmul.f32 %v3917, %v3969
        %v3998 = vmul.f32 %v3918, %v3971
        %v3999 = vmul.f32 %v3919, %v3973
        %v4000 = vmul.f32 %v3920, %v3975
        %v4001 = vmul.f32 %v3921, %v3977
        %v4002 = vmul.f32 %v3922, %v3979
        %v4003 = vmul.f32 %v3923, %v3981
        %v4004 = vmul.f32 %v3924, %v3983
        %v4005 = vmul.f32 %v3925, %v3985
        %v4006 = vmul.f32 %v3926, %v3987
        %v4007 = vmul.f32 %v3927, %v3989
        %v4008 = vmul.f32 %v3928, %v3991
        %v4009 = vmul.f32 %v3929, %v3993
        %v4010 = vsub.f32 1.0, %v3994
        %v4011 = vsub.f32 1.0, %v3995
        %v4012 = vsub.f32 1.0, %v3996
        %v4013 = vsub.f32 1.0, %v3997
        %v4014 = vsub.f32 1.0, %v3998
        %v4015 = vsub.f32 1.0, %v3999
        %v4016 = vsub.f32 1.0, %v4000
        %v4017 = vsub.f32 1.0, %v4001
        %v4018 = vsub.f32 1.0, %v4002
        %v4019 = vsub.f32 1.0, %v4003
        %v4020 = vsub.f32 1.0, %v4004
        %v4021 = vsub.f32 1.0, %v4005
        %v4022 = vsub.f32 1.0, %v4006
        %v4023 = vsub.f32 1.0, %v4007
        %v4024 = vsub.f32 1.0, %v4008
        %v4025 = vsub.f32 1.0, %v4009
        %vm4026 = vcmp.ge.f32.partialorder %v3706, 0.0
        %vm4027 = vcmp.ge.f32.partialorder %v3707, 0.0
        %vm4028 = vcmp.ge.f32.partialorder %v3708, 0.0
        %vm4029 = vcmp.ge.f32.partialorder %v3709, 0.0
        %vm4030 = vcmp.ge.f32.partialorder %v3710, 0.0
        %vm4031 = vcmp.ge.f32.partialorder %v3711, 0.0
        %vm4032 = vcmp.ge.f32.partialorder %v3712, 0.0
        %vm4033 = vcmp.ge.f32.partialorder %v3713, 0.0
        %vm4034 = vcmp.ge.f32.partialorder %v3714, 0.0
        %vm4035 = vcmp.ge.f32.partialorder %v3715, 0.0
        %vm4036 = vcmp.ge.f32.partialorder %v3716, 0.0
        %vm4037 = vcmp.ge.f32.partialorder %v3717, 0.0
        %vm4038 = vcmp.ge.f32.partialorder %v3718, 0.0
        %vm4039 = vcmp.ge.f32.partialorder %v3719, 0.0
        %vm4040 = vcmp.ge.f32.partialorder %v3720, 0.0
        %vm4041 = vcmp.ge.f32.partialorder %v3721, 0.0
        %v4042 = vsub.f32 0.0, %v4010
        %v4043 = vsub.f32 0.0, %v4011
        %v4044 = vsub.f32 0.0, %v4012
        %v4045 = vsub.f32 0.0, %v4013
        %v4046 = vsub.f32 0.0, %v4014
        %v4047 = vsub.f32 0.0, %v4015
        %v4048 = vsub.f32 0.0, %v4016
        %v4049 = vsub.f32 0.0, %v4017
        %v4050 = vsub.f32 0.0, %v4018
        %v4051 = vsub.f32 0.0, %v4019
        %v4052 = vsub.f32 0.0, %v4020
        %v4053 = vsub.f32 0.0, %v4021
        %v4054 = vsub.f32 0.0, %v4022
        %v4055 = vsub.f32 0.0, %v4023
        %v4056 = vsub.f32 0.0, %v4024
        %v4057 = vsub.f32 0.0, %v4025
        %v4058 = vsel %vm4026, %v4010, %v4042
        %v4059 = vsel %vm4027, %v4011, %v4043
        %v4060 = vsel %vm4028, %v4012, %v4044
        %v4061 = vsel %vm4029, %v4013, %v4045
        %v4062 = vsel %vm4030, %v4014, %v4046
        %v4063 = vsel %vm4031, %v4015, %v4047
        %v4064 = vsel %vm4032, %v4016, %v4048
        %v4065 = vsel %vm4033, %v4017, %v4049
        %v4066 = vsel %vm4034, %v4018, %v4050
        %v4067 = vsel %vm4035, %v4019, %v4051
        %v4068 = vsel %vm4036, %v4020, %v4052
        %v4069 = vsel %vm4037, %v4021, %v4053
        %v4070 = vsel %vm4038, %v4022, %v4054
        %v4071 = vsel %vm4039, %v4023, %v4055
        %v4072 = vsel %vm4040, %v4024, %v4056
        %v4073 = vsel %vm4041, %v4025, %v4057
        %v4074 = vadd.f32 %v4058, 1.0
        %v4075 = vadd.f32 %v4059, 1.0
        %v4076 = vadd.f32 %v4060, 1.0
        %v4077 = vadd.f32 %v4061, 1.0
        %v4078 = vadd.f32 %v4062, 1.0
        %v4079 = vadd.f32 %v4063, 1.0
        %v4080 = vadd.f32 %v4064, 1.0
        %v4081 = vadd.f32 %v4065, 1.0
        %v4082 = vadd.f32 %v4066, 1.0
        %v4083 = vadd.f32 %v4067, 1.0
        %v4084 = vadd.f32 %v4068, 1.0
        %v4085 = vadd.f32 %v4069, 1.0
        %v4086 = vadd.f32 %v4070, 1.0
        %v4087 = vadd.f32 %v4071, 1.0
        %v4088 = vadd.f32 %v4072, 1.0
        %v4089 = vadd.f32 %v4073, 1.0
        %v4090 = vmul.f32 %v3690, %v4074
        %v4091 = vmul.f32 %v3691, %v4075
        %v4092 = vmul.f32 %v3692, %v4076
        %v4093 = vmul.f32 %v3693, %v4077
        %v4094 = vmul.f32 %v3694, %v4078
        %v4095 = vmul.f32 %v3695, %v4079
        %v4096 = vmul.f32 %v3696, %v4080
        %v4097 = vmul.f32 %v3697, %v4081
        %v4098 = vmul.f32 %v3698, %v4082
        %v4099 = vmul.f32 %v3699, %v4083
        %v4100 = vmul.f32 %v3700, %v4084
        %v4101 = vmul.f32 %v3701, %v4085
        %v4102 = vmul.f32 %v3702, %v4086
        %v4103 = vmul.f32 %v3703, %v4087
        %v4104 = vmul.f32 %v3704, %v4088
        %v4105 = vmul.f32 %v3705, %v4089
        %v4106 = vpack.c.bf16 %v4091, %v4090
        %v4107 = vpack.c.bf16 %v4093, %v4092
        %v4108 = vpack.c.bf16 %v4095, %v4094
        %v4109 = vpack.c.bf16 %v4097, %v4096
        %v4110 = vpack.c.bf16 %v4099, %v4098
        %v4111 = vpack.c.bf16 %v4101, %v4100
        %v4112 = vpack.c.bf16 %v4103, %v4102
        %v4113 = vpack.c.bf16 %v4105, %v4104
        %v4114 = vld [vmem:[#allocation15] sm:$0xf]
        %v4115 = vld [vmem:[#allocation15 + $0x4] sm:$0xf]
        %v4116 = vld [vmem:[#allocation15 + $0x8] sm:$0xf]
        %v4117 = vld [vmem:[#allocation15 + $0xc] sm:$0xf]
        %v4118 = vld [vmem:[#allocation15 + $0x10] sm:$0xf]
        %v4119 = vld [vmem:[#allocation15 + $0x14] sm:$0xf]
        %v4120 = vld [vmem:[#allocation15 + $0x18] sm:$0xf]
        %v4121 = vld [vmem:[#allocation15 + $0x1c] sm:$0xf]
        %v4122 = vld [vmem:[#allocation15 + $0x20] sm:$0xf]
        %v4123 = vld [vmem:[#allocation15 + $0x24] sm:$0xf]
        %v4124 = vld [vmem:[#allocation15 + $0x28] sm:$0xf]
        %v4125 = vld [vmem:[#allocation15 + $0x2c] sm:$0xf]
        %v4126 = vld [vmem:[#allocation15 + $0x30] sm:$0xf]
        %v4127 = vld [vmem:[#allocation15 + $0x34] sm:$0xf]
        %v4128 = vld [vmem:[#allocation15 + $0x38] sm:$0xf]
        %v4129 = vld [vmem:[#allocation15 + $0x3c] sm:$0xf]
        %v4130 = vld [vmem:[#allocation17] sm:$0x1]
        %v4132 = vlaneseq
        %v4133 = vshrl.u32 %v4132, 7
        %v4134 = vsub.s32 0, %v4133
        %v4135 = vrot.slane %v4130, %v4134
        %v4153 = vunpack.c.l.b16 %v4114
        %v4154 = vunpack.c.l.b16 %v4115
        %v4155 = vunpack.c.l.b16 %v4116
        %v4156 = vunpack.c.l.b16 %v4117
        %v4157 = vunpack.c.l.b16 %v4118
        %v4158 = vunpack.c.l.b16 %v4119
        %v4159 = vunpack.c.l.b16 %v4120
        %v4160 = vunpack.c.l.b16 %v4121
        %v4161 = vunpack.c.l.b16 %v4122
        %v4162 = vunpack.c.l.b16 %v4123
        %v4163 = vunpack.c.l.b16 %v4124
        %v4164 = vunpack.c.l.b16 %v4125
        %v4165 = vunpack.c.l.b16 %v4126
        %v4166 = vunpack.c.l.b16 %v4127
        %v4167 = vunpack.c.l.b16 %v4128
        %v4168 = vunpack.c.l.b16 %v4129
        %v4169 = vpack.c.b16 %v4154, %v4153
        %v4170 = vpack.c.b16 %v4156, %v4155
        %v4171 = vpack.c.b16 %v4158, %v4157
        %v4172 = vpack.c.b16 %v4160, %v4159
        %v4173 = vpack.c.b16 %v4162, %v4161
        %v4174 = vpack.c.b16 %v4164, %v4163
        %v4175 = vpack.c.b16 %v4166, %v4165
        %v4176 = vpack.c.b16 %v4168, %v4167
        %4185 = vmatprep.subr.bf16.mxu0 0
        %4186 = vmatpush1.bf16.msra.mxu0 %v4169
        %4187 = vmatprep.subr.bf16.mxu0 0
        %4188 = vmatpush1.bf16.msra.mxu0 %v4170
        %4189 = vmatprep.subr.bf16.mxu0 0
        %4190 = vmatpush1.bf16.msra.mxu0 %v4171
        %4191 = vmatprep.subr.bf16.mxu0 0
        %4192 = vmatpush1.bf16.msra.mxu0 %v4172
        %4193 = vmatprep.subr.bf16.mxu0 0
        %4194 = vmatpush1.bf16.msra.mxu0 %v4173
        %4195 = vmatprep.subr.bf16.mxu0 0
        %4196 = vmatpush1.bf16.msra.mxu0 %v4174
        %4197 = vmatprep.subr.bf16.mxu0 0
        %4198 = vmatpush1.bf16.msra.mxu0 %v4175
        %4199 = vmatprep.subr.bf16.mxu0 0
        %4200 = vmatpush1.bf16.msra.mxu0 %v4176
        %4201 = vmatprep.subr.bf16.mxu0 0
        %4202 = vmatpush1.bf16.msra.mxu0 0
        %4203 = vmatprep.subr.bf16.mxu0 0
        %4204 = vmatpush1.bf16.msra.mxu0 0
        %4205 = vmatprep.subr.bf16.mxu0 0
        %4206 = vmatpush1.bf16.msra.mxu0 0
        %4207 = vmatprep.subr.bf16.mxu0 0
        %4208 = vmatpush1.bf16.msra.mxu0 0
        %4209 = vmatprep.subr.bf16.mxu0 0
        %4210 = vmatpush1.bf16.msra.mxu0 0
        %4211 = vmatprep.subr.bf16.mxu0 0
        %4212 = vmatpush1.bf16.msra.mxu0 0
        %4213 = vmatprep.subr.bf16.mxu0 0
        %4214 = vmatpush1.bf16.msra.mxu0 0
        %4215 = vmatprep.subr.bf16.mxu0 0
        %4216 = vmatpush1.bf16.msra.mxu0 0
        %4217 = vmatprep.mubr.bf16.mxu0 0
        %4218 = vmatmul.mubr.bf16.gmra.mrb[0].mxu0 %v4106
        %v4219 = vpop.f32.mrb[0].mxu0
        %v4220 = vadd.f32 %v4135, %v4219
        %v4221 = vpop.f32.mrb[0].mxu0
        %v4222 = vpop.f32.mrb[0].mxu0
        %v4223 = vadd.f32 %v4135, %v4222
        %v4224 = vpop.f32.mrb[0].mxu0
        %4225 = vmatprep.mubr.bf16.mxu0 0
        %4226 = vmatmul.mubr.bf16.gmra.mrb[0].mxu0 %v4107
        %v4227 = vpop.f32.mrb[0].mxu0
        %v4228 = vadd.f32 %v4135, %v4227
        %v4229 = vpop.f32.mrb[0].mxu0
        %v4230 = vpop.f32.mrb[0].mxu0
        %v4231 = vadd.f32 %v4135, %v4230
        %v4232 = vpop.f32.mrb[0].mxu0
        %4233 = vmatprep.mubr.bf16.mxu0 0
        %4234 = vmatmul.mubr.bf16.gmra.mrb[0].mxu0 %v4108
        %v4235 = vpop.f32.mrb[0].mxu0
        %v4236 = vadd.f32 %v4135, %v4235
        %v4237 = vpop.f32.mrb[0].mxu0
        %v4238 = vpop.f32.mrb[0].mxu0
        %v4239 = vadd.f32 %v4135, %v4238
        %v4240 = vpop.f32.mrb[0].mxu0
        %4241 = vmatprep.mubr.bf16.mxu0 0
        %4242 = vmatmul.mubr.bf16.gmra.mrb[0].mxu0 %v4109
        %v4243 = vpop.f32.mrb[0].mxu0
        %v4244 = vadd.f32 %v4135, %v4243
        %v4245 = vpop.f32.mrb[0].mxu0
        %v4246 = vpop.f32.mrb[0].mxu0
        %v4247 = vadd.f32 %v4135, %v4246
        %v4248 = vpop.f32.mrb[0].mxu0
        %4249 = vmatprep.mubr.bf16.mxu0 0
        %4250 = vmatmul.mubr.bf16.gmra.mrb[0].mxu0 %v4110
        %v4251 = vpop.f32.mrb[0].mxu0
        %v4252 = vadd.f32 %v4135, %v4251
        %v4253 = vpop.f32.mrb[0].mxu0
        %v4254 = vpop.f32.mrb[0].mxu0
        %v4255 = vadd.f32 %v4135, %v4254
        %v4256 = vpop.f32.mrb[0].mxu0
        %4257 = vmatprep.mubr.bf16.mxu0 0
        %4258 = vmatmul.mubr.bf16.gmra.mrb[0].mxu0 %v4111
        %v4259 = vpop.f32.mrb[0].mxu0
        %v4260 = vadd.f32 %v4135, %v4259
        %v4261 = vpop.f32.mrb[0].mxu0
        %v4262 = vpop.f32.mrb[0].mxu0
        %v4263 = vadd.f32 %v4135, %v4262
        %v4264 = vpop.f32.mrb[0].mxu0
        %4265 = vmatprep.mubr.bf16.mxu0 0
        %4266 = vmatmul.mubr.bf16.gmra.mrb[0].mxu0 %v4112
        %v4267 = vpop.f32.mrb[0].mxu0
        %v4268 = vadd.f32 %v4135, %v4267
        %v4269 = vpop.f32.mrb[0].mxu0
        %v4270 = vpop.f32.mrb[0].mxu0
        %v4271 = vadd.f32 %v4135, %v4270
        %v4272 = vpop.f32.mrb[0].mxu0
        %4273 = vmatprep.mubr.bf16.mxu0 0
        %4274 = vmatmul.mubr.bf16.gmra.mrb[0].mxu0 %v4113
        %v4275 = vpop.f32.mrb[0].mxu0
        %v4276 = vadd.f32 %v4135, %v4275
        %v4277 = vpop.f32.mrb[0].mxu0
        %v4278 = vpop.f32.mrb[0].mxu0
        %v4279 = vadd.f32 %v4135, %v4278
        %v4280 = vpop.f32.mrb[0].mxu0
        %4281 = vdwg.mxu0
        %v4282 = vld [vmem:[#allocation18] sm:$0x1]
        %v4284 = vlaneseq
        %v4285 = vshrl.u32 %v4284, 7
        %v4286 = vsub.s32 0, %v4285
        %v4287 = vrot.slane %v4282, %v4286
        %v4289 = vmul.f32 %v4287, %v4220
        %v4290 = vmul.f32 %v4287, %v4223
        %v4291 = vmul.f32 %v4287, %v4228
        %v4292 = vmul.f32 %v4287, %v4231
        %v4293 = vmul.f32 %v4287, %v4236
        %v4294 = vmul.f32 %v4287, %v4239
        %v4295 = vmul.f32 %v4287, %v4244
        %v4296 = vmul.f32 %v4287, %v4247
        %v4297 = vmul.f32 %v4287, %v4252
        %v4298 = vmul.f32 %v4287, %v4255
        %v4299 = vmul.f32 %v4287, %v4260
        %v4300 = vmul.f32 %v4287, %v4263
        %v4301 = vmul.f32 %v4287, %v4268
        %v4302 = vmul.f32 %v4287, %v4271
        %v4303 = vmul.f32 %v4287, %v4276
        %v4304 = vmul.f32 %v4287, %v4279
        %s4305 = smul.u32 %s636, 16
        %s4306 = scalar_lea.vmem %s438, %s4305 [#allocation3]
        %v4307 = vld [vmem:[%s4306] sm:$0xff]
        %v4308 = vld [vmem:[%s4306 + $0x8] sm:$0xff]
        %v4309 = vld [vmem:[%s4306 + $0x10] sm:$0xff]
        %v4310 = vld [vmem:[%s4306 + $0x18] sm:$0xff]
        %v4311 = vld [vmem:[%s4306 + $0x20] sm:$0xff]
        %v4312 = vld [vmem:[%s4306 + $0x28] sm:$0xff]
        %v4313 = vld [vmem:[%s4306 + $0x30] sm:$0xff]
        %v4314 = vld [vmem:[%s4306 + $0x38] sm:$0xff]
        %v4315 = vld [vmem:[%s4306 + $0x40] sm:$0xff]
        %v4316 = vld [vmem:[%s4306 + $0x48] sm:$0xff]
        %v4317 = vld [vmem:[%s4306 + $0x50] sm:$0xff]
        %v4318 = vld [vmem:[%s4306 + $0x58] sm:$0xff]
        %v4319 = vld [vmem:[%s4306 + $0x60] sm:$0xff]
        %v4320 = vld [vmem:[%s4306 + $0x68] sm:$0xff]
        %v4321 = vld [vmem:[%s4306 + $0x70] sm:$0xff]
        %v4322 = vld [vmem:[%s4306 + $0x78] sm:$0xff]
        %v4323 = vadd.f32 %v4307, %v4289
        %v4324 = vadd.f32 %v4308, %v4290
        %v4325 = vadd.f32 %v4309, %v4291
        %v4326 = vadd.f32 %v4310, %v4292
        %v4327 = vadd.f32 %v4311, %v4293
        %v4328 = vadd.f32 %v4312, %v4294
        %v4329 = vadd.f32 %v4313, %v4295
        %v4330 = vadd.f32 %v4314, %v4296
        %v4331 = vadd.f32 %v4315, %v4297
        %v4332 = vadd.f32 %v4316, %v4298
        %v4333 = vadd.f32 %v4317, %v4299
        %v4334 = vadd.f32 %v4318, %v4300
        %v4335 = vadd.f32 %v4319, %v4301
        %v4336 = vadd.f32 %v4320, %v4302
        %v4337 = vadd.f32 %v4321, %v4303
        %v4338 = vadd.f32 %v4322, %v4304
        %4339 = vst.msk [vmem:[%s510] sm:$0xff] %vm3235, %v4323
        %4340 = vst.msk [vmem:[%s510 + $0x8] sm:$0xff] %vm3235, %v4324
        %4341 = vst.msk [vmem:[%s510 + $0x10] sm:$0xff] %vm3235, %v4325
        %4342 = vst.msk [vmem:[%s510 + $0x18] sm:$0xff] %vm3235, %v4326
        %4343 = vst.msk [vmem:[%s510 + $0x20] sm:$0xff] %vm3235, %v4327
        %4344 = vst.msk [vmem:[%s510 + $0x28] sm:$0xff] %vm3235, %v4328
        %4345 = vst.msk [vmem:[%s510 + $0x30] sm:$0xff] %vm3235, %v4329
        %4346 = vst.msk [vmem:[%s510 + $0x38] sm:$0xff] %vm3235, %v4330
        %4347 = vst.msk [vmem:[%s510 + $0x40] sm:$0xff] %vm3235, %v4331
        %4348 = vst.msk [vmem:[%s510 + $0x48] sm:$0xff] %vm3235, %v4332
        %4349 = vst.msk [vmem:[%s510 + $0x50] sm:$0xff] %vm3235, %v4333
        %4350 = vst.msk [vmem:[%s510 + $0x58] sm:$0xff] %vm3235, %v4334
        %4351 = vst.msk [vmem:[%s510 + $0x60] sm:$0xff] %vm3235, %v4335
        %4352 = vst.msk [vmem:[%s510 + $0x68] sm:$0xff] %vm3235, %v4336
        %4353 = vst.msk [vmem:[%s510 + $0x70] sm:$0xff] %vm3235, %v4337
        %4354 = vst.msk [vmem:[%s510 + $0x78] sm:$0xff] %vm3235, %v4338
        %s4355 = sand.u32 %s269, 1
        %s4356 = scalar_lea.sflag [#allocation5], %s4355
        %s4357 = sand.u32 %s269, 1
        %s4358 = smul.addr %s4357, 128
        %s4359 = scalar_lea.vmem [#allocation20], %s4358
        // Predicated region
        $region105: #{_lambda_.1} parent=59 // pred_check
          %p4360 = pneg %p279
        $region106: #{_lambda_.1} parent=59 // pred_check_branch
          %4362 = sbr.rel (%p4360) target = $region108
        $region107: #{_lambda_.1} parent=59 // pred_region
          %s4363 = smul.u32 8, %s37
          %s4365 = ssub.s32 2048, 2048
          %4366 = vsyncadd %s4356, %s4365
          %s4367 = smul.addr %s4363, 2
          %s4368 = smul.addr %s36, 32
          %s4369 = sadd.s32 %s4367, %s4368
          %s4370 = smul.addr %s4369, 128
          %s4371 = scalar_lea.hbm %s10, %s4370
          %s4372 = sshll.u32 %s4359, 4
          %s4373 = int_to_ptr.vmem [resolvable:$true] %s4372
          %4378 = dma.vmem_to_hbm [thread:$0]  %s4373, 2048, %s4371, %s4356, 128, 128, 8
        $region108: #{_lambda_.1} parent=59 // pred_fallthru
          _
      $region60: #{_lambda_.1} parent=5 // pred_fallthru
        _
      %p4379 = scmp.le.s32.totalorder 2, %s27
      // Predicated region
      $region109: #{_lambda_.1} parent=5 // pred_check
        %p4380 = pneg %p4379
      $region110: #{_lambda_.1} parent=5 // pred_check_branch
        %4382 = sbr.rel (%p4380) target = $region112
      $region111: #{_lambda_.1} parent=5 // pred_region
        %s4383 = ssub.s32 %s27, 2
        // Predicated region
        $region113: #{_lambda_.1} parent=111 // pred_check
          %p4384 = pneg %p285
        $region114: #{_lambda_.1} parent=111 // pred_check_branch
          %4386 = sbr.rel (%p4384) target = $region116
        $region115: #{_lambda_.1} parent=111 // pred_region
          %s4387 = sand.u32 %s270, 1
          %s4388 = scalar_lea.sflag [#allocation5], %s4387
          %s4389 = sand.u32 %s270, 1
          %s4390 = smul.addr %s4389, 128
          %s4391 = scalar_lea.vmem [#allocation20], %s4390
          %4392 = dma.done %s4388, 2048
        $region116: #{_lambda_.1} parent=111 // pred_fallthru
          _
      $region112: #{_lambda_.1} parent=5 // pred_fallthru
        _
    $region6: #{_lambda_.1} parent=1 // loop_footer
      %s31 = sadd.s32 1, %s27
    $region7: #{_lambda_.1} parent=1 // loop_footer_branch
      %26 = sbr.rel target = $region3
    $region8: #{_lambda_.1} parent=1 // loop_exit
      _
    %4393 = vsyncpa [#allocation4], 1
    %s4394 = scalar_lea.sflag [#allocation4], 1
    %4395 = vsyncpa %s4394, 1
    %4396 = vsyncpa [#allocation7], 1
    %4397 = vsyncpa [#allocation10], 1
    %4398 = vsyncpa [#allocation13], 1
    %4399 = vsyncpa [#allocation16], 1
    %4400 = vsyncpa [#allocation19], 1
    %4401 = vsyncpa [#allocation5], 1
    %s4402 = scalar_lea.sflag [#allocation5], 1
    %4403 = vsyncpa %s4402, 1

</llo_original>
